<compile_context>
chip_gen: v6e
topology: v6e:2x2x1
jax: 0.10.0
libtpu: 0.0.40
codegen_flags: <defaults>
</compile_context>

<pallas_src>
import math
import functools

import jax
import jax.numpy as jnp
from jax import lax
from jax.experimental import pallas as pl
from jax.experimental.pallas import tpu as pltpu


def _round_up(n, m):
    return ((n + m - 1) // m) * m


def _pack_gates(w, H, Gs, Wg):
    """w: (K, 4H) in torch gate order [i|f|g|o] -> (K, Wg); gate g occupies columns
    [g*Gs, g*Gs+H).  The cell ('g') gate columns are scaled by 2 (exact power of 2)
    so a single tanh(0.5*pre) in the kernel evaluates all four gate nonlinearities.
    Padding columns are zero and never read back."""
    K = w.shape[0]
    out = jnp.zeros((K, Wg), jnp.float32)
    for g in range(4):
        blk = w[:, g * H:(g + 1) * H].astype(jnp.float32)
        if g == 2:
            blk = blk * 2.0
        out = out.at[:, g * Gs:g * Gs + H].set(blk)
    return out


def _lstm_kernel(num_layers, H, Gs, unroll, *refs):
    # refs: x, [wx_l, wh_l, b_l]*L, fc_w, fc_b, out, h_scr, c_scr, seq_buf, proj_buf
    x_ref = refs[0]
    layer_refs = refs[1:1 + 3 * num_layers]
    wfc_ref = refs[1 + 3 * num_layers]
    bfc_ref = refs[2 + 3 * num_layers]
    out_ref = refs[3 + 3 * num_layers]
    h_scr, c_scr, seq_buf, proj_buf = refs[4 + 3 * num_layers:]

    t_idx = pl.program_id(1)
    T, B, _ = x_ref.shape           # (T_CHUNK, B_BLK, in_dim), static
    Wg = proj_buf.shape[-1]         # packed gate width (multiple of 128)

    @pl.when(t_idx == 0)
    def _():
        h_scr[...] = jnp.zeros_like(h_scr)
        c_scr[...] = jnp.zeros_like(c_scr)

    # TODO(synk): overlap the MXU-heavy chunk projections with the latency-bound
    # recurrence (layer-wavefront / prefetch layer-0 projection of chunk t+1); today
    # they run back-to-back within a chunk.
    for l in range(num_layers):
        wx_ref = layer_refs[3 * l + 0]   # (in_l, Wg) bf16
        wh_ref = layer_refs[3 * l + 1]   # (H, Wg)    bf16
        b_ref = layer_refs[3 * l + 2]    # (1, Wg)    f32  (bx + bh fused, g-gate x2)

        # ---- batched input projection for the whole chunk: one MXU matmul ----
        if l == 0:
            xin = x_ref[...]             # (T, B, in) bf16
        else:
            xin = seq_buf[...]           # (T, B, H) bf16 (previous layer's outputs)
        k = xin.shape[-1]
        proj2d = jnp.dot(xin.reshape(T * B, k), wx_ref[...],
                         preferred_element_type=jnp.float32) + b_ref[...]
        proj_buf[...] = proj2d.reshape(T, B, Wg)

        # ---- sequential recurrence: only h @ Wh + gate math on the critical path ----
        wh = wh_ref[...]                 # hoisted load, reused across timesteps
        write_seq = l < num_layers - 1

        def step(t, carry):
            h, c = carry
            gates = proj_buf[t] + jnp.dot(h.astype(wh.dtype), wh,
                                          preferred_element_type=jnp.float32)
            # One tanh covers every gate: g-gate pre-activations were pre-scaled by 2,
            # so tanh(0.5*gates) == tanh(g_pre) on the g lanes, and
            # sigmoid(pre) == 0.5*tanh(0.5*pre) + 0.5 on the i/f/o lanes.
            act = jnp.tanh(0.5 * gates)
            sig = 0.5 * act + 0.5
            i_g = sig[:, 0 * Gs:0 * Gs + H]
            f_g = sig[:, 1 * Gs:1 * Gs + H]
            g_g = act[:, 2 * Gs:2 * Gs + H]
            o_g = sig[:, 3 * Gs:3 * Gs + H]
            c_new = f_g * c + i_g * g_g
            h_new = o_g * jnp.tanh(c_new)
            if write_seq:
                seq_buf[t] = h_new.astype(seq_buf.dtype)
            return (h_new, c_new)

        h, c = lax.fori_loop(0, T, step, (h_scr[l], c_scr[l]), unroll=unroll)
        h_scr[l] = h
        c_scr[l] = c

    # ---- final timestep: fused fc (Linear) on the last layer's hidden state ----
    @pl.when(t_idx == pl.num_programs(1) - 1)
    def _():
        h_last = h_scr[num_layers - 1]                     # (B, H) f32
        out_ref[...] = (jnp.dot(h_last, wfc_ref[...],
                                preferred_element_type=jnp.float32) + bfc_ref[...])


def _vmem_estimate(t_chunk, b_block, input_dim, H, Wg, Op, num_layers,
                   weight_bufs=2, io_bufs=2):
    """Conservative VMEM byte estimate for one kernel instance."""
    bf2, f4 = 2, 4
    x_blk = io_bufs * t_chunk * b_block * input_dim * bf2
    out_blk = io_bufs * b_block * Op * f4
    w = 0
    for l in range(num_layers):
        in_l = input_dim if l == 0 else H
        w += (in_l * Wg + H * Wg) * bf2 + Wg * f4
    w += H * Op * f4 + Op * f4
    w *= weight_bufs
    scratch = (2 * num_layers * b_block * H * f4        # h, c state
               + t_chunk * b_block * H * bf2            # inter-layer chunk acts
               + t_chunk * b_block * Wg * f4)           # chunk gate projections
    return x_blk + out_blk + w + scratch


def seq_model_forward(x, lstm_params, fc_w, fc_b, hidden_dim, *,
                      t_chunk=None, b_block=None, single_buffer_weights=True):
    """x: (batch, seq, input_dim) f32.
    lstm_params: list per layer of (weight_ih (4H,in_l), weight_hh (4H,H),
                                    bias_ih (4H,), bias_hh (4H,))
    fc_w: (out, H), fc_b: (out,). Returns (batch, out) f32."""
    batch, seq, input_dim = x.shape
    num_layers = len(lstm_params)
    H = hidden_dim
    out_dim = fc_w.shape[0]
    Op = _round_up(out_dim, 128)

    # Gate layout: contiguous gates for small / 128-aligned H (no wasted columns),
    # per-gate 128-alignment otherwise (wasted-work factor round_up(H,128)/H).
    Gs = H if (H <= 64 or H % 128 == 0) else _round_up(H, 128)
    Wg = _round_up(3 * Gs + H, 128)

    # Batch block: more rows -> better MXU utilization of the sequential h@Wh matmul.
    # Capped at 64 so per-step live gate tensors stay vreg/VMEM friendly and so large
    # batches still split into >= 2 blocks for the megacore "parallel" axis.
    if b_block is None:
        b_block = min(_round_up(batch, 8), 64)
    Bp = _round_up(batch, b_block)
    num_b_blocks = Bp // b_block

    # Generation-aware VMEM budget (assume 64 MiB, i.e. v7x, if the query fails).
    try:
        vmem_cap = int(pltpu.get_tpu_info().vmem_capacity_bytes)
    except Exception:
        vmem_cap = 64 * 1024 * 1024
    vmem_budget = int(vmem_cap * 0.75)

    est = functools.partial(_vmem_estimate, b_block=b_block, input_dim=input_dim,
                            H=H, Wg=Wg, Op=Op, num_layers=num_layers)
    if t_chunk is None:
        # Largest divisor of seq (<= 128) whose buffers fit the budget: amortizes the
        # ~0.35us/grid-step overhead and grows each chunk projection matmul.
        t_chunk = 1
        for d in range(1, min(seq, 128) + 1):
            if seq % d == 0 and est(d) <= int(0.8 * vmem_budget):
                t_chunk = d
    assert seq % t_chunk == 0, "seq must be divisible by t_chunk"
    num_chunks = seq // t_chunk
    vmem_limit = min(vmem_budget, max(2 * est(t_chunk) + (4 << 20), 32 << 20))

    # Full unroll only for small batch blocks; partial unroll bounds live ranges once
    # the per-step gate tensors get large.
    unroll = True if b_block <= 16 else min(4, t_chunk)

    # Glue: seq-major layout, batch padded to the block size, activations in bf16.
    # TODO(synk): fold this transpose/pad into the producer (or tile x batch-major and
    # transpose per-tile in-kernel) to avoid an extra HBM pass over x for long seqs.
    x_sm = jnp.transpose(x, (1, 0, 2))
    x_sm = jnp.pad(x_sm, ((0, 0), (0, Bp - batch), (0, 0))).astype(jnp.bfloat16)

    # One-time weight prep: transpose to (in, 4H), pack/align gates, fuse biases.
    w_args, w_shapes = [], []
    for l, (wx, wh, bx, bh) in enumerate(lstm_params):
        in_l = wx.shape[1]
        wx_p = _pack_gates(wx.T, H, Gs, Wg)
        wh_p = _pack_gates(wh.T, H, Gs, Wg)
        b_p = _pack_gates((bx + bh).reshape(1, 4 * H), H, Gs, Wg)      # (1, Wg) f32
        w_args += [wx_p.astype(jnp.bfloat16), wh_p.astype(jnp.bfloat16), b_p]
        w_shapes += [(in_l, Wg), (H, Wg), (1, Wg)]

    fc_w_p = jnp.zeros((H, Op), jnp.float32).at[:, :out_dim].set(
        fc_w.T.astype(jnp.float32))
    fc_b_p = jnp.zeros((1, Op), jnp.float32).at[:, :out_dim].set(
        fc_b.reshape(1, out_dim).astype(jnp.float32))
    w_args += [fc_w_p, fc_b_p]
    w_shapes += [(H, Op), (1, Op)]

    flat_args = [x_sm] + w_args
    kernel = functools.partial(_lstm_kernel, num_layers, H, Gs, unroll)

    def build(weight_mode):
        in_specs = [pl.BlockSpec((t_chunk, b_block, input_dim),
                                 lambda b, t: (t, b, 0))]
        for shp in w_shapes:
            in_specs.append(pl.BlockSpec(shp, lambda b, t: (0, 0),
                                         pipeline_mode=weight_mode))
        return pl.pallas_call(
            kernel,
            out_shape=jax.ShapeDtypeStruct((Bp, Op), jnp.float32),
            grid_spec=pltpu.PrefetchScalarGridSpec(
                num_scalar_prefetch=0,
                grid=(num_b_blocks, num_chunks),
                in_specs=in_specs,
                out_specs=pl.BlockSpec((b_block, Op), lambda b, t: (b, 0)),
                scratch_shapes=[
                    pltpu.VMEM((num_layers, b_block, H), jnp.float32),    # h state
                    pltpu.VMEM((num_layers, b_block, H), jnp.float32),    # c state
                    pltpu.VMEM((t_chunk if num_layers > 1 else 1, b_block, H),
                               jnp.bfloat16),                             # inter-layer acts
                    pltpu.VMEM((t_chunk, b_block, Wg), jnp.float32),      # chunk projections
                ],
            ),
            compiler_params=pltpu.CompilerParams(
                # batch blocks may split across TensorCores; time is sequential
                dimension_semantics=("parallel", "arbitrary"),
                vmem_limit_bytes=vmem_limit,
            ),
        )

    if single_buffer_weights:
        try:
            # Constant-index weight blocks gain nothing from double buffering;
            # single-buffer them to halve their VMEM footprint.
            out_pad = build(pl.Buffered(1))(*flat_args)
        except Exception:
            out_pad = build(None)(*flat_args)
    else:
        out_pad = build(None)(*flat_args)

    return out_pad[:batch, :out_dim]


def seq_model_reference(x, lstm_params, fc_w, fc_b):
    """Pure-JAX f32 reference matching torch SeqModel.forward (nn.LSTM + nn.Linear)."""
    batch, seq, _ = x.shape
    num_layers = len(lstm_params)
    H = lstm_params[0][1].shape[1]
    h = [jnp.zeros((batch, H), jnp.float32) for _ in range(num_layers)]
    c = [jnp.zeros((batch, H), jnp.float32) for _ in range(num_layers)]
    for t in range(seq):
        inp = x[:, t, :]
        for l, (wx, wh, bx, bh) in enumerate(lstm_params):
            gates = inp @ wx.T + bx + h[l] @ wh.T + bh
            i, f, g, o = jnp.split(gates, 4, axis=1)   # torch gate order: i, f, g, o
            i = jax.nn.sigmoid(i)
            f = jax.nn.sigmoid(f)
            g = jnp.tanh(g)
            o = jax.nn.sigmoid(o)
            c[l] = f * c[l] + i * g
            h[l] = o * jnp.tanh(c[l])
            inp = h[l]
    return h[-1] @ fc_w.T + fc_b


if __name__ == "__main__":
    batch, seq = 2, 16
    input_size, hidden_size, output_size, num_layers = 16, 32, 8, 2

    key = jax.random.PRNGKey(0)
    std = 1.0 / math.sqrt(hidden_size)

    lstm_params = []
    for l in range(num_layers):
        in_l = input_size if l == 0 else hidden_size
        key, k1, k2, k3, k4 = jax.random.split(key, 5)
        wx = jax.random.uniform(k1, (4 * hidden_size, in_l), jnp.float32, -std, std)
        wh = jax.random.uniform(k2, (4 * hidden_size, hidden_size), jnp.float32, -std, std)
        bx = jax.random.uniform(k3, (4 * hidden_size,), jnp.float32, -std, std)
        bh = jax.random.uniform(k4, (4 * hidden_size,), jnp.float32, -std, std)
        lstm_params.append((wx, wh, bx, bh))

    key, kw, kb, kx = jax.random.split(key, 4)
    fc_w = jax.random.uniform(kw, (output_size, hidden_size), jnp.float32, -std, std)
    fc_b = jax.random.uniform(kb, (output_size,), jnp.float32, -std, std)
    x = jax.random.normal(kx, (batch, seq, input_size), jnp.float32)

    # t_chunk=8 exercises the cross-chunk hidden/cell-state carry across grid steps.
    out = seq_model_forward(x, lstm_params, fc_w, fc_b, hidden_size, t_chunk=8)
    out = jax.block_until_ready(out)

    ref = seq_model_reference(x, lstm_params, fc_w, fc_b)
    assert out.shape == (batch, output_size)
    err = float(jnp.max(jnp.abs(out - ref)))
    # bf16 weights/activations with f32 accumulation -> small numeric delta vs f32 ref
    assert err < 3e-2, f"max abs err = {err}"
    print("KERNEL_OK")
</pallas_src>

<mosaic_0001>
module attributes {stable_mosaic.version = 11 : i64} {
  func.func @_lstm_kernel(%arg0: i32, %arg1: i32, %arg2: memref<8x8x16xbf16, #tpu.memory_space<vmem>>, %arg3: memref<16x128xbf16, #tpu.memory_space<vmem>>, %arg4: memref<32x128xbf16, #tpu.memory_space<vmem>>, %arg5: memref<1x128xf32, #tpu.memory_space<vmem>>, %arg6: memref<32x128xbf16, #tpu.memory_space<vmem>>, %arg7: memref<32x128xbf16, #tpu.memory_space<vmem>>, %arg8: memref<1x128xf32, #tpu.memory_space<vmem>>, %arg9: memref<32x128xf32, #tpu.memory_space<vmem>>, %arg10: memref<1x128xf32, #tpu.memory_space<vmem>>, %arg11: memref<8x128xf32, #tpu.memory_space<vmem>>, %arg12: memref<2x8x32xf32, #tpu.memory_space<vmem>>, %arg13: memref<2x8x32xf32, #tpu.memory_space<vmem>>, %arg14: memref<8x8x32xbf16, #tpu.memory_space<vmem>>, %arg15: memref<8x8x128xf32, #tpu.memory_space<vmem>>) attributes {dimension_semantics = [#tpu.dimension_semantics<parallel>, #tpu.dimension_semantics<arbitrary>], iteration_bounds = array<i64: 1, 2>, scalar_prefetch = 0 : i64, scratch_operands = 4 : i64, tpu.core_type = #tpu.core_type<tc>, window_params = [{transform_indices = @transform_0, window_bounds = array<i64: 8, 8, 16>}, {pipeline_mode = #tpu.pipeline_mode<synchronous>, transform_indices = @transform_1, window_bounds = array<i64: 16, 128>}, {pipeline_mode = #tpu.pipeline_mode<synchronous>, transform_indices = @transform_2, window_bounds = array<i64: 32, 128>}, {pipeline_mode = #tpu.pipeline_mode<synchronous>, transform_indices = @transform_3, window_bounds = array<i64: 1, 128>}, {pipeline_mode = #tpu.pipeline_mode<synchronous>, transform_indices = @transform_4, window_bounds = array<i64: 32, 128>}, {pipeline_mode = #tpu.pipeline_mode<synchronous>, transform_indices = @transform_5, window_bounds = array<i64: 32, 128>}, {pipeline_mode = #tpu.pipeline_mode<synchronous>, transform_indices = @transform_6, window_bounds = array<i64: 1, 128>}, {pipeline_mode = #tpu.pipeline_mode<synchronous>, transform_indices = @transform_7, window_bounds = array<i64: 32, 128>}, {pipeline_mode = #tpu.pipeline_mode<synchronous>, transform_indices = @transform_8, window_bounds = array<i64: 1, 128>}, {transform_indices = @transform_9, window_bounds = array<i64: 8, 128>}]} {
    %c0_i32 = arith.constant 0 : i32
    %0 = arith.cmpi eq, %arg1, %c0_i32 : i32
    %1 = arith.extui %0 : i1 to i32
    %c0_i32_0 = arith.constant 0 : i32
    %2 = arith.cmpi ne, %1, %c0_i32_0 : i32
    scf.if %2 {
      %cst_172 = arith.constant 0.000000e+00 : f32
      %438 = vector.broadcast %cst_172 : f32 to vector<2x8x32xf32>
      %c0_173 = arith.constant 0 : index
      %c0_174 = arith.constant 0 : index
      %c0_175 = arith.constant 0 : index
      %439 = vector.load %arg12[%c0_173, %c0_174, %c0_175] : memref<2x8x32xf32, #tpu.memory_space<vmem>>, vector<2x8x32xf32>
      tpu.vector_store %arg12[%c0_173, %c0_174, %c0_175], %438 {strides = array<i32>} : memref<2x8x32xf32, #tpu.memory_space<vmem>>, vector<2x8x32xf32>,
      %cst_176 = arith.constant 0.000000e+00 : f32
      %440 = vector.broadcast %cst_176 : f32 to vector<2x8x32xf32>
      %c0_177 = arith.constant 0 : index
      %c0_178 = arith.constant 0 : index
      %c0_179 = arith.constant 0 : index
      %441 = vector.load %arg13[%c0_177, %c0_178, %c0_179] : memref<2x8x32xf32, #tpu.memory_space<vmem>>, vector<2x8x32xf32>
      tpu.vector_store %arg13[%c0_177, %c0_178, %c0_179], %440 {strides = array<i32>} : memref<2x8x32xf32, #tpu.memory_space<vmem>>, vector<2x8x32xf32>,
    } else {
    }
    %c0 = arith.constant 0 : index
    %c0_1 = arith.constant 0 : index
    %c0_2 = arith.constant 0 : index
    %3 = vector.load %arg2[%c0, %c0_1, %c0_2] : memref<8x8x16xbf16, #tpu.memory_space<vmem>>, vector<8x8x16xbf16>
    %4 = vector.shape_cast %3 : vector<8x8x16xbf16> to vector<64x16xbf16>
    %c0_3 = arith.constant 0 : index
    %c0_4 = arith.constant 0 : index
    %5 = vector.load %arg3[%c0_3, %c0_4] : memref<16x128xbf16, #tpu.memory_space<vmem>>, vector<16x128xbf16>
    %cst = arith.constant dense<0.000000e+00> : vector<64x128xf32>
    %6 = tpu.matmul %4, %5, %cst {dimension_numbers = #tpu.dot_dimension_numbers<[1], [0], [0], [1], [0, 0, 1, 1], [], []>} : vector<64x16xbf16>, vector<16x128xbf16>, vector<64x128xf32> -> vector<64x128xf32>
    %c0_5 = arith.constant 0 : index
    %c0_6 = arith.constant 0 : index
    %7 = vector.load %arg5[%c0_5, %c0_6] : memref<1x128xf32, #tpu.memory_space<vmem>>, vector<1x128xf32>
    %8 = vector.broadcast %7 : vector<1x128xf32> to vector<64x128xf32>
    %9 = arith.addf %6, %8 : vector<64x128xf32>
    %10 = vector.shape_cast %9 : vector<64x128xf32> to vector<8x8x128xf32>
    %c0_7 = arith.constant 0 : index
    %c0_8 = arith.constant 0 : index
    %c0_9 = arith.constant 0 : index
    %11 = vector.load %arg15[%c0_7, %c0_8, %c0_9] : memref<8x8x128xf32, #tpu.memory_space<vmem>>, vector<8x8x128xf32>
    tpu.vector_store %arg15[%c0_7, %c0_8, %c0_9], %10 {strides = array<i32>} : memref<8x8x128xf32, #tpu.memory_space<vmem>>, vector<8x8x128xf32>,
    %c0_10 = arith.constant 0 : index
    %c0_11 = arith.constant 0 : index
    %12 = vector.load %arg4[%c0_10, %c0_11] : memref<32x128xbf16, #tpu.memory_space<vmem>>, vector<32x128xbf16>
    %c0_12 = arith.constant 0 : index
    %c0_13 = arith.constant 0 : index
    %c0_14 = arith.constant 0 : index
    %13 = vector.load %arg12[%c0_12, %c0_13, %c0_14] : memref<2x8x32xf32, #tpu.memory_space<vmem>>, vector<1x8x32xf32>
    %14 = vector.shape_cast %13 : vector<1x8x32xf32> to vector<8x32xf32>
    %c0_15 = arith.constant 0 : index
    %c0_16 = arith.constant 0 : index
    %c0_17 = arith.constant 0 : index
    %15 = vector.load %arg13[%c0_15, %c0_16, %c0_17] : memref<2x8x32xf32, #tpu.memory_space<vmem>>, vector<1x8x32xf32>
    %16 = vector.shape_cast %15 : vector<1x8x32xf32> to vector<8x32xf32>
    %c0_i32_18 = arith.constant 0 : i32
    %17 = arith.index_cast %c0_i32_18 : i32 to index
    %c0_19 = arith.constant 0 : index
    %c0_20 = arith.constant 0 : index
    %18 = vector.load %arg15[%17, %c0_19, %c0_20] : memref<8x8x128xf32, #tpu.memory_space<vmem>>, vector<1x8x128xf32>
    %19 = vector.shape_cast %18 : vector<1x8x128xf32> to vector<8x128xf32>
    %20 = arith.truncf %14 : vector<8x32xf32> to vector<8x32xbf16>
    %cst_21 = arith.constant dense<0.000000e+00> : vector<8x128xf32>
    %21 = tpu.matmul %20, %12, %cst_21 {dimension_numbers = #tpu.dot_dimension_numbers<[1], [0], [0], [1], [0, 0, 1, 1], [], []>} : vector<8x32xbf16>, vector<32x128xbf16>, vector<8x128xf32> -> vector<8x128xf32>
    %22 = arith.addf %19, %21 : vector<8x128xf32>
    %cst_22 = arith.constant 5.000000e-01 : f32
    %23 = vector.broadcast %cst_22 : f32 to vector<8x128xf32>
    %24 = arith.mulf %23, %22 : vector<8x128xf32>
    %25 = math.tanh %24 : vector<8x128xf32>
    %cst_23 = arith.constant 5.000000e-01 : f32
    %26 = vector.broadcast %cst_23 : f32 to vector<8x128xf32>
    %27 = arith.mulf %26, %25 : vector<8x128xf32>
    %cst_24 = arith.constant 5.000000e-01 : f32
    %28 = vector.broadcast %cst_24 : f32 to vector<8x128xf32>
    %29 = arith.addf %27, %28 : vector<8x128xf32>
    %30 = vector.extract_strided_slice %29 {offsets = [0, 0], sizes = [8, 32], strides = [1, 1]} : vector<8x128xf32> to vector<8x32xf32>
    %31 = vector.extract_strided_slice %29 {offsets = [0, 32], sizes = [8, 32], strides = [1, 1]} : vector<8x128xf32> to vector<8x32xf32>
    %32 = vector.extract_strided_slice %25 {offsets = [0, 64], sizes = [8, 32], strides = [1, 1]} : vector<8x128xf32> to vector<8x32xf32>
    %33 = vector.extract_strided_slice %29 {offsets = [0, 96], sizes = [8, 32], strides = [1, 1]} : vector<8x128xf32> to vector<8x32xf32>
    %34 = arith.mulf %31, %16 : vector<8x32xf32>
    %35 = arith.mulf %30, %32 : vector<8x32xf32>
    %36 = arith.addf %34, %35 : vector<8x32xf32>
    %37 = math.tanh %36 : vector<8x32xf32>
    %38 = arith.mulf %33, %37 : vector<8x32xf32>
    %39 = arith.truncf %38 : vector<8x32xf32> to vector<8x32xbf16>
    %40 = arith.index_cast %c0_i32_18 : i32 to index
    %c0_25 = arith.constant 0 : index
    %c0_26 = arith.constant 0 : index
    %41 = vector.load %arg14[%40, %c0_25, %c0_26] : memref<8x8x32xbf16, #tpu.memory_space<vmem>>, vector<1x8x32xbf16>
    %42 = vector.shape_cast %41 : vector<1x8x32xbf16> to vector<8x32xbf16>
    %43 = vector.shape_cast %39 : vector<8x32xbf16> to vector<1x8x32xbf16>
    tpu.vector_store %arg14[%40, %c0_25, %c0_26], %43 {strides = array<i32>} : memref<8x8x32xbf16, #tpu.memory_space<vmem>>, vector<1x8x32xbf16>,
    %c1_i32 = arith.constant 1 : i32
    %44 = arith.index_cast %c1_i32 : i32 to index
    %c0_27 = arith.constant 0 : index
    %c0_28 = arith.constant 0 : index
    %45 = vector.load %arg15[%44, %c0_27, %c0_28] : memref<8x8x128xf32, #tpu.memory_space<vmem>>, vector<1x8x128xf32>
    %46 = vector.shape_cast %45 : vector<1x8x128xf32> to vector<8x128xf32>
    %47 = arith.truncf %38 : vector<8x32xf32> to vector<8x32xbf16>
    %cst_29 = arith.constant dense<0.000000e+00> : vector<8x128xf32>
    %48 = tpu.matmul %47, %12, %cst_29 {dimension_numbers = #tpu.dot_dimension_numbers<[1], [0], [0], [1], [0, 0, 1, 1], [], []>} : vector<8x32xbf16>, vector<32x128xbf16>, vector<8x128xf32> -> vector<8x128xf32>
    %49 = arith.addf %46, %48 : vector<8x128xf32>
    %cst_30 = arith.constant 5.000000e-01 : f32
    %50 = vector.broadcast %cst_30 : f32 to vector<8x128xf32>
    %51 = arith.mulf %50, %49 : vector<8x128xf32>
    %52 = math.tanh %51 : vector<8x128xf32>
    %cst_31 = arith.constant 5.000000e-01 : f32
    %53 = vector.broadcast %cst_31 : f32 to vector<8x128xf32>
    %54 = arith.mulf %53, %52 : vector<8x128xf32>
    %cst_32 = arith.constant 5.000000e-01 : f32
    %55 = vector.broadcast %cst_32 : f32 to vector<8x128xf32>
    %56 = arith.addf %54, %55 : vector<8x128xf32>
    %57 = vector.extract_strided_slice %56 {offsets = [0, 0], sizes = [8, 32], strides = [1, 1]} : vector<8x128xf32> to vector<8x32xf32>
    %58 = vector.extract_strided_slice %56 {offsets = [0, 32], sizes = [8, 32], strides = [1, 1]} : vector<8x128xf32> to vector<8x32xf32>
    %59 = vector.extract_strided_slice %52 {offsets = [0, 64], sizes = [8, 32], strides = [1, 1]} : vector<8x128xf32> to vector<8x32xf32>
    %60 = vector.extract_strided_slice %56 {offsets = [0, 96], sizes = [8, 32], strides = [1, 1]} : vector<8x128xf32> to vector<8x32xf32>
    %61 = arith.mulf %58, %36 : vector<8x32xf32>
    %62 = arith.mulf %57, %59 : vector<8x32xf32>
    %63 = arith.addf %61, %62 : vector<8x32xf32>
    %64 = math.tanh %63 : vector<8x32xf32>
    %65 = arith.mulf %60, %64 : vector<8x32xf32>
    %66 = arith.truncf %65 : vector<8x32xf32> to vector<8x32xbf16>
    %67 = arith.index_cast %c1_i32 : i32 to index
    %c0_33 = arith.constant 0 : index
    %c0_34 = arith.constant 0 : index
    %68 = vector.load %arg14[%67, %c0_33, %c0_34] : memref<8x8x32xbf16, #tpu.memory_space<vmem>>, vector<1x8x32xbf16>
    %69 = vector.shape_cast %68 : vector<1x8x32xbf16> to vector<8x32xbf16>
    %70 = vector.shape_cast %66 : vector<8x32xbf16> to vector<1x8x32xbf16>
    tpu.vector_store %arg14[%67, %c0_33, %c0_34], %70 {strides = array<i32>} : memref<8x8x32xbf16, #tpu.memory_space<vmem>>, vector<1x8x32xbf16>,
    %c2_i32 = arith.constant 2 : i32
    %71 = arith.index_cast %c2_i32 : i32 to index
    %c0_35 = arith.constant 0 : index
    %c0_36 = arith.constant 0 : index
    %72 = vector.load %arg15[%71, %c0_35, %c0_36] : memref<8x8x128xf32, #tpu.memory_space<vmem>>, vector<1x8x128xf32>
    %73 = vector.shape_cast %72 : vector<1x8x128xf32> to vector<8x128xf32>
    %74 = arith.truncf %65 : vector<8x32xf32> to vector<8x32xbf16>
    %cst_37 = arith.constant dense<0.000000e+00> : vector<8x128xf32>
    %75 = tpu.matmul %74, %12, %cst_37 {dimension_numbers = #tpu.dot_dimension_numbers<[1], [0], [0], [1], [0, 0, 1, 1], [], []>} : vector<8x32xbf16>, vector<32x128xbf16>, vector<8x128xf32> -> vector<8x128xf32>
    %76 = arith.addf %73, %75 : vector<8x128xf32>
    %cst_38 = arith.constant 5.000000e-01 : f32
    %77 = vector.broadcast %cst_38 : f32 to vector<8x128xf32>
    %78 = arith.mulf %77, %76 : vector<8x128xf32>
    %79 = math.tanh %78 : vector<8x128xf32>
    %cst_39 = arith.constant 5.000000e-01 : f32
    %80 = vector.broadcast %cst_39 : f32 to vector<8x128xf32>
    %81 = arith.mulf %80, %79 : vector<8x128xf32>
    %cst_40 = arith.constant 5.000000e-01 : f32
    %82 = vector.broadcast %cst_40 : f32 to vector<8x128xf32>
    %83 = arith.addf %81, %82 : vector<8x128xf32>
    %84 = vector.extract_strided_slice %83 {offsets = [0, 0], sizes = [8, 32], strides = [1, 1]} : vector<8x128xf32> to vector<8x32xf32>
    %85 = vector.extract_strided_slice %83 {offsets = [0, 32], sizes = [8, 32], strides = [1, 1]} : vector<8x128xf32> to vector<8x32xf32>
    %86 = vector.extract_strided_slice %79 {offsets = [0, 64], sizes = [8, 32], strides = [1, 1]} : vector<8x128xf32> to vector<8x32xf32>
    %87 = vector.extract_strided_slice %83 {offsets = [0, 96], sizes = [8, 32], strides = [1, 1]} : vector<8x128xf32> to vector<8x32xf32>
    %88 = arith.mulf %85, %63 : vector<8x32xf32>
    %89 = arith.mulf %84, %86 : vector<8x32xf32>
    %90 = arith.addf %88, %89 : vector<8x32xf32>
    %91 = math.tanh %90 : vector<8x32xf32>
    %92 = arith.mulf %87, %91 : vector<8x32xf32>
    %93 = arith.truncf %92 : vector<8x32xf32> to vector<8x32xbf16>
    %94 = arith.index_cast %c2_i32 : i32 to index
    %c0_41 = arith.constant 0 : index
    %c0_42 = arith.constant 0 : index
    %95 = vector.load %arg14[%94, %c0_41, %c0_42] : memref<8x8x32xbf16, #tpu.memory_space<vmem>>, vector<1x8x32xbf16>
    %96 = vector.shape_cast %95 : vector<1x8x32xbf16> to vector<8x32xbf16>
    %97 = vector.shape_cast %93 : vector<8x32xbf16> to vector<1x8x32xbf16>
    tpu.vector_store %arg14[%94, %c0_41, %c0_42], %97 {strides = array<i32>} : memref<8x8x32xbf16, #tpu.memory_space<vmem>>, vector<1x8x32xbf16>,
    %c3_i32 = arith.constant 3 : i32
    %98 = arith.index_cast %c3_i32 : i32 to index
    %c0_43 = arith.constant 0 : index
    %c0_44 = arith.constant 0 : index
    %99 = vector.load %arg15[%98, %c0_43, %c0_44] : memref<8x8x128xf32, #tpu.memory_space<vmem>>, vector<1x8x128xf32>
    %100 = vector.shape_cast %99 : vector<1x8x128xf32> to vector<8x128xf32>
    %101 = arith.truncf %92 : vector<8x32xf32> to vector<8x32xbf16>
    %cst_45 = arith.constant dense<0.000000e+00> : vector<8x128xf32>
    %102 = tpu.matmul %101, %12, %cst_45 {dimension_numbers = #tpu.dot_dimension_numbers<[1], [0], [0], [1], [0, 0, 1, 1], [], []>} : vector<8x32xbf16>, vector<32x128xbf16>, vector<8x128xf32> -> vector<8x128xf32>
    %103 = arith.addf %100, %102 : vector<8x128xf32>
    %cst_46 = arith.constant 5.000000e-01 : f32
    %104 = vector.broadcast %cst_46 : f32 to vector<8x128xf32>
    %105 = arith.mulf %104, %103 : vector<8x128xf32>
    %106 = math.tanh %105 : vector<8x128xf32>
    %cst_47 = arith.constant 5.000000e-01 : f32
    %107 = vector.broadcast %cst_47 : f32 to vector<8x128xf32>
    %108 = arith.mulf %107, %106 : vector<8x128xf32>
    %cst_48 = arith.constant 5.000000e-01 : f32
    %109 = vector.broadcast %cst_48 : f32 to vector<8x128xf32>
    %110 = arith.addf %108, %109 : vector<8x128xf32>
    %111 = vector.extract_strided_slice %110 {offsets = [0, 0], sizes = [8, 32], strides = [1, 1]} : vector<8x128xf32> to vector<8x32xf32>
    %112 = vector.extract_strided_slice %110 {offsets = [0, 32], sizes = [8, 32], strides = [1, 1]} : vector<8x128xf32> to vector<8x32xf32>
    %113 = vector.extract_strided_slice %106 {offsets = [0, 64], sizes = [8, 32], strides = [1, 1]} : vector<8x128xf32> to vector<8x32xf32>
    %114 = vector.extract_strided_slice %110 {offsets = [0, 96], sizes = [8, 32], strides = [1, 1]} : vector<8x128xf32> to vector<8x32xf32>
    %115 = arith.mulf %112, %90 : vector<8x32xf32>
    %116 = arith.mulf %111, %113 : vector<8x32xf32>
    %117 = arith.addf %115, %116 : vector<8x32xf32>
    %118 = math.tanh %117 : vector<8x32xf32>
    %119 = arith.mulf %114, %118 : vector<8x32xf32>
    %120 = arith.truncf %119 : vector<8x32xf32> to vector<8x32xbf16>
    %121 = arith.index_cast %c3_i32 : i32 to index
    %c0_49 = arith.constant 0 : index
    %c0_50 = arith.constant 0 : index
    %122 = vector.load %arg14[%121, %c0_49, %c0_50] : memref<8x8x32xbf16, #tpu.memory_space<vmem>>, vector<1x8x32xbf16>
    %123 = vector.shape_cast %122 : vector<1x8x32xbf16> to vector<8x32xbf16>
    %124 = vector.shape_cast %120 : vector<8x32xbf16> to vector<1x8x32xbf16>
    tpu.vector_store %arg14[%121, %c0_49, %c0_50], %124 {strides = array<i32>} : memref<8x8x32xbf16, #tpu.memory_space<vmem>>, vector<1x8x32xbf16>,
    %c4_i32 = arith.constant 4 : i32
    %125 = arith.index_cast %c4_i32 : i32 to index
    %c0_51 = arith.constant 0 : index
    %c0_52 = arith.constant 0 : index
    %126 = vector.load %arg15[%125, %c0_51, %c0_52] : memref<8x8x128xf32, #tpu.memory_space<vmem>>, vector<1x8x128xf32>
    %127 = vector.shape_cast %126 : vector<1x8x128xf32> to vector<8x128xf32>
    %128 = arith.truncf %119 : vector<8x32xf32> to vector<8x32xbf16>
    %cst_53 = arith.constant dense<0.000000e+00> : vector<8x128xf32>
    %129 = tpu.matmul %128, %12, %cst_53 {dimension_numbers = #tpu.dot_dimension_numbers<[1], [0], [0], [1], [0, 0, 1, 1], [], []>} : vector<8x32xbf16>, vector<32x128xbf16>, vector<8x128xf32> -> vector<8x128xf32>
    %130 = arith.addf %127, %129 : vector<8x128xf32>
    %cst_54 = arith.constant 5.000000e-01 : f32
    %131 = vector.broadcast %cst_54 : f32 to vector<8x128xf32>
    %132 = arith.mulf %131, %130 : vector<8x128xf32>
    %133 = math.tanh %132 : vector<8x128xf32>
    %cst_55 = arith.constant 5.000000e-01 : f32
    %134 = vector.broadcast %cst_55 : f32 to vector<8x128xf32>
    %135 = arith.mulf %134, %133 : vector<8x128xf32>
    %cst_56 = arith.constant 5.000000e-01 : f32
    %136 = vector.broadcast %cst_56 : f32 to vector<8x128xf32>
    %137 = arith.addf %135, %136 : vector<8x128xf32>
    %138 = vector.extract_strided_slice %137 {offsets = [0, 0], sizes = [8, 32], strides = [1, 1]} : vector<8x128xf32> to vector<8x32xf32>
    %139 = vector.extract_strided_slice %137 {offsets = [0, 32], sizes = [8, 32], strides = [1, 1]} : vector<8x128xf32> to vector<8x32xf32>
    %140 = vector.extract_strided_slice %133 {offsets = [0, 64], sizes = [8, 32], strides = [1, 1]} : vector<8x128xf32> to vector<8x32xf32>
    %141 = vector.extract_strided_slice %137 {offsets = [0, 96], sizes = [8, 32], strides = [1, 1]} : vector<8x128xf32> to vector<8x32xf32>
    %142 = arith.mulf %139, %117 : vector<8x32xf32>
    %143 = arith.mulf %138, %140 : vector<8x32xf32>
    %144 = arith.addf %142, %143 : vector<8x32xf32>
    %145 = math.tanh %144 : vector<8x32xf32>
    %146 = arith.mulf %141, %145 : vector<8x32xf32>
    %147 = arith.truncf %146 : vector<8x32xf32> to vector<8x32xbf16>
    %148 = arith.index_cast %c4_i32 : i32 to index
    %c0_57 = arith.constant 0 : index
    %c0_58 = arith.constant 0 : index
    %149 = vector.load %arg14[%148, %c0_57, %c0_58] : memref<8x8x32xbf16, #tpu.memory_space<vmem>>, vector<1x8x32xbf16>
    %150 = vector.shape_cast %149 : vector<1x8x32xbf16> to vector<8x32xbf16>
    %151 = vector.shape_cast %147 : vector<8x32xbf16> to vector<1x8x32xbf16>
    tpu.vector_store %arg14[%148, %c0_57, %c0_58], %151 {strides = array<i32>} : memref<8x8x32xbf16, #tpu.memory_space<vmem>>, vector<1x8x32xbf16>,
    %c5_i32 = arith.constant 5 : i32
    %152 = arith.index_cast %c5_i32 : i32 to index
    %c0_59 = arith.constant 0 : index
    %c0_60 = arith.constant 0 : index
    %153 = vector.load %arg15[%152, %c0_59, %c0_60] : memref<8x8x128xf32, #tpu.memory_space<vmem>>, vector<1x8x128xf32>
    %154 = vector.shape_cast %153 : vector<1x8x128xf32> to vector<8x128xf32>
    %155 = arith.truncf %146 : vector<8x32xf32> to vector<8x32xbf16>
    %cst_61 = arith.constant dense<0.000000e+00> : vector<8x128xf32>
    %156 = tpu.matmul %155, %12, %cst_61 {dimension_numbers = #tpu.dot_dimension_numbers<[1], [0], [0], [1], [0, 0, 1, 1], [], []>} : vector<8x32xbf16>, vector<32x128xbf16>, vector<8x128xf32> -> vector<8x128xf32>
    %157 = arith.addf %154, %156 : vector<8x128xf32>
    %cst_62 = arith.constant 5.000000e-01 : f32
    %158 = vector.broadcast %cst_62 : f32 to vector<8x128xf32>
    %159 = arith.mulf %158, %157 : vector<8x128xf32>
    %160 = math.tanh %159 : vector<8x128xf32>
    %cst_63 = arith.constant 5.000000e-01 : f32
    %161 = vector.broadcast %cst_63 : f32 to vector<8x128xf32>
    %162 = arith.mulf %161, %160 : vector<8x128xf32>
    %cst_64 = arith.constant 5.000000e-01 : f32
    %163 = vector.broadcast %cst_64 : f32 to vector<8x128xf32>
    %164 = arith.addf %162, %163 : vector<8x128xf32>
    %165 = vector.extract_strided_slice %164 {offsets = [0, 0], sizes = [8, 32], strides = [1, 1]} : vector<8x128xf32> to vector<8x32xf32>
    %166 = vector.extract_strided_slice %164 {offsets = [0, 32], sizes = [8, 32], strides = [1, 1]} : vector<8x128xf32> to vector<8x32xf32>
    %167 = vector.extract_strided_slice %160 {offsets = [0, 64], sizes = [8, 32], strides = [1, 1]} : vector<8x128xf32> to vector<8x32xf32>
    %168 = vector.extract_strided_slice %164 {offsets = [0, 96], sizes = [8, 32], strides = [1, 1]} : vector<8x128xf32> to vector<8x32xf32>
    %169 = arith.mulf %166, %144 : vector<8x32xf32>
    %170 = arith.mulf %165, %167 : vector<8x32xf32>
    %171 = arith.addf %169, %170 : vector<8x32xf32>
    %172 = math.tanh %171 : vector<8x32xf32>
    %173 = arith.mulf %168, %172 : vector<8x32xf32>
    %174 = arith.truncf %173 : vector<8x32xf32> to vector<8x32xbf16>
    %175 = arith.index_cast %c5_i32 : i32 to index
    %c0_65 = arith.constant 0 : index
    %c0_66 = arith.constant 0 : index
    %176 = vector.load %arg14[%175, %c0_65, %c0_66] : memref<8x8x32xbf16, #tpu.memory_space<vmem>>, vector<1x8x32xbf16>
    %177 = vector.shape_cast %176 : vector<1x8x32xbf16> to vector<8x32xbf16>
    %178 = vector.shape_cast %174 : vector<8x32xbf16> to vector<1x8x32xbf16>
    tpu.vector_store %arg14[%175, %c0_65, %c0_66], %178 {strides = array<i32>} : memref<8x8x32xbf16, #tpu.memory_space<vmem>>, vector<1x8x32xbf16>,
    %c6_i32 = arith.constant 6 : i32
    %179 = arith.index_cast %c6_i32 : i32 to index
    %c0_67 = arith.constant 0 : index
    %c0_68 = arith.constant 0 : index
    %180 = vector.load %arg15[%179, %c0_67, %c0_68] : memref<8x8x128xf32, #tpu.memory_space<vmem>>, vector<1x8x128xf32>
    %181 = vector.shape_cast %180 : vector<1x8x128xf32> to vector<8x128xf32>
    %182 = arith.truncf %173 : vector<8x32xf32> to vector<8x32xbf16>
    %cst_69 = arith.constant dense<0.000000e+00> : vector<8x128xf32>
    %183 = tpu.matmul %182, %12, %cst_69 {dimension_numbers = #tpu.dot_dimension_numbers<[1], [0], [0], [1], [0, 0, 1, 1], [], []>} : vector<8x32xbf16>, vector<32x128xbf16>, vector<8x128xf32> -> vector<8x128xf32>
    %184 = arith.addf %181, %183 : vector<8x128xf32>
    %cst_70 = arith.constant 5.000000e-01 : f32
    %185 = vector.broadcast %cst_70 : f32 to vector<8x128xf32>
    %186 = arith.mulf %185, %184 : vector<8x128xf32>
    %187 = math.tanh %186 : vector<8x128xf32>
    %cst_71 = arith.constant 5.000000e-01 : f32
    %188 = vector.broadcast %cst_71 : f32 to vector<8x128xf32>
    %189 = arith.mulf %188, %187 : vector<8x128xf32>
    %cst_72 = arith.constant 5.000000e-01 : f32
    %190 = vector.broadcast %cst_72 : f32 to vector<8x128xf32>
    %191 = arith.addf %189, %190 : vector<8x128xf32>
    %192 = vector.extract_strided_slice %191 {offsets = [0, 0], sizes = [8, 32], strides = [1, 1]} : vector<8x128xf32> to vector<8x32xf32>
    %193 = vector.extract_strided_slice %191 {offsets = [0, 32], sizes = [8, 32], strides = [1, 1]} : vector<8x128xf32> to vector<8x32xf32>
    %194 = vector.extract_strided_slice %187 {offsets = [0, 64], sizes = [8, 32], strides = [1, 1]} : vector<8x128xf32> to vector<8x32xf32>
    %195 = vector.extract_strided_slice %191 {offsets = [0, 96], sizes = [8, 32], strides = [1, 1]} : vector<8x128xf32> to vector<8x32xf32>
    %196 = arith.mulf %193, %171 : vector<8x32xf32>
    %197 = arith.mulf %192, %194 : vector<8x32xf32>
    %198 = arith.addf %196, %197 : vector<8x32xf32>
    %199 = math.tanh %198 : vector<8x32xf32>
    %200 = arith.mulf %195, %199 : vector<8x32xf32>
    %201 = arith.truncf %200 : vector<8x32xf32> to vector<8x32xbf16>
    %202 = arith.index_cast %c6_i32 : i32 to index
    %c0_73 = arith.constant 0 : index
    %c0_74 = arith.constant 0 : index
    %203 = vector.load %arg14[%202, %c0_73, %c0_74] : memref<8x8x32xbf16, #tpu.memory_space<vmem>>, vector<1x8x32xbf16>
    %204 = vector.shape_cast %203 : vector<1x8x32xbf16> to vector<8x32xbf16>
    %205 = vector.shape_cast %201 : vector<8x32xbf16> to vector<1x8x32xbf16>
    tpu.vector_store %arg14[%202, %c0_73, %c0_74], %205 {strides = array<i32>} : memref<8x8x32xbf16, #tpu.memory_space<vmem>>, vector<1x8x32xbf16>,
    %c7_i32 = arith.constant 7 : i32
    %206 = arith.index_cast %c7_i32 : i32 to index
    %c0_75 = arith.constant 0 : index
    %c0_76 = arith.constant 0 : index
    %207 = vector.load %arg15[%206, %c0_75, %c0_76] : memref<8x8x128xf32, #tpu.memory_space<vmem>>, vector<1x8x128xf32>
    %208 = vector.shape_cast %207 : vector<1x8x128xf32> to vector<8x128xf32>
    %209 = arith.truncf %200 : vector<8x32xf32> to vector<8x32xbf16>
    %cst_77 = arith.constant dense<0.000000e+00> : vector<8x128xf32>
    %210 = tpu.matmul %209, %12, %cst_77 {dimension_numbers = #tpu.dot_dimension_numbers<[1], [0], [0], [1], [0, 0, 1, 1], [], []>} : vector<8x32xbf16>, vector<32x128xbf16>, vector<8x128xf32> -> vector<8x128xf32>
    %211 = arith.addf %208, %210 : vector<8x128xf32>
    %cst_78 = arith.constant 5.000000e-01 : f32
    %212 = vector.broadcast %cst_78 : f32 to vector<8x128xf32>
    %213 = arith.mulf %212, %211 : vector<8x128xf32>
    %214 = math.tanh %213 : vector<8x128xf32>
    %cst_79 = arith.constant 5.000000e-01 : f32
    %215 = vector.broadcast %cst_79 : f32 to vector<8x128xf32>
    %216 = arith.mulf %215, %214 : vector<8x128xf32>
    %cst_80 = arith.constant 5.000000e-01 : f32
    %217 = vector.broadcast %cst_80 : f32 to vector<8x128xf32>
    %218 = arith.addf %216, %217 : vector<8x128xf32>
    %219 = vector.extract_strided_slice %218 {offsets = [0, 0], sizes = [8, 32], strides = [1, 1]} : vector<8x128xf32> to vector<8x32xf32>
    %220 = vector.extract_strided_slice %218 {offsets = [0, 32], sizes = [8, 32], strides = [1, 1]} : vector<8x128xf32> to vector<8x32xf32>
    %221 = vector.extract_strided_slice %214 {offsets = [0, 64], sizes = [8, 32], strides = [1, 1]} : vector<8x128xf32> to vector<8x32xf32>
    %222 = vector.extract_strided_slice %218 {offsets = [0, 96], sizes = [8, 32], strides = [1, 1]} : vector<8x128xf32> to vector<8x32xf32>
    %223 = arith.mulf %220, %198 : vector<8x32xf32>
    %224 = arith.mulf %219, %221 : vector<8x32xf32>
    %225 = arith.addf %223, %224 : vector<8x32xf32>
    %226 = math.tanh %225 : vector<8x32xf32>
    %227 = arith.mulf %222, %226 : vector<8x32xf32>
    %228 = arith.truncf %227 : vector<8x32xf32> to vector<8x32xbf16>
    %229 = arith.index_cast %c7_i32 : i32 to index
    %c0_81 = arith.constant 0 : index
    %c0_82 = arith.constant 0 : index
    %230 = vector.load %arg14[%229, %c0_81, %c0_82] : memref<8x8x32xbf16, #tpu.memory_space<vmem>>, vector<1x8x32xbf16>
    %231 = vector.shape_cast %230 : vector<1x8x32xbf16> to vector<8x32xbf16>
    %232 = vector.shape_cast %228 : vector<8x32xbf16> to vector<1x8x32xbf16>
    tpu.vector_store %arg14[%229, %c0_81, %c0_82], %232 {strides = array<i32>} : memref<8x8x32xbf16, #tpu.memory_space<vmem>>, vector<1x8x32xbf16>,
    %c8_i32 = arith.constant 8 : i32
    %c0_83 = arith.constant 0 : index
    %c0_84 = arith.constant 0 : index
    %c0_85 = arith.constant 0 : index
    %233 = vector.load %arg12[%c0_83, %c0_84, %c0_85] : memref<2x8x32xf32, #tpu.memory_space<vmem>>, vector<1x8x32xf32>
    %234 = vector.shape_cast %233 : vector<1x8x32xf32> to vector<8x32xf32>
    %235 = vector.shape_cast %227 : vector<8x32xf32> to vector<1x8x32xf32>
    tpu.vector_store %arg12[%c0_83, %c0_84, %c0_85], %235 {strides = array<i32>} : memref<2x8x32xf32, #tpu.memory_space<vmem>>, vector<1x8x32xf32>,
    %c0_86 = arith.constant 0 : index
    %c0_87 = arith.constant 0 : index
    %c0_88 = arith.constant 0 : index
    %236 = vector.load %arg13[%c0_86, %c0_87, %c0_88] : memref<2x8x32xf32, #tpu.memory_space<vmem>>, vector<1x8x32xf32>
    %237 = vector.shape_cast %236 : vector<1x8x32xf32> to vector<8x32xf32>
    %238 = vector.shape_cast %225 : vector<8x32xf32> to vector<1x8x32xf32>
    tpu.vector_store %arg13[%c0_86, %c0_87, %c0_88], %238 {strides = array<i32>} : memref<2x8x32xf32, #tpu.memory_space<vmem>>, vector<1x8x32xf32>,
    %c0_89 = arith.constant 0 : index
    %c0_90 = arith.constant 0 : index
    %c0_91 = arith.constant 0 : index
    %239 = vector.load %arg14[%c0_89, %c0_90, %c0_91] : memref<8x8x32xbf16, #tpu.memory_space<vmem>>, vector<8x8x32xbf16>
    %240 = vector.shape_cast %239 : vector<8x8x32xbf16> to vector<64x32xbf16>
    %c0_92 = arith.constant 0 : index
    %c0_93 = arith.constant 0 : index
    %241 = vector.load %arg6[%c0_92, %c0_93] : memref<32x128xbf16, #tpu.memory_space<vmem>>, vector<32x128xbf16>
    %cst_94 = arith.constant dense<0.000000e+00> : vector<64x128xf32>
    %242 = tpu.matmul %240, %241, %cst_94 {dimension_numbers = #tpu.dot_dimension_numbers<[1], [0], [0], [1], [0, 0, 1, 1], [], []>} : vector<64x32xbf16>, vector<32x128xbf16>, vector<64x128xf32> -> vector<64x128xf32>
    %c0_95 = arith.constant 0 : index
    %c0_96 = arith.constant 0 : index
    %243 = vector.load %arg8[%c0_95, %c0_96] : memref<1x128xf32, #tpu.memory_space<vmem>>, vector<1x128xf32>
    %244 = vector.broadcast %243 : vector<1x128xf32> to vector<64x128xf32>
    %245 = arith.addf %242, %244 : vector<64x128xf32>
    %246 = vector.shape_cast %245 : vector<64x128xf32> to vector<8x8x128xf32>
    %c0_97 = arith.constant 0 : index
    %c0_98 = arith.constant 0 : index
    %c0_99 = arith.constant 0 : index
    %247 = vector.load %arg15[%c0_97, %c0_98, %c0_99] : memref<8x8x128xf32, #tpu.memory_space<vmem>>, vector<8x8x128xf32>
    tpu.vector_store %arg15[%c0_97, %c0_98, %c0_99], %246 {strides = array<i32>} : memref<8x8x128xf32, #tpu.memory_space<vmem>>, vector<8x8x128xf32>,
    %c0_100 = arith.constant 0 : index
    %c0_101 = arith.constant 0 : index
    %248 = vector.load %arg7[%c0_100, %c0_101] : memref<32x128xbf16, #tpu.memory_space<vmem>>, vector<32x128xbf16>
    %c1 = arith.constant 1 : index
    %c0_102 = arith.constant 0 : index
    %c0_103 = arith.constant 0 : index
    %249 = vector.load %arg12[%c1, %c0_102, %c0_103] : memref<2x8x32xf32, #tpu.memory_space<vmem>>, vector<1x8x32xf32>
    %250 = vector.shape_cast %249 : vector<1x8x32xf32> to vector<8x32xf32>
    %c1_104 = arith.constant 1 : index
    %c0_105 = arith.constant 0 : index
    %c0_106 = arith.constant 0 : index
    %251 = vector.load %arg13[%c1_104, %c0_105, %c0_106] : memref<2x8x32xf32, #tpu.memory_space<vmem>>, vector<1x8x32xf32>
    %252 = vector.shape_cast %251 : vector<1x8x32xf32> to vector<8x32xf32>
    %c0_i32_107 = arith.constant 0 : i32
    %253 = arith.index_cast %c0_i32_107 : i32 to index
    %c0_108 = arith.constant 0 : index
    %c0_109 = arith.constant 0 : index
    %254 = vector.load %arg15[%253, %c0_108, %c0_109] : memref<8x8x128xf32, #tpu.memory_space<vmem>>, vector<1x8x128xf32>
    %255 = vector.shape_cast %254 : vector<1x8x128xf32> to vector<8x128xf32>
    %256 = arith.truncf %250 : vector<8x32xf32> to vector<8x32xbf16>
    %cst_110 = arith.constant dense<0.000000e+00> : vector<8x128xf32>
    %257 = tpu.matmul %256, %248, %cst_110 {dimension_numbers = #tpu.dot_dimension_numbers<[1], [0], [0], [1], [0, 0, 1, 1], [], []>} : vector<8x32xbf16>, vector<32x128xbf16>, vector<8x128xf32> -> vector<8x128xf32>
    %258 = arith.addf %255, %257 : vector<8x128xf32>
    %cst_111 = arith.constant 5.000000e-01 : f32
    %259 = vector.broadcast %cst_111 : f32 to vector<8x128xf32>
    %260 = arith.mulf %259, %258 : vector<8x128xf32>
    %261 = math.tanh %260 : vector<8x128xf32>
    %cst_112 = arith.constant 5.000000e-01 : f32
    %262 = vector.broadcast %cst_112 : f32 to vector<8x128xf32>
    %263 = arith.mulf %262, %261 : vector<8x128xf32>
    %cst_113 = arith.constant 5.000000e-01 : f32
    %264 = vector.broadcast %cst_113 : f32 to vector<8x128xf32>
    %265 = arith.addf %263, %264 : vector<8x128xf32>
    %266 = vector.extract_strided_slice %265 {offsets = [0, 0], sizes = [8, 32], strides = [1, 1]} : vector<8x128xf32> to vector<8x32xf32>
    %267 = vector.extract_strided_slice %265 {offsets = [0, 32], sizes = [8, 32], strides = [1, 1]} : vector<8x128xf32> to vector<8x32xf32>
    %268 = vector.extract_strided_slice %261 {offsets = [0, 64], sizes = [8, 32], strides = [1, 1]} : vector<8x128xf32> to vector<8x32xf32>
    %269 = vector.extract_strided_slice %265 {offsets = [0, 96], sizes = [8, 32], strides = [1, 1]} : vector<8x128xf32> to vector<8x32xf32>
    %270 = arith.mulf %267, %252 : vector<8x32xf32>
    %271 = arith.mulf %266, %268 : vector<8x32xf32>
    %272 = arith.addf %270, %271 : vector<8x32xf32>
    %273 = math.tanh %272 : vector<8x32xf32>
    %274 = arith.mulf %269, %273 : vector<8x32xf32>
    %c1_i32_114 = arith.constant 1 : i32
    %275 = arith.index_cast %c1_i32_114 : i32 to index
    %c0_115 = arith.constant 0 : index
    %c0_116 = arith.constant 0 : index
    %276 = vector.load %arg15[%275, %c0_115, %c0_116] : memref<8x8x128xf32, #tpu.memory_space<vmem>>, vector<1x8x128xf32>
    %277 = vector.shape_cast %276 : vector<1x8x128xf32> to vector<8x128xf32>
    %278 = arith.truncf %274 : vector<8x32xf32> to vector<8x32xbf16>
    %cst_117 = arith.constant dense<0.000000e+00> : vector<8x128xf32>
    %279 = tpu.matmul %278, %248, %cst_117 {dimension_numbers = #tpu.dot_dimension_numbers<[1], [0], [0], [1], [0, 0, 1, 1], [], []>} : vector<8x32xbf16>, vector<32x128xbf16>, vector<8x128xf32> -> vector<8x128xf32>
    %280 = arith.addf %277, %279 : vector<8x128xf32>
    %cst_118 = arith.constant 5.000000e-01 : f32
    %281 = vector.broadcast %cst_118 : f32 to vector<8x128xf32>
    %282 = arith.mulf %281, %280 : vector<8x128xf32>
    %283 = math.tanh %282 : vector<8x128xf32>
    %cst_119 = arith.constant 5.000000e-01 : f32
    %284 = vector.broadcast %cst_119 : f32 to vector<8x128xf32>
    %285 = arith.mulf %284, %283 : vector<8x128xf32>
    %cst_120 = arith.constant 5.000000e-01 : f32
    %286 = vector.broadcast %cst_120 : f32 to vector<8x128xf32>
    %287 = arith.addf %285, %286 : vector<8x128xf32>
    %288 = vector.extract_strided_slice %287 {offsets = [0, 0], sizes = [8, 32], strides = [1, 1]} : vector<8x128xf32> to vector<8x32xf32>
    %289 = vector.extract_strided_slice %287 {offsets = [0, 32], sizes = [8, 32], strides = [1, 1]} : vector<8x128xf32> to vector<8x32xf32>
    %290 = vector.extract_strided_slice %283 {offsets = [0, 64], sizes = [8, 32], strides = [1, 1]} : vector<8x128xf32> to vector<8x32xf32>
    %291 = vector.extract_strided_slice %287 {offsets = [0, 96], sizes = [8, 32], strides = [1, 1]} : vector<8x128xf32> to vector<8x32xf32>
    %292 = arith.mulf %289, %272 : vector<8x32xf32>
    %293 = arith.mulf %288, %290 : vector<8x32xf32>
    %294 = arith.addf %292, %293 : vector<8x32xf32>
    %295 = math.tanh %294 : vector<8x32xf32>
    %296 = arith.mulf %291, %295 : vector<8x32xf32>
    %c2_i32_121 = arith.constant 2 : i32
    %297 = arith.index_cast %c2_i32_121 : i32 to index
    %c0_122 = arith.constant 0 : index
    %c0_123 = arith.constant 0 : index
    %298 = vector.load %arg15[%297, %c0_122, %c0_123] : memref<8x8x128xf32, #tpu.memory_space<vmem>>, vector<1x8x128xf32>
    %299 = vector.shape_cast %298 : vector<1x8x128xf32> to vector<8x128xf32>
    %300 = arith.truncf %296 : vector<8x32xf32> to vector<8x32xbf16>
    %cst_124 = arith.constant dense<0.000000e+00> : vector<8x128xf32>
    %301 = tpu.matmul %300, %248, %cst_124 {dimension_numbers = #tpu.dot_dimension_numbers<[1], [0], [0], [1], [0, 0, 1, 1], [], []>} : vector<8x32xbf16>, vector<32x128xbf16>, vector<8x128xf32> -> vector<8x128xf32>
    %302 = arith.addf %299, %301 : vector<8x128xf32>
    %cst_125 = arith.constant 5.000000e-01 : f32
    %303 = vector.broadcast %cst_125 : f32 to vector<8x128xf32>
    %304 = arith.mulf %303, %302 : vector<8x128xf32>
    %305 = math.tanh %304 : vector<8x128xf32>
    %cst_126 = arith.constant 5.000000e-01 : f32
    %306 = vector.broadcast %cst_126 : f32 to vector<8x128xf32>
    %307 = arith.mulf %306, %305 : vector<8x128xf32>
    %cst_127 = arith.constant 5.000000e-01 : f32
    %308 = vector.broadcast %cst_127 : f32 to vector<8x128xf32>
    %309 = arith.addf %307, %308 : vector<8x128xf32>
    %310 = vector.extract_strided_slice %309 {offsets = [0, 0], sizes = [8, 32], strides = [1, 1]} : vector<8x128xf32> to vector<8x32xf32>
    %311 = vector.extract_strided_slice %309 {offsets = [0, 32], sizes = [8, 32], strides = [1, 1]} : vector<8x128xf32> to vector<8x32xf32>
    %312 = vector.extract_strided_slice %305 {offsets = [0, 64], sizes = [8, 32], strides = [1, 1]} : vector<8x128xf32> to vector<8x32xf32>
    %313 = vector.extract_strided_slice %309 {offsets = [0, 96], sizes = [8, 32], strides = [1, 1]} : vector<8x128xf32> to vector<8x32xf32>
    %314 = arith.mulf %311, %294 : vector<8x32xf32>
    %315 = arith.mulf %310, %312 : vector<8x32xf32>
    %316 = arith.addf %314, %315 : vector<8x32xf32>
    %317 = math.tanh %316 : vector<8x32xf32>
    %318 = arith.mulf %313, %317 : vector<8x32xf32>
    %c3_i32_128 = arith.constant 3 : i32
    %319 = arith.index_cast %c3_i32_128 : i32 to index
    %c0_129 = arith.constant 0 : index
    %c0_130 = arith.constant 0 : index
    %320 = vector.load %arg15[%319, %c0_129, %c0_130] : memref<8x8x128xf32, #tpu.memory_space<vmem>>, vector<1x8x128xf32>
    %321 = vector.shape_cast %320 : vector<1x8x128xf32> to vector<8x128xf32>
    %322 = arith.truncf %318 : vector<8x32xf32> to vector<8x32xbf16>
    %cst_131 = arith.constant dense<0.000000e+00> : vector<8x128xf32>
    %323 = tpu.matmul %322, %248, %cst_131 {dimension_numbers = #tpu.dot_dimension_numbers<[1], [0], [0], [1], [0, 0, 1, 1], [], []>} : vector<8x32xbf16>, vector<32x128xbf16>, vector<8x128xf32> -> vector<8x128xf32>
    %324 = arith.addf %321, %323 : vector<8x128xf32>
    %cst_132 = arith.constant 5.000000e-01 : f32
    %325 = vector.broadcast %cst_132 : f32 to vector<8x128xf32>
    %326 = arith.mulf %325, %324 : vector<8x128xf32>
    %327 = math.tanh %326 : vector<8x128xf32>
    %cst_133 = arith.constant 5.000000e-01 : f32
    %328 = vector.broadcast %cst_133 : f32 to vector<8x128xf32>
    %329 = arith.mulf %328, %327 : vector<8x128xf32>
    %cst_134 = arith.constant 5.000000e-01 : f32
    %330 = vector.broadcast %cst_134 : f32 to vector<8x128xf32>
    %331 = arith.addf %329, %330 : vector<8x128xf32>
    %332 = vector.extract_strided_slice %331 {offsets = [0, 0], sizes = [8, 32], strides = [1, 1]} : vector<8x128xf32> to vector<8x32xf32>
    %333 = vector.extract_strided_slice %331 {offsets = [0, 32], sizes = [8, 32], strides = [1, 1]} : vector<8x128xf32> to vector<8x32xf32>
    %334 = vector.extract_strided_slice %327 {offsets = [0, 64], sizes = [8, 32], strides = [1, 1]} : vector<8x128xf32> to vector<8x32xf32>
    %335 = vector.extract_strided_slice %331 {offsets = [0, 96], sizes = [8, 32], strides = [1, 1]} : vector<8x128xf32> to vector<8x32xf32>
    %336 = arith.mulf %333, %316 : vector<8x32xf32>
    %337 = arith.mulf %332, %334 : vector<8x32xf32>
    %338 = arith.addf %336, %337 : vector<8x32xf32>
    %339 = math.tanh %338 : vector<8x32xf32>
    %340 = arith.mulf %335, %339 : vector<8x32xf32>
    %c4_i32_135 = arith.constant 4 : i32
    %341 = arith.index_cast %c4_i32_135 : i32 to index
    %c0_136 = arith.constant 0 : index
    %c0_137 = arith.constant 0 : index
    %342 = vector.load %arg15[%341, %c0_136, %c0_137] : memref<8x8x128xf32, #tpu.memory_space<vmem>>, vector<1x8x128xf32>
    %343 = vector.shape_cast %342 : vector<1x8x128xf32> to vector<8x128xf32>
    %344 = arith.truncf %340 : vector<8x32xf32> to vector<8x32xbf16>
    %cst_138 = arith.constant dense<0.000000e+00> : vector<8x128xf32>
    %345 = tpu.matmul %344, %248, %cst_138 {dimension_numbers = #tpu.dot_dimension_numbers<[1], [0], [0], [1], [0, 0, 1, 1], [], []>} : vector<8x32xbf16>, vector<32x128xbf16>, vector<8x128xf32> -> vector<8x128xf32>
    %346 = arith.addf %343, %345 : vector<8x128xf32>
    %cst_139 = arith.constant 5.000000e-01 : f32
    %347 = vector.broadcast %cst_139 : f32 to vector<8x128xf32>
    %348 = arith.mulf %347, %346 : vector<8x128xf32>
    %349 = math.tanh %348 : vector<8x128xf32>
    %cst_140 = arith.constant 5.000000e-01 : f32
    %350 = vector.broadcast %cst_140 : f32 to vector<8x128xf32>
    %351 = arith.mulf %350, %349 : vector<8x128xf32>
    %cst_141 = arith.constant 5.000000e-01 : f32
    %352 = vector.broadcast %cst_141 : f32 to vector<8x128xf32>
    %353 = arith.addf %351, %352 : vector<8x128xf32>
    %354 = vector.extract_strided_slice %353 {offsets = [0, 0], sizes = [8, 32], strides = [1, 1]} : vector<8x128xf32> to vector<8x32xf32>
    %355 = vector.extract_strided_slice %353 {offsets = [0, 32], sizes = [8, 32], strides = [1, 1]} : vector<8x128xf32> to vector<8x32xf32>
    %356 = vector.extract_strided_slice %349 {offsets = [0, 64], sizes = [8, 32], strides = [1, 1]} : vector<8x128xf32> to vector<8x32xf32>
    %357 = vector.extract_strided_slice %353 {offsets = [0, 96], sizes = [8, 32], strides = [1, 1]} : vector<8x128xf32> to vector<8x32xf32>
    %358 = arith.mulf %355, %338 : vector<8x32xf32>
    %359 = arith.mulf %354, %356 : vector<8x32xf32>
    %360 = arith.addf %358, %359 : vector<8x32xf32>
    %361 = math.tanh %360 : vector<8x32xf32>
    %362 = arith.mulf %357, %361 : vector<8x32xf32>
    %c5_i32_142 = arith.constant 5 : i32
    %363 = arith.index_cast %c5_i32_142 : i32 to index
    %c0_143 = arith.constant 0 : index
    %c0_144 = arith.constant 0 : index
    %364 = vector.load %arg15[%363, %c0_143, %c0_144] : memref<8x8x128xf32, #tpu.memory_space<vmem>>, vector<1x8x128xf32>
    %365 = vector.shape_cast %364 : vector<1x8x128xf32> to vector<8x128xf32>
    %366 = arith.truncf %362 : vector<8x32xf32> to vector<8x32xbf16>
    %cst_145 = arith.constant dense<0.000000e+00> : vector<8x128xf32>
    %367 = tpu.matmul %366, %248, %cst_145 {dimension_numbers = #tpu.dot_dimension_numbers<[1], [0], [0], [1], [0, 0, 1, 1], [], []>} : vector<8x32xbf16>, vector<32x128xbf16>, vector<8x128xf32> -> vector<8x128xf32>
    %368 = arith.addf %365, %367 : vector<8x128xf32>
    %cst_146 = arith.constant 5.000000e-01 : f32
    %369 = vector.broadcast %cst_146 : f32 to vector<8x128xf32>
    %370 = arith.mulf %369, %368 : vector<8x128xf32>
    %371 = math.tanh %370 : vector<8x128xf32>
    %cst_147 = arith.constant 5.000000e-01 : f32
    %372 = vector.broadcast %cst_147 : f32 to vector<8x128xf32>
    %373 = arith.mulf %372, %371 : vector<8x128xf32>
    %cst_148 = arith.constant 5.000000e-01 : f32
    %374 = vector.broadcast %cst_148 : f32 to vector<8x128xf32>
    %375 = arith.addf %373, %374 : vector<8x128xf32>
    %376 = vector.extract_strided_slice %375 {offsets = [0, 0], sizes = [8, 32], strides = [1, 1]} : vector<8x128xf32> to vector<8x32xf32>
    %377 = vector.extract_strided_slice %375 {offsets = [0, 32], sizes = [8, 32], strides = [1, 1]} : vector<8x128xf32> to vector<8x32xf32>
    %378 = vector.extract_strided_slice %371 {offsets = [0, 64], sizes = [8, 32], strides = [1, 1]} : vector<8x128xf32> to vector<8x32xf32>
    %379 = vector.extract_strided_slice %375 {offsets = [0, 96], sizes = [8, 32], strides = [1, 1]} : vector<8x128xf32> to vector<8x32xf32>
    %380 = arith.mulf %377, %360 : vector<8x32xf32>
    %381 = arith.mulf %376, %378 : vector<8x32xf32>
    %382 = arith.addf %380, %381 : vector<8x32xf32>
    %383 = math.tanh %382 : vector<8x32xf32>
    %384 = arith.mulf %379, %383 : vector<8x32xf32>
    %c6_i32_149 = arith.constant 6 : i32
    %385 = arith.index_cast %c6_i32_149 : i32 to index
    %c0_150 = arith.constant 0 : index
    %c0_151 = arith.constant 0 : index
    %386 = vector.load %arg15[%385, %c0_150, %c0_151] : memref<8x8x128xf32, #tpu.memory_space<vmem>>, vector<1x8x128xf32>
    %387 = vector.shape_cast %386 : vector<1x8x128xf32> to vector<8x128xf32>
    %388 = arith.truncf %384 : vector<8x32xf32> to vector<8x32xbf16>
    %cst_152 = arith.constant dense<0.000000e+00> : vector<8x128xf32>
    %389 = tpu.matmul %388, %248, %cst_152 {dimension_numbers = #tpu.dot_dimension_numbers<[1], [0], [0], [1], [0, 0, 1, 1], [], []>} : vector<8x32xbf16>, vector<32x128xbf16>, vector<8x128xf32> -> vector<8x128xf32>
    %390 = arith.addf %387, %389 : vector<8x128xf32>
    %cst_153 = arith.constant 5.000000e-01 : f32
    %391 = vector.broadcast %cst_153 : f32 to vector<8x128xf32>
    %392 = arith.mulf %391, %390 : vector<8x128xf32>
    %393 = math.tanh %392 : vector<8x128xf32>
    %cst_154 = arith.constant 5.000000e-01 : f32
    %394 = vector.broadcast %cst_154 : f32 to vector<8x128xf32>
    %395 = arith.mulf %394, %393 : vector<8x128xf32>
    %cst_155 = arith.constant 5.000000e-01 : f32
    %396 = vector.broadcast %cst_155 : f32 to vector<8x128xf32>
    %397 = arith.addf %395, %396 : vector<8x128xf32>
    %398 = vector.extract_strided_slice %397 {offsets = [0, 0], sizes = [8, 32], strides = [1, 1]} : vector<8x128xf32> to vector<8x32xf32>
    %399 = vector.extract_strided_slice %397 {offsets = [0, 32], sizes = [8, 32], strides = [1, 1]} : vector<8x128xf32> to vector<8x32xf32>
    %400 = vector.extract_strided_slice %393 {offsets = [0, 64], sizes = [8, 32], strides = [1, 1]} : vector<8x128xf32> to vector<8x32xf32>
    %401 = vector.extract_strided_slice %397 {offsets = [0, 96], sizes = [8, 32], strides = [1, 1]} : vector<8x128xf32> to vector<8x32xf32>
    %402 = arith.mulf %399, %382 : vector<8x32xf32>
    %403 = arith.mulf %398, %400 : vector<8x32xf32>
    %404 = arith.addf %402, %403 : vector<8x32xf32>
    %405 = math.tanh %404 : vector<8x32xf32>
    %406 = arith.mulf %401, %405 : vector<8x32xf32>
    %c7_i32_156 = arith.constant 7 : i32
    %407 = arith.index_cast %c7_i32_156 : i32 to index
    %c0_157 = arith.constant 0 : index
    %c0_158 = arith.constant 0 : index
    %408 = vector.load %arg15[%407, %c0_157, %c0_158] : memref<8x8x128xf32, #tpu.memory_space<vmem>>, vector<1x8x128xf32>
    %409 = vector.shape_cast %408 : vector<1x8x128xf32> to vector<8x128xf32>
    %410 = arith.truncf %406 : vector<8x32xf32> to vector<8x32xbf16>
    %cst_159 = arith.constant dense<0.000000e+00> : vector<8x128xf32>
    %411 = tpu.matmul %410, %248, %cst_159 {dimension_numbers = #tpu.dot_dimension_numbers<[1], [0], [0], [1], [0, 0, 1, 1], [], []>} : vector<8x32xbf16>, vector<32x128xbf16>, vector<8x128xf32> -> vector<8x128xf32>
    %412 = arith.addf %409, %411 : vector<8x128xf32>
    %cst_160 = arith.constant 5.000000e-01 : f32
    %413 = vector.broadcast %cst_160 : f32 to vector<8x128xf32>
    %414 = arith.mulf %413, %412 : vector<8x128xf32>
    %415 = math.tanh %414 : vector<8x128xf32>
    %cst_161 = arith.constant 5.000000e-01 : f32
    %416 = vector.broadcast %cst_161 : f32 to vector<8x128xf32>
    %417 = arith.mulf %416, %415 : vector<8x128xf32>
    %cst_162 = arith.constant 5.000000e-01 : f32
    %418 = vector.broadcast %cst_162 : f32 to vector<8x128xf32>
    %419 = arith.addf %417, %418 : vector<8x128xf32>
    %420 = vector.extract_strided_slice %419 {offsets = [0, 0], sizes = [8, 32], strides = [1, 1]} : vector<8x128xf32> to vector<8x32xf32>
    %421 = vector.extract_strided_slice %419 {offsets = [0, 32], sizes = [8, 32], strides = [1, 1]} : vector<8x128xf32> to vector<8x32xf32>
    %422 = vector.extract_strided_slice %415 {offsets = [0, 64], sizes = [8, 32], strides = [1, 1]} : vector<8x128xf32> to vector<8x32xf32>
    %423 = vector.extract_strided_slice %419 {offsets = [0, 96], sizes = [8, 32], strides = [1, 1]} : vector<8x128xf32> to vector<8x32xf32>
    %424 = arith.mulf %421, %404 : vector<8x32xf32>
    %425 = arith.mulf %420, %422 : vector<8x32xf32>
    %426 = arith.addf %424, %425 : vector<8x32xf32>
    %427 = math.tanh %426 : vector<8x32xf32>
    %428 = arith.mulf %423, %427 : vector<8x32xf32>
    %c8_i32_163 = arith.constant 8 : i32
    %c1_164 = arith.constant 1 : index
    %c0_165 = arith.constant 0 : index
    %c0_166 = arith.constant 0 : index
    %429 = vector.load %arg12[%c1_164, %c0_165, %c0_166] : memref<2x8x32xf32, #tpu.memory_space<vmem>>, vector<1x8x32xf32>
    %430 = vector.shape_cast %429 : vector<1x8x32xf32> to vector<8x32xf32>
    %431 = vector.shape_cast %428 : vector<8x32xf32> to vector<1x8x32xf32>
    tpu.vector_store %arg12[%c1_164, %c0_165, %c0_166], %431 {strides = array<i32>} : memref<2x8x32xf32, #tpu.memory_space<vmem>>, vector<1x8x32xf32>,
    %c1_167 = arith.constant 1 : index
    %c0_168 = arith.constant 0 : index
    %c0_169 = arith.constant 0 : index
    %432 = vector.load %arg13[%c1_167, %c0_168, %c0_169] : memref<2x8x32xf32, #tpu.memory_space<vmem>>, vector<1x8x32xf32>
    %433 = vector.shape_cast %432 : vector<1x8x32xf32> to vector<8x32xf32>
    %434 = vector.shape_cast %426 : vector<8x32xf32> to vector<1x8x32xf32>
    tpu.vector_store %arg13[%c1_167, %c0_168, %c0_169], %434 {strides = array<i32>} : memref<2x8x32xf32, #tpu.memory_space<vmem>>, vector<1x8x32xf32>,
    %c1_i32_170 = arith.constant 1 : i32
    %435 = arith.cmpi eq, %arg1, %c1_i32_170 : i32
    %436 = arith.extui %435 : i1 to i32
    %c0_i32_171 = arith.constant 0 : i32
    %437 = arith.cmpi ne, %436, %c0_i32_171 : i32
    scf.if %437 {
      %c1_172 = arith.constant 1 : index
      %c0_173 = arith.constant 0 : index
      %c0_174 = arith.constant 0 : index
      %438 = vector.load %arg12[%c1_172, %c0_173, %c0_174] : memref<2x8x32xf32, #tpu.memory_space<vmem>>, vector<1x8x32xf32>
      %439 = vector.shape_cast %438 : vector<1x8x32xf32> to vector<8x32xf32>
      %c0_175 = arith.constant 0 : index
      %c0_176 = arith.constant 0 : index
      %440 = vector.load %arg9[%c0_175, %c0_176] : memref<32x128xf32, #tpu.memory_space<vmem>>, vector<32x128xf32>
      %cst_177 = arith.constant dense<0.000000e+00> : vector<8x128xf32>
      %441 = tpu.matmul %439, %440, %cst_177 {dimension_numbers = #tpu.dot_dimension_numbers<[1], [0], [0], [1], [0, 0, 1, 1], [], []>} : vector<8x32xf32>, vector<32x128xf32>, vector<8x128xf32> -> vector<8x128xf32>
      %c0_178 = arith.constant 0 : index
      %c0_179 = arith.constant 0 : index
      %442 = vector.load %arg10[%c0_178, %c0_179] : memref<1x128xf32, #tpu.memory_space<vmem>>, vector<1x128xf32>
      %443 = vector.broadcast %442 : vector<1x128xf32> to vector<8x128xf32>
      %444 = arith.addf %441, %443 : vector<8x128xf32>
      %c0_180 = arith.constant 0 : index
      %c0_181 = arith.constant 0 : index
      %445 = vector.load %arg11[%c0_180, %c0_181] : memref<8x128xf32, #tpu.memory_space<vmem>>, vector<8x128xf32>
      tpu.vector_store %arg11[%c0_180, %c0_181], %444 {strides = array<i32>} : memref<8x128xf32, #tpu.memory_space<vmem>>, vector<8x128xf32>,
    } else {
    }
    return
  }
  func.func @transform_0(%arg0: i32, %arg1: i32) -> (i32, i32, i32) {
    %c0_i32 = arith.constant 0 : i32
    %c0_i32_0 = arith.constant 0 : i32
    return %arg1, %arg0, %c0_i32 : i32, i32, i32
  }
  func.func @transform_1(%arg0: i32, %arg1: i32) -> (i32, i32) {
    %c0_i32 = arith.constant 0 : i32
    %c0_i32_0 = arith.constant 0 : i32
    %c0_i32_1 = arith.constant 0 : i32
    return %c0_i32, %c0_i32_0 : i32, i32
  }
  func.func @transform_2(%arg0: i32, %arg1: i32) -> (i32, i32) {
    %c0_i32 = arith.constant 0 : i32
    %c0_i32_0 = arith.constant 0 : i32
    %c0_i32_1 = arith.constant 0 : i32
    return %c0_i32, %c0_i32_0 : i32, i32
  }
  func.func @transform_3(%arg0: i32, %arg1: i32) -> (i32, i32) {
    %c0_i32 = arith.constant 0 : i32
    %c0_i32_0 = arith.constant 0 : i32
    %c0_i32_1 = arith.constant 0 : i32
    return %c0_i32, %c0_i32_0 : i32, i32
  }
  func.func @transform_4(%arg0: i32, %arg1: i32) -> (i32, i32) {
    %c0_i32 = arith.constant 0 : i32
    %c0_i32_0 = arith.constant 0 : i32
    %c0_i32_1 = arith.constant 0 : i32
    return %c0_i32, %c0_i32_0 : i32, i32
  }
  func.func @transform_5(%arg0: i32, %arg1: i32) -> (i32, i32) {
    %c0_i32 = arith.constant 0 : i32
    %c0_i32_0 = arith.constant 0 : i32
    %c0_i32_1 = arith.constant 0 : i32
    return %c0_i32, %c0_i32_0 : i32, i32
  }
  func.func @transform_6(%arg0: i32, %arg1: i32) -> (i32, i32) {
    %c0_i32 = arith.constant 0 : i32
    %c0_i32_0 = arith.constant 0 : i32
    %c0_i32_1 = arith.constant 0 : i32
    return %c0_i32, %c0_i32_0 : i32, i32
  }
  func.func @transform_7(%arg0: i32, %arg1: i32) -> (i32, i32) {
    %c0_i32 = arith.constant 0 : i32
    %c0_i32_0 = arith.constant 0 : i32
    %c0_i32_1 = arith.constant 0 : i32
    return %c0_i32, %c0_i32_0 : i32, i32
  }
  func.func @transform_8(%arg0: i32, %arg1: i32) -> (i32, i32) {
    %c0_i32 = arith.constant 0 : i32
    %c0_i32_0 = arith.constant 0 : i32
    %c0_i32_1 = arith.constant 0 : i32
    return %c0_i32, %c0_i32_0 : i32, i32
  }
  func.func @transform_9(%arg0: i32, %arg1: i32) -> (i32, i32) {
    %c0_i32 = arith.constant 0 : i32
    %c0_i32_0 = arith.constant 0 : i32
    return %arg0, %c0_i32 : i32, i32
  }
}

module attributes {stable_mosaic.version = 11 : i64} {
  func.func @_lstm_kernel(%arg0: i32, %arg1: i32, %arg2: memref<8x8x16xbf16, #tpu.memory_space<vmem>>, %arg3: memref<16x128xbf16, #tpu.memory_space<vmem>>, %arg4: memref<32x128xbf16, #tpu.memory_space<vmem>>, %arg5: memref<1x128xf32, #tpu.memory_space<vmem>>, %arg6: memref<32x128xbf16, #tpu.memory_space<vmem>>, %arg7: memref<32x128xbf16, #tpu.memory_space<vmem>>, %arg8: memref<1x128xf32, #tpu.memory_space<vmem>>, %arg9: memref<32x128xf32, #tpu.memory_space<vmem>>, %arg10: memref<1x128xf32, #tpu.memory_space<vmem>>, %arg11: memref<8x128xf32, #tpu.memory_space<vmem>>, %arg12: memref<2x8x32xf32, #tpu.memory_space<vmem>>, %arg13: memref<2x8x32xf32, #tpu.memory_space<vmem>>, %arg14: memref<8x8x32xbf16, #tpu.memory_space<vmem>>, %arg15: memref<8x8x128xf32, #tpu.memory_space<vmem>>) attributes {dimension_semantics = [#tpu.dimension_semantics<parallel>, #tpu.dimension_semantics<arbitrary>], iteration_bounds = array<i64: 1, 2>, scalar_prefetch = 0 : i64, scratch_operands = 4 : i64, tpu.core_type = #tpu.core_type<tc>, window_params = [{transform_indices = @transform_0, window_bounds = array<i64: 8, 8, 16>}, {pipeline_mode = #tpu.pipeline_mode<synchronous>, transform_indices = @transform_1, window_bounds = array<i64: 16, 128>}, {pipeline_mode = #tpu.pipeline_mode<synchronous>, transform_indices = @transform_2, window_bounds = array<i64: 32, 128>}, {pipeline_mode = #tpu.pipeline_mode<synchronous>, transform_indices = @transform_3, window_bounds = array<i64: 1, 128>}, {pipeline_mode = #tpu.pipeline_mode<synchronous>, transform_indices = @transform_4, window_bounds = array<i64: 32, 128>}, {pipeline_mode = #tpu.pipeline_mode<synchronous>, transform_indices = @transform_5, window_bounds = array<i64: 32, 128>}, {pipeline_mode = #tpu.pipeline_mode<synchronous>, transform_indices = @transform_6, window_bounds = array<i64: 1, 128>}, {pipeline_mode = #tpu.pipeline_mode<synchronous>, transform_indices = @transform_7, window_bounds = array<i64: 32, 128>}, {pipeline_mode = #tpu.pipeline_mode<synchronous>, transform_indices = @transform_8, window_bounds = array<i64: 1, 128>}, {transform_indices = @transform_9, window_bounds = array<i64: 8, 128>}]} {
    %c0_i32 = arith.constant 0 : i32
    %0 = arith.cmpi eq, %arg1, %c0_i32 : i32
    %1 = arith.extui %0 : i1 to i32
    %c0_i32_0 = arith.constant 0 : i32
    %2 = arith.cmpi ne, %1, %c0_i32_0 : i32
    scf.if %2 {
      %cst_172 = arith.constant 0.000000e+00 : f32
      %438 = vector.broadcast %cst_172 : f32 to vector<2x8x32xf32>
      %c0_173 = arith.constant 0 : index
      %c0_174 = arith.constant 0 : index
      %c0_175 = arith.constant 0 : index
      %439 = vector.load %arg12[%c0_173, %c0_174, %c0_175] : memref<2x8x32xf32, #tpu.memory_space<vmem>>, vector<2x8x32xf32>
      tpu.vector_store %arg12[%c0_173, %c0_174, %c0_175], %438 {strides = array<i32>} : memref<2x8x32xf32, #tpu.memory_space<vmem>>, vector<2x8x32xf32>,
      %cst_176 = arith.constant 0.000000e+00 : f32
      %440 = vector.broadcast %cst_176 : f32 to vector<2x8x32xf32>
      %c0_177 = arith.constant 0 : index
      %c0_178 = arith.constant 0 : index
      %c0_179 = arith.constant 0 : index
      %441 = vector.load %arg13[%c0_177, %c0_178, %c0_179] : memref<2x8x32xf32, #tpu.memory_space<vmem>>, vector<2x8x32xf32>
      tpu.vector_store %arg13[%c0_177, %c0_178, %c0_179], %440 {strides = array<i32>} : memref<2x8x32xf32, #tpu.memory_space<vmem>>, vector<2x8x32xf32>,
    } else {
    }
    %c0 = arith.constant 0 : index
    %c0_1 = arith.constant 0 : index
    %c0_2 = arith.constant 0 : index
    %3 = vector.load %arg2[%c0, %c0_1, %c0_2] : memref<8x8x16xbf16, #tpu.memory_space<vmem>>, vector<8x8x16xbf16>
    %4 = vector.shape_cast %3 : vector<8x8x16xbf16> to vector<64x16xbf16>
    %c0_3 = arith.constant 0 : index
    %c0_4 = arith.constant 0 : index
    %5 = vector.load %arg3[%c0_3, %c0_4] : memref<16x128xbf16, #tpu.memory_space<vmem>>, vector<16x128xbf16>
    %cst = arith.constant dense<0.000000e+00> : vector<64x128xf32>
    %6 = tpu.matmul %4, %5, %cst {dimension_numbers = #tpu.dot_dimension_numbers<[1], [0], [0], [1], [0, 0, 1, 1], [], []>} : vector<64x16xbf16>, vector<16x128xbf16>, vector<64x128xf32> -> vector<64x128xf32>
    %c0_5 = arith.constant 0 : index
    %c0_6 = arith.constant 0 : index
    %7 = vector.load %arg5[%c0_5, %c0_6] : memref<1x128xf32, #tpu.memory_space<vmem>>, vector<1x128xf32>
    %8 = vector.broadcast %7 : vector<1x128xf32> to vector<64x128xf32>
    %9 = arith.addf %6, %8 : vector<64x128xf32>
    %10 = vector.shape_cast %9 : vector<64x128xf32> to vector<8x8x128xf32>
    %c0_7 = arith.constant 0 : index
    %c0_8 = arith.constant 0 : index
    %c0_9 = arith.constant 0 : index
    %11 = vector.load %arg15[%c0_7, %c0_8, %c0_9] : memref<8x8x128xf32, #tpu.memory_space<vmem>>, vector<8x8x128xf32>
    tpu.vector_store %arg15[%c0_7, %c0_8, %c0_9], %10 {strides = array<i32>} : memref<8x8x128xf32, #tpu.memory_space<vmem>>, vector<8x8x128xf32>,
    %c0_10 = arith.constant 0 : index
    %c0_11 = arith.constant 0 : index
    %12 = vector.load %arg4[%c0_10, %c0_11] : memref<32x128xbf16, #tpu.memory_space<vmem>>, vector<32x128xbf16>
    %c0_12 = arith.constant 0 : index
    %c0_13 = arith.constant 0 : index
    %c0_14 = arith.constant 0 : index
    %13 = vector.load %arg12[%c0_12, %c0_13, %c0_14] : memref<2x8x32xf32, #tpu.memory_space<vmem>>, vector<1x8x32xf32>
    %14 = vector.shape_cast %13 : vector<1x8x32xf32> to vector<8x32xf32>
    %c0_15 = arith.constant 0 : index
    %c0_16 = arith.constant 0 : index
    %c0_17 = arith.constant 0 : index
    %15 = vector.load %arg13[%c0_15, %c0_16, %c0_17] : memref<2x8x32xf32, #tpu.memory_space<vmem>>, vector<1x8x32xf32>
    %16 = vector.shape_cast %15 : vector<1x8x32xf32> to vector<8x32xf32>
    %c0_i32_18 = arith.constant 0 : i32
    %17 = arith.index_cast %c0_i32_18 : i32 to index
    %c0_19 = arith.constant 0 : index
    %c0_20 = arith.constant 0 : index
    %18 = vector.load %arg15[%17, %c0_19, %c0_20] : memref<8x8x128xf32, #tpu.memory_space<vmem>>, vector<1x8x128xf32>
    %19 = vector.shape_cast %18 : vector<1x8x128xf32> to vector<8x128xf32>
    %20 = arith.truncf %14 : vector<8x32xf32> to vector<8x32xbf16>
    %cst_21 = arith.constant dense<0.000000e+00> : vector<8x128xf32>
    %21 = tpu.matmul %20, %12, %cst_21 {dimension_numbers = #tpu.dot_dimension_numbers<[1], [0], [0], [1], [0, 0, 1, 1], [], []>} : vector<8x32xbf16>, vector<32x128xbf16>, vector<8x128xf32> -> vector<8x128xf32>
    %22 = arith.addf %19, %21 : vector<8x128xf32>
    %cst_22 = arith.constant 5.000000e-01 : f32
    %23 = vector.broadcast %cst_22 : f32 to vector<8x128xf32>
    %24 = arith.mulf %23, %22 : vector<8x128xf32>
    %25 = math.tanh %24 : vector<8x128xf32>
    %cst_23 = arith.constant 5.000000e-01 : f32
    %26 = vector.broadcast %cst_23 : f32 to vector<8x128xf32>
    %27 = arith.mulf %26, %25 : vector<8x128xf32>
    %cst_24 = arith.constant 5.000000e-01 : f32
    %28 = vector.broadcast %cst_24 : f32 to vector<8x128xf32>
    %29 = arith.addf %27, %28 : vector<8x128xf32>
    %30 = vector.extract_strided_slice %29 {offsets = [0, 0], sizes = [8, 32], strides = [1, 1]} : vector<8x128xf32> to vector<8x32xf32>
    %31 = vector.extract_strided_slice %29 {offsets = [0, 32], sizes = [8, 32], strides = [1, 1]} : vector<8x128xf32> to vector<8x32xf32>
    %32 = vector.extract_strided_slice %25 {offsets = [0, 64], sizes = [8, 32], strides = [1, 1]} : vector<8x128xf32> to vector<8x32xf32>
    %33 = vector.extract_strided_slice %29 {offsets = [0, 96], sizes = [8, 32], strides = [1, 1]} : vector<8x128xf32> to vector<8x32xf32>
    %34 = arith.mulf %31, %16 : vector<8x32xf32>
    %35 = arith.mulf %30, %32 : vector<8x32xf32>
    %36 = arith.addf %34, %35 : vector<8x32xf32>
    %37 = math.tanh %36 : vector<8x32xf32>
    %38 = arith.mulf %33, %37 : vector<8x32xf32>
    %39 = arith.truncf %38 : vector<8x32xf32> to vector<8x32xbf16>
    %40 = arith.index_cast %c0_i32_18 : i32 to index
    %c0_25 = arith.constant 0 : index
    %c0_26 = arith.constant 0 : index
    %41 = vector.load %arg14[%40, %c0_25, %c0_26] : memref<8x8x32xbf16, #tpu.memory_space<vmem>>, vector<1x8x32xbf16>
    %42 = vector.shape_cast %41 : vector<1x8x32xbf16> to vector<8x32xbf16>
    %43 = vector.shape_cast %39 : vector<8x32xbf16> to vector<1x8x32xbf16>
    tpu.vector_store %arg14[%40, %c0_25, %c0_26], %43 {strides = array<i32>} : memref<8x8x32xbf16, #tpu.memory_space<vmem>>, vector<1x8x32xbf16>,
    %c1_i32 = arith.constant 1 : i32
    %44 = arith.index_cast %c1_i32 : i32 to index
    %c0_27 = arith.constant 0 : index
    %c0_28 = arith.constant 0 : index
    %45 = vector.load %arg15[%44, %c0_27, %c0_28] : memref<8x8x128xf32, #tpu.memory_space<vmem>>, vector<1x8x128xf32>
    %46 = vector.shape_cast %45 : vector<1x8x128xf32> to vector<8x128xf32>
    %47 = arith.truncf %38 : vector<8x32xf32> to vector<8x32xbf16>
    %cst_29 = arith.constant dense<0.000000e+00> : vector<8x128xf32>
    %48 = tpu.matmul %47, %12, %cst_29 {dimension_numbers = #tpu.dot_dimension_numbers<[1], [0], [0], [1], [0, 0, 1, 1], [], []>} : vector<8x32xbf16>, vector<32x128xbf16>, vector<8x128xf32> -> vector<8x128xf32>
    %49 = arith.addf %46, %48 : vector<8x128xf32>
    %cst_30 = arith.constant 5.000000e-01 : f32
    %50 = vector.broadcast %cst_30 : f32 to vector<8x128xf32>
    %51 = arith.mulf %50, %49 : vector<8x128xf32>
    %52 = math.tanh %51 : vector<8x128xf32>
    %cst_31 = arith.constant 5.000000e-01 : f32
    %53 = vector.broadcast %cst_31 : f32 to vector<8x128xf32>
    %54 = arith.mulf %53, %52 : vector<8x128xf32>
    %cst_32 = arith.constant 5.000000e-01 : f32
    %55 = vector.broadcast %cst_32 : f32 to vector<8x128xf32>
    %56 = arith.addf %54, %55 : vector<8x128xf32>
    %57 = vector.extract_strided_slice %56 {offsets = [0, 0], sizes = [8, 32], strides = [1, 1]} : vector<8x128xf32> to vector<8x32xf32>
    %58 = vector.extract_strided_slice %56 {offsets = [0, 32], sizes = [8, 32], strides = [1, 1]} : vector<8x128xf32> to vector<8x32xf32>
    %59 = vector.extract_strided_slice %52 {offsets = [0, 64], sizes = [8, 32], strides = [1, 1]} : vector<8x128xf32> to vector<8x32xf32>
    %60 = vector.extract_strided_slice %56 {offsets = [0, 96], sizes = [8, 32], strides = [1, 1]} : vector<8x128xf32> to vector<8x32xf32>
    %61 = arith.mulf %58, %36 : vector<8x32xf32>
    %62 = arith.mulf %57, %59 : vector<8x32xf32>
    %63 = arith.addf %61, %62 : vector<8x32xf32>
    %64 = math.tanh %63 : vector<8x32xf32>
    %65 = arith.mulf %60, %64 : vector<8x32xf32>
    %66 = arith.truncf %65 : vector<8x32xf32> to vector<8x32xbf16>
    %67 = arith.index_cast %c1_i32 : i32 to index
    %c0_33 = arith.constant 0 : index
    %c0_34 = arith.constant 0 : index
    %68 = vector.load %arg14[%67, %c0_33, %c0_34] : memref<8x8x32xbf16, #tpu.memory_space<vmem>>, vector<1x8x32xbf16>
    %69 = vector.shape_cast %68 : vector<1x8x32xbf16> to vector<8x32xbf16>
    %70 = vector.shape_cast %66 : vector<8x32xbf16> to vector<1x8x32xbf16>
    tpu.vector_store %arg14[%67, %c0_33, %c0_34], %70 {strides = array<i32>} : memref<8x8x32xbf16, #tpu.memory_space<vmem>>, vector<1x8x32xbf16>,
    %c2_i32 = arith.constant 2 : i32
    %71 = arith.index_cast %c2_i32 : i32 to index
    %c0_35 = arith.constant 0 : index
    %c0_36 = arith.constant 0 : index
    %72 = vector.load %arg15[%71, %c0_35, %c0_36] : memref<8x8x128xf32, #tpu.memory_space<vmem>>, vector<1x8x128xf32>
    %73 = vector.shape_cast %72 : vector<1x8x128xf32> to vector<8x128xf32>
    %74 = arith.truncf %65 : vector<8x32xf32> to vector<8x32xbf16>
    %cst_37 = arith.constant dense<0.000000e+00> : vector<8x128xf32>
    %75 = tpu.matmul %74, %12, %cst_37 {dimension_numbers = #tpu.dot_dimension_numbers<[1], [0], [0], [1], [0, 0, 1, 1], [], []>} : vector<8x32xbf16>, vector<32x128xbf16>, vector<8x128xf32> -> vector<8x128xf32>
    %76 = arith.addf %73, %75 : vector<8x128xf32>
    %cst_38 = arith.constant 5.000000e-01 : f32
    %77 = vector.broadcast %cst_38 : f32 to vector<8x128xf32>
    %78 = arith.mulf %77, %76 : vector<8x128xf32>
    %79 = math.tanh %78 : vector<8x128xf32>
    %cst_39 = arith.constant 5.000000e-01 : f32
    %80 = vector.broadcast %cst_39 : f32 to vector<8x128xf32>
    %81 = arith.mulf %80, %79 : vector<8x128xf32>
    %cst_40 = arith.constant 5.000000e-01 : f32
    %82 = vector.broadcast %cst_40 : f32 to vector<8x128xf32>
    %83 = arith.addf %81, %82 : vector<8x128xf32>
    %84 = vector.extract_strided_slice %83 {offsets = [0, 0], sizes = [8, 32], strides = [1, 1]} : vector<8x128xf32> to vector<8x32xf32>
    %85 = vector.extract_strided_slice %83 {offsets = [0, 32], sizes = [8, 32], strides = [1, 1]} : vector<8x128xf32> to vector<8x32xf32>
    %86 = vector.extract_strided_slice %79 {offsets = [0, 64], sizes = [8, 32], strides = [1, 1]} : vector<8x128xf32> to vector<8x32xf32>
    %87 = vector.extract_strided_slice %83 {offsets = [0, 96], sizes = [8, 32], strides = [1, 1]} : vector<8x128xf32> to vector<8x32xf32>
    %88 = arith.mulf %85, %63 : vector<8x32xf32>
    %89 = arith.mulf %84, %86 : vector<8x32xf32>
    %90 = arith.addf %88, %89 : vector<8x32xf32>
    %91 = math.tanh %90 : vector<8x32xf32>
    %92 = arith.mulf %87, %91 : vector<8x32xf32>
    %93 = arith.truncf %92 : vector<8x32xf32> to vector<8x32xbf16>
    %94 = arith.index_cast %c2_i32 : i32 to index
    %c0_41 = arith.constant 0 : index
    %c0_42 = arith.constant 0 : index
    %95 = vector.load %arg14[%94, %c0_41, %c0_42] : memref<8x8x32xbf16, #tpu.memory_space<vmem>>, vector<1x8x32xbf16>
    %96 = vector.shape_cast %95 : vector<1x8x32xbf16> to vector<8x32xbf16>
    %97 = vector.shape_cast %93 : vector<8x32xbf16> to vector<1x8x32xbf16>
    tpu.vector_store %arg14[%94, %c0_41, %c0_42], %97 {strides = array<i32>} : memref<8x8x32xbf16, #tpu.memory_space<vmem>>, vector<1x8x32xbf16>,
    %c3_i32 = arith.constant 3 : i32
    %98 = arith.index_cast %c3_i32 : i32 to index
    %c0_43 = arith.constant 0 : index
    %c0_44 = arith.constant 0 : index
    %99 = vector.load %arg15[%98, %c0_43, %c0_44] : memref<8x8x128xf32, #tpu.memory_space<vmem>>, vector<1x8x128xf32>
    %100 = vector.shape_cast %99 : vector<1x8x128xf32> to vector<8x128xf32>
    %101 = arith.truncf %92 : vector<8x32xf32> to vector<8x32xbf16>
    %cst_45 = arith.constant dense<0.000000e+00> : vector<8x128xf32>
    %102 = tpu.matmul %101, %12, %cst_45 {dimension_numbers = #tpu.dot_dimension_numbers<[1], [0], [0], [1], [0, 0, 1, 1], [], []>} : vector<8x32xbf16>, vector<32x128xbf16>, vector<8x128xf32> -> vector<8x128xf32>
    %103 = arith.addf %100, %102 : vector<8x128xf32>
    %cst_46 = arith.constant 5.000000e-01 : f32
    %104 = vector.broadcast %cst_46 : f32 to vector<8x128xf32>
    %105 = arith.mulf %104, %103 : vector<8x128xf32>
    %106 = math.tanh %105 : vector<8x128xf32>
    %cst_47 = arith.constant 5.000000e-01 : f32
    %107 = vector.broadcast %cst_47 : f32 to vector<8x128xf32>
    %108 = arith.mulf %107, %106 : vector<8x128xf32>
    %cst_48 = arith.constant 5.000000e-01 : f32
    %109 = vector.broadcast %cst_48 : f32 to vector<8x128xf32>
    %110 = arith.addf %108, %109 : vector<8x128xf32>
    %111 = vector.extract_strided_slice %110 {offsets = [0, 0], sizes = [8, 32], strides = [1, 1]} : vector<8x128xf32> to vector<8x32xf32>
    %112 = vector.extract_strided_slice %110 {offsets = [0, 32], sizes = [8, 32], strides = [1, 1]} : vector<8x128xf32> to vector<8x32xf32>
    %113 = vector.extract_strided_slice %106 {offsets = [0, 64], sizes = [8, 32], strides = [1, 1]} : vector<8x128xf32> to vector<8x32xf32>
    %114 = vector.extract_strided_slice %110 {offsets = [0, 96], sizes = [8, 32], strides = [1, 1]} : vector<8x128xf32> to vector<8x32xf32>
    %115 = arith.mulf %112, %90 : vector<8x32xf32>
    %116 = arith.mulf %111, %113 : vector<8x32xf32>
    %117 = arith.addf %115, %116 : vector<8x32xf32>
    %118 = math.tanh %117 : vector<8x32xf32>
    %119 = arith.mulf %114, %118 : vector<8x32xf32>
    %120 = arith.truncf %119 : vector<8x32xf32> to vector<8x32xbf16>
    %121 = arith.index_cast %c3_i32 : i32 to index
    %c0_49 = arith.constant 0 : index
    %c0_50 = arith.constant 0 : index
    %122 = vector.load %arg14[%121, %c0_49, %c0_50] : memref<8x8x32xbf16, #tpu.memory_space<vmem>>, vector<1x8x32xbf16>
    %123 = vector.shape_cast %122 : vector<1x8x32xbf16> to vector<8x32xbf16>
    %124 = vector.shape_cast %120 : vector<8x32xbf16> to vector<1x8x32xbf16>
    tpu.vector_store %arg14[%121, %c0_49, %c0_50], %124 {strides = array<i32>} : memref<8x8x32xbf16, #tpu.memory_space<vmem>>, vector<1x8x32xbf16>,
    %c4_i32 = arith.constant 4 : i32
    %125 = arith.index_cast %c4_i32 : i32 to index
    %c0_51 = arith.constant 0 : index
    %c0_52 = arith.constant 0 : index
    %126 = vector.load %arg15[%125, %c0_51, %c0_52] : memref<8x8x128xf32, #tpu.memory_space<vmem>>, vector<1x8x128xf32>
    %127 = vector.shape_cast %126 : vector<1x8x128xf32> to vector<8x128xf32>
    %128 = arith.truncf %119 : vector<8x32xf32> to vector<8x32xbf16>
    %cst_53 = arith.constant dense<0.000000e+00> : vector<8x128xf32>
    %129 = tpu.matmul %128, %12, %cst_53 {dimension_numbers = #tpu.dot_dimension_numbers<[1], [0], [0], [1], [0, 0, 1, 1], [], []>} : vector<8x32xbf16>, vector<32x128xbf16>, vector<8x128xf32> -> vector<8x128xf32>
    %130 = arith.addf %127, %129 : vector<8x128xf32>
    %cst_54 = arith.constant 5.000000e-01 : f32
    %131 = vector.broadcast %cst_54 : f32 to vector<8x128xf32>
    %132 = arith.mulf %131, %130 : vector<8x128xf32>
    %133 = math.tanh %132 : vector<8x128xf32>
    %cst_55 = arith.constant 5.000000e-01 : f32
    %134 = vector.broadcast %cst_55 : f32 to vector<8x128xf32>
    %135 = arith.mulf %134, %133 : vector<8x128xf32>
    %cst_56 = arith.constant 5.000000e-01 : f32
    %136 = vector.broadcast %cst_56 : f32 to vector<8x128xf32>
    %137 = arith.addf %135, %136 : vector<8x128xf32>
    %138 = vector.extract_strided_slice %137 {offsets = [0, 0], sizes = [8, 32], strides = [1, 1]} : vector<8x128xf32> to vector<8x32xf32>
    %139 = vector.extract_strided_slice %137 {offsets = [0, 32], sizes = [8, 32], strides = [1, 1]} : vector<8x128xf32> to vector<8x32xf32>
    %140 = vector.extract_strided_slice %133 {offsets = [0, 64], sizes = [8, 32], strides = [1, 1]} : vector<8x128xf32> to vector<8x32xf32>
    %141 = vector.extract_strided_slice %137 {offsets = [0, 96], sizes = [8, 32], strides = [1, 1]} : vector<8x128xf32> to vector<8x32xf32>
    %142 = arith.mulf %139, %117 : vector<8x32xf32>
    %143 = arith.mulf %138, %140 : vector<8x32xf32>
    %144 = arith.addf %142, %143 : vector<8x32xf32>
    %145 = math.tanh %144 : vector<8x32xf32>
    %146 = arith.mulf %141, %145 : vector<8x32xf32>
    %147 = arith.truncf %146 : vector<8x32xf32> to vector<8x32xbf16>
    %148 = arith.index_cast %c4_i32 : i32 to index
    %c0_57 = arith.constant 0 : index
    %c0_58 = arith.constant 0 : index
    %149 = vector.load %arg14[%148, %c0_57, %c0_58] : memref<8x8x32xbf16, #tpu.memory_space<vmem>>, vector<1x8x32xbf16>
    %150 = vector.shape_cast %149 : vector<1x8x32xbf16> to vector<8x32xbf16>
    %151 = vector.shape_cast %147 : vector<8x32xbf16> to vector<1x8x32xbf16>
    tpu.vector_store %arg14[%148, %c0_57, %c0_58], %151 {strides = array<i32>} : memref<8x8x32xbf16, #tpu.memory_space<vmem>>, vector<1x8x32xbf16>,
    %c5_i32 = arith.constant 5 : i32
    %152 = arith.index_cast %c5_i32 : i32 to index
    %c0_59 = arith.constant 0 : index
    %c0_60 = arith.constant 0 : index
    %153 = vector.load %arg15[%152, %c0_59, %c0_60] : memref<8x8x128xf32, #tpu.memory_space<vmem>>, vector<1x8x128xf32>
    %154 = vector.shape_cast %153 : vector<1x8x128xf32> to vector<8x128xf32>
    %155 = arith.truncf %146 : vector<8x32xf32> to vector<8x32xbf16>
    %cst_61 = arith.constant dense<0.000000e+00> : vector<8x128xf32>
    %156 = tpu.matmul %155, %12, %cst_61 {dimension_numbers = #tpu.dot_dimension_numbers<[1], [0], [0], [1], [0, 0, 1, 1], [], []>} : vector<8x32xbf16>, vector<32x128xbf16>, vector<8x128xf32> -> vector<8x128xf32>
    %157 = arith.addf %154, %156 : vector<8x128xf32>
    %cst_62 = arith.constant 5.000000e-01 : f32
    %158 = vector.broadcast %cst_62 : f32 to vector<8x128xf32>
    %159 = arith.mulf %158, %157 : vector<8x128xf32>
    %160 = math.tanh %159 : vector<8x128xf32>
    %cst_63 = arith.constant 5.000000e-01 : f32
    %161 = vector.broadcast %cst_63 : f32 to vector<8x128xf32>
    %162 = arith.mulf %161, %160 : vector<8x128xf32>
    %cst_64 = arith.constant 5.000000e-01 : f32
    %163 = vector.broadcast %cst_64 : f32 to vector<8x128xf32>
    %164 = arith.addf %162, %163 : vector<8x128xf32>
    %165 = vector.extract_strided_slice %164 {offsets = [0, 0], sizes = [8, 32], strides = [1, 1]} : vector<8x128xf32> to vector<8x32xf32>
    %166 = vector.extract_strided_slice %164 {offsets = [0, 32], sizes = [8, 32], strides = [1, 1]} : vector<8x128xf32> to vector<8x32xf32>
    %167 = vector.extract_strided_slice %160 {offsets = [0, 64], sizes = [8, 32], strides = [1, 1]} : vector<8x128xf32> to vector<8x32xf32>
    %168 = vector.extract_strided_slice %164 {offsets = [0, 96], sizes = [8, 32], strides = [1, 1]} : vector<8x128xf32> to vector<8x32xf32>
    %169 = arith.mulf %166, %144 : vector<8x32xf32>
    %170 = arith.mulf %165, %167 : vector<8x32xf32>
    %171 = arith.addf %169, %170 : vector<8x32xf32>
    %172 = math.tanh %171 : vector<8x32xf32>
    %173 = arith.mulf %168, %172 : vector<8x32xf32>
    %174 = arith.truncf %173 : vector<8x32xf32> to vector<8x32xbf16>
    %175 = arith.index_cast %c5_i32 : i32 to index
    %c0_65 = arith.constant 0 : index
    %c0_66 = arith.constant 0 : index
    %176 = vector.load %arg14[%175, %c0_65, %c0_66] : memref<8x8x32xbf16, #tpu.memory_space<vmem>>, vector<1x8x32xbf16>
    %177 = vector.shape_cast %176 : vector<1x8x32xbf16> to vector<8x32xbf16>
    %178 = vector.shape_cast %174 : vector<8x32xbf16> to vector<1x8x32xbf16>
    tpu.vector_store %arg14[%175, %c0_65, %c0_66], %178 {strides = array<i32>} : memref<8x8x32xbf16, #tpu.memory_space<vmem>>, vector<1x8x32xbf16>,
    %c6_i32 = arith.constant 6 : i32
    %179 = arith.index_cast %c6_i32 : i32 to index
    %c0_67 = arith.constant 0 : index
    %c0_68 = arith.constant 0 : index
    %180 = vector.load %arg15[%179, %c0_67, %c0_68] : memref<8x8x128xf32, #tpu.memory_space<vmem>>, vector<1x8x128xf32>
    %181 = vector.shape_cast %180 : vector<1x8x128xf32> to vector<8x128xf32>
    %182 = arith.truncf %173 : vector<8x32xf32> to vector<8x32xbf16>
    %cst_69 = arith.constant dense<0.000000e+00> : vector<8x128xf32>
    %183 = tpu.matmul %182, %12, %cst_69 {dimension_numbers = #tpu.dot_dimension_numbers<[1], [0], [0], [1], [0, 0, 1, 1], [], []>} : vector<8x32xbf16>, vector<32x128xbf16>, vector<8x128xf32> -> vector<8x128xf32>
    %184 = arith.addf %181, %183 : vector<8x128xf32>
    %cst_70 = arith.constant 5.000000e-01 : f32
    %185 = vector.broadcast %cst_70 : f32 to vector<8x128xf32>
    %186 = arith.mulf %185, %184 : vector<8x128xf32>
    %187 = math.tanh %186 : vector<8x128xf32>
    %cst_71 = arith.constant 5.000000e-01 : f32
    %188 = vector.broadcast %cst_71 : f32 to vector<8x128xf32>
    %189 = arith.mulf %188, %187 : vector<8x128xf32>
    %cst_72 = arith.constant 5.000000e-01 : f32
    %190 = vector.broadcast %cst_72 : f32 to vector<8x128xf32>
    %191 = arith.addf %189, %190 : vector<8x128xf32>
    %192 = vector.extract_strided_slice %191 {offsets = [0, 0], sizes = [8, 32], strides = [1, 1]} : vector<8x128xf32> to vector<8x32xf32>
    %193 = vector.extract_strided_slice %191 {offsets = [0, 32], sizes = [8, 32], strides = [1, 1]} : vector<8x128xf32> to vector<8x32xf32>
    %194 = vector.extract_strided_slice %187 {offsets = [0, 64], sizes = [8, 32], strides = [1, 1]} : vector<8x128xf32> to vector<8x32xf32>
    %195 = vector.extract_strided_slice %191 {offsets = [0, 96], sizes = [8, 32], strides = [1, 1]} : vector<8x128xf32> to vector<8x32xf32>
    %196 = arith.mulf %193, %171 : vector<8x32xf32>
    %197 = arith.mulf %192, %194 : vector<8x32xf32>
    %198 = arith.addf %196, %197 : vector<8x32xf32>
    %199 = math.tanh %198 : vector<8x32xf32>
    %200 = arith.mulf %195, %199 : vector<8x32xf32>
    %201 = arith.truncf %200 : vector<8x32xf32> to vector<8x32xbf16>
    %202 = arith.index_cast %c6_i32 : i32 to index
    %c0_73 = arith.constant 0 : index
    %c0_74 = arith.constant 0 : index
    %203 = vector.load %arg14[%202, %c0_73, %c0_74] : memref<8x8x32xbf16, #tpu.memory_space<vmem>>, vector<1x8x32xbf16>
    %204 = vector.shape_cast %203 : vector<1x8x32xbf16> to vector<8x32xbf16>
    %205 = vector.shape_cast %201 : vector<8x32xbf16> to vector<1x8x32xbf16>
    tpu.vector_store %arg14[%202, %c0_73, %c0_74], %205 {strides = array<i32>} : memref<8x8x32xbf16, #tpu.memory_space<vmem>>, vector<1x8x32xbf16>,
    %c7_i32 = arith.constant 7 : i32
    %206 = arith.index_cast %c7_i32 : i32 to index
    %c0_75 = arith.constant 0 : index
    %c0_76 = arith.constant 0 : index
    %207 = vector.load %arg15[%206, %c0_75, %c0_76] : memref<8x8x128xf32, #tpu.memory_space<vmem>>, vector<1x8x128xf32>
    %208 = vector.shape_cast %207 : vector<1x8x128xf32> to vector<8x128xf32>
    %209 = arith.truncf %200 : vector<8x32xf32> to vector<8x32xbf16>
    %cst_77 = arith.constant dense<0.000000e+00> : vector<8x128xf32>
    %210 = tpu.matmul %209, %12, %cst_77 {dimension_numbers = #tpu.dot_dimension_numbers<[1], [0], [0], [1], [0, 0, 1, 1], [], []>} : vector<8x32xbf16>, vector<32x128xbf16>, vector<8x128xf32> -> vector<8x128xf32>
    %211 = arith.addf %208, %210 : vector<8x128xf32>
    %cst_78 = arith.constant 5.000000e-01 : f32
    %212 = vector.broadcast %cst_78 : f32 to vector<8x128xf32>
    %213 = arith.mulf %212, %211 : vector<8x128xf32>
    %214 = math.tanh %213 : vector<8x128xf32>
    %cst_79 = arith.constant 5.000000e-01 : f32
    %215 = vector.broadcast %cst_79 : f32 to vector<8x128xf32>
    %216 = arith.mulf %215, %214 : vector<8x128xf32>
    %cst_80 = arith.constant 5.000000e-01 : f32
    %217 = vector.broadcast %cst_80 : f32 to vector<8x128xf32>
    %218 = arith.addf %216, %217 : vector<8x128xf32>
    %219 = vector.extract_strided_slice %218 {offsets = [0, 0], sizes = [8, 32], strides = [1, 1]} : vector<8x128xf32> to vector<8x32xf32>
    %220 = vector.extract_strided_slice %218 {offsets = [0, 32], sizes = [8, 32], strides = [1, 1]} : vector<8x128xf32> to vector<8x32xf32>
    %221 = vector.extract_strided_slice %214 {offsets = [0, 64], sizes = [8, 32], strides = [1, 1]} : vector<8x128xf32> to vector<8x32xf32>
    %222 = vector.extract_strided_slice %218 {offsets = [0, 96], sizes = [8, 32], strides = [1, 1]} : vector<8x128xf32> to vector<8x32xf32>
    %223 = arith.mulf %220, %198 : vector<8x32xf32>
    %224 = arith.mulf %219, %221 : vector<8x32xf32>
    %225 = arith.addf %223, %224 : vector<8x32xf32>
    %226 = math.tanh %225 : vector<8x32xf32>
    %227 = arith.mulf %222, %226 : vector<8x32xf32>
    %228 = arith.truncf %227 : vector<8x32xf32> to vector<8x32xbf16>
    %229 = arith.index_cast %c7_i32 : i32 to index
    %c0_81 = arith.constant 0 : index
    %c0_82 = arith.constant 0 : index
    %230 = vector.load %arg14[%229, %c0_81, %c0_82] : memref<8x8x32xbf16, #tpu.memory_space<vmem>>, vector<1x8x32xbf16>
    %231 = vector.shape_cast %230 : vector<1x8x32xbf16> to vector<8x32xbf16>
    %232 = vector.shape_cast %228 : vector<8x32xbf16> to vector<1x8x32xbf16>
    tpu.vector_store %arg14[%229, %c0_81, %c0_82], %232 {strides = array<i32>} : memref<8x8x32xbf16, #tpu.memory_space<vmem>>, vector<1x8x32xbf16>,
    %c8_i32 = arith.constant 8 : i32
    %c0_83 = arith.constant 0 : index
    %c0_84 = arith.constant 0 : index
    %c0_85 = arith.constant 0 : index
    %233 = vector.load %arg12[%c0_83, %c0_84, %c0_85] : memref<2x8x32xf32, #tpu.memory_space<vmem>>, vector<1x8x32xf32>
    %234 = vector.shape_cast %233 : vector<1x8x32xf32> to vector<8x32xf32>
    %235 = vector.shape_cast %227 : vector<8x32xf32> to vector<1x8x32xf32>
    tpu.vector_store %arg12[%c0_83, %c0_84, %c0_85], %235 {strides = array<i32>} : memref<2x8x32xf32, #tpu.memory_space<vmem>>, vector<1x8x32xf32>,
    %c0_86 = arith.constant 0 : index
    %c0_87 = arith.constant 0 : index
    %c0_88 = arith.constant 0 : index
    %236 = vector.load %arg13[%c0_86, %c0_87, %c0_88] : memref<2x8x32xf32, #tpu.memory_space<vmem>>, vector<1x8x32xf32>
    %237 = vector.shape_cast %236 : vector<1x8x32xf32> to vector<8x32xf32>
    %238 = vector.shape_cast %225 : vector<8x32xf32> to vector<1x8x32xf32>
    tpu.vector_store %arg13[%c0_86, %c0_87, %c0_88], %238 {strides = array<i32>} : memref<2x8x32xf32, #tpu.memory_space<vmem>>, vector<1x8x32xf32>,
    %c0_89 = arith.constant 0 : index
    %c0_90 = arith.constant 0 : index
    %c0_91 = arith.constant 0 : index
    %239 = vector.load %arg14[%c0_89, %c0_90, %c0_91] : memref<8x8x32xbf16, #tpu.memory_space<vmem>>, vector<8x8x32xbf16>
    %240 = vector.shape_cast %239 : vector<8x8x32xbf16> to vector<64x32xbf16>
    %c0_92 = arith.constant 0 : index
    %c0_93 = arith.constant 0 : index
    %241 = vector.load %arg6[%c0_92, %c0_93] : memref<32x128xbf16, #tpu.memory_space<vmem>>, vector<32x128xbf16>
    %cst_94 = arith.constant dense<0.000000e+00> : vector<64x128xf32>
    %242 = tpu.matmul %240, %241, %cst_94 {dimension_numbers = #tpu.dot_dimension_numbers<[1], [0], [0], [1], [0, 0, 1, 1], [], []>} : vector<64x32xbf16>, vector<32x128xbf16>, vector<64x128xf32> -> vector<64x128xf32>
    %c0_95 = arith.constant 0 : index
    %c0_96 = arith.constant 0 : index
    %243 = vector.load %arg8[%c0_95, %c0_96] : memref<1x128xf32, #tpu.memory_space<vmem>>, vector<1x128xf32>
    %244 = vector.broadcast %243 : vector<1x128xf32> to vector<64x128xf32>
    %245 = arith.addf %242, %244 : vector<64x128xf32>
    %246 = vector.shape_cast %245 : vector<64x128xf32> to vector<8x8x128xf32>
    %c0_97 = arith.constant 0 : index
    %c0_98 = arith.constant 0 : index
    %c0_99 = arith.constant 0 : index
    %247 = vector.load %arg15[%c0_97, %c0_98, %c0_99] : memref<8x8x128xf32, #tpu.memory_space<vmem>>, vector<8x8x128xf32>
    tpu.vector_store %arg15[%c0_97, %c0_98, %c0_99], %246 {strides = array<i32>} : memref<8x8x128xf32, #tpu.memory_space<vmem>>, vector<8x8x128xf32>,
    %c0_100 = arith.constant 0 : index
    %c0_101 = arith.constant 0 : index
    %248 = vector.load %arg7[%c0_100, %c0_101] : memref<32x128xbf16, #tpu.memory_space<vmem>>, vector<32x128xbf16>
    %c1 = arith.constant 1 : index
    %c0_102 = arith.constant 0 : index
    %c0_103 = arith.constant 0 : index
    %249 = vector.load %arg12[%c1, %c0_102, %c0_103] : memref<2x8x32xf32, #tpu.memory_space<vmem>>, vector<1x8x32xf32>
    %250 = vector.shape_cast %249 : vector<1x8x32xf32> to vector<8x32xf32>
    %c1_104 = arith.constant 1 : index
    %c0_105 = arith.constant 0 : index
    %c0_106 = arith.constant 0 : index
    %251 = vector.load %arg13[%c1_104, %c0_105, %c0_106] : memref<2x8x32xf32, #tpu.memory_space<vmem>>, vector<1x8x32xf32>
    %252 = vector.shape_cast %251 : vector<1x8x32xf32> to vector<8x32xf32>
    %c0_i32_107 = arith.constant 0 : i32
    %253 = arith.index_cast %c0_i32_107 : i32 to index
    %c0_108 = arith.constant 0 : index
    %c0_109 = arith.constant 0 : index
    %254 = vector.load %arg15[%253, %c0_108, %c0_109] : memref<8x8x128xf32, #tpu.memory_space<vmem>>, vector<1x8x128xf32>
    %255 = vector.shape_cast %254 : vector<1x8x128xf32> to vector<8x128xf32>
    %256 = arith.truncf %250 : vector<8x32xf32> to vector<8x32xbf16>
    %cst_110 = arith.constant dense<0.000000e+00> : vector<8x128xf32>
    %257 = tpu.matmul %256, %248, %cst_110 {dimension_numbers = #tpu.dot_dimension_numbers<[1], [0], [0], [1], [0, 0, 1, 1], [], []>} : vector<8x32xbf16>, vector<32x128xbf16>, vector<8x128xf32> -> vector<8x128xf32>
    %258 = arith.addf %255, %257 : vector<8x128xf32>
    %cst_111 = arith.constant 5.000000e-01 : f32
    %259 = vector.broadcast %cst_111 : f32 to vector<8x128xf32>
    %260 = arith.mulf %259, %258 : vector<8x128xf32>
    %261 = math.tanh %260 : vector<8x128xf32>
    %cst_112 = arith.constant 5.000000e-01 : f32
    %262 = vector.broadcast %cst_112 : f32 to vector<8x128xf32>
    %263 = arith.mulf %262, %261 : vector<8x128xf32>
    %cst_113 = arith.constant 5.000000e-01 : f32
    %264 = vector.broadcast %cst_113 : f32 to vector<8x128xf32>
    %265 = arith.addf %263, %264 : vector<8x128xf32>
    %266 = vector.extract_strided_slice %265 {offsets = [0, 0], sizes = [8, 32], strides = [1, 1]} : vector<8x128xf32> to vector<8x32xf32>
    %267 = vector.extract_strided_slice %265 {offsets = [0, 32], sizes = [8, 32], strides = [1, 1]} : vector<8x128xf32> to vector<8x32xf32>
    %268 = vector.extract_strided_slice %261 {offsets = [0, 64], sizes = [8, 32], strides = [1, 1]} : vector<8x128xf32> to vector<8x32xf32>
    %269 = vector.extract_strided_slice %265 {offsets = [0, 96], sizes = [8, 32], strides = [1, 1]} : vector<8x128xf32> to vector<8x32xf32>
    %270 = arith.mulf %267, %252 : vector<8x32xf32>
    %271 = arith.mulf %266, %268 : vector<8x32xf32>
    %272 = arith.addf %270, %271 : vector<8x32xf32>
    %273 = math.tanh %272 : vector<8x32xf32>
    %274 = arith.mulf %269, %273 : vector<8x32xf32>
    %c1_i32_114 = arith.constant 1 : i32
    %275 = arith.index_cast %c1_i32_114 : i32 to index
    %c0_115 = arith.constant 0 : index
    %c0_116 = arith.constant 0 : index
    %276 = vector.load %arg15[%275, %c0_115, %c0_116] : memref<8x8x128xf32, #tpu.memory_space<vmem>>, vector<1x8x128xf32>
    %277 = vector.shape_cast %276 : vector<1x8x128xf32> to vector<8x128xf32>
    %278 = arith.truncf %274 : vector<8x32xf32> to vector<8x32xbf16>
    %cst_117 = arith.constant dense<0.000000e+00> : vector<8x128xf32>
    %279 = tpu.matmul %278, %248, %cst_117 {dimension_numbers = #tpu.dot_dimension_numbers<[1], [0], [0], [1], [0, 0, 1, 1], [], []>} : vector<8x32xbf16>, vector<32x128xbf16>, vector<8x128xf32> -> vector<8x128xf32>
    %280 = arith.addf %277, %279 : vector<8x128xf32>
    %cst_118 = arith.constant 5.000000e-01 : f32
    %281 = vector.broadcast %cst_118 : f32 to vector<8x128xf32>
    %282 = arith.mulf %281, %280 : vector<8x128xf32>
    %283 = math.tanh %282 : vector<8x128xf32>
    %cst_119 = arith.constant 5.000000e-01 : f32
    %284 = vector.broadcast %cst_119 : f32 to vector<8x128xf32>
    %285 = arith.mulf %284, %283 : vector<8x128xf32>
    %cst_120 = arith.constant 5.000000e-01 : f32
    %286 = vector.broadcast %cst_120 : f32 to vector<8x128xf32>
    %287 = arith.addf %285, %286 : vector<8x128xf32>
    %288 = vector.extract_strided_slice %287 {offsets = [0, 0], sizes = [8, 32], strides = [1, 1]} : vector<8x128xf32> to vector<8x32xf32>
    %289 = vector.extract_strided_slice %287 {offsets = [0, 32], sizes = [8, 32], strides = [1, 1]} : vector<8x128xf32> to vector<8x32xf32>
    %290 = vector.extract_strided_slice %283 {offsets = [0, 64], sizes = [8, 32], strides = [1, 1]} : vector<8x128xf32> to vector<8x32xf32>
    %291 = vector.extract_strided_slice %287 {offsets = [0, 96], sizes = [8, 32], strides = [1, 1]} : vector<8x128xf32> to vector<8x32xf32>
    %292 = arith.mulf %289, %272 : vector<8x32xf32>
    %293 = arith.mulf %288, %290 : vector<8x32xf32>
    %294 = arith.addf %292, %293 : vector<8x32xf32>
    %295 = math.tanh %294 : vector<8x32xf32>
    %296 = arith.mulf %291, %295 : vector<8x32xf32>
    %c2_i32_121 = arith.constant 2 : i32
    %297 = arith.index_cast %c2_i32_121 : i32 to index
    %c0_122 = arith.constant 0 : index
    %c0_123 = arith.constant 0 : index
    %298 = vector.load %arg15[%297, %c0_122, %c0_123] : memref<8x8x128xf32, #tpu.memory_space<vmem>>, vector<1x8x128xf32>
    %299 = vector.shape_cast %298 : vector<1x8x128xf32> to vector<8x128xf32>
    %300 = arith.truncf %296 : vector<8x32xf32> to vector<8x32xbf16>
    %cst_124 = arith.constant dense<0.000000e+00> : vector<8x128xf32>
    %301 = tpu.matmul %300, %248, %cst_124 {dimension_numbers = #tpu.dot_dimension_numbers<[1], [0], [0], [1], [0, 0, 1, 1], [], []>} : vector<8x32xbf16>, vector<32x128xbf16>, vector<8x128xf32> -> vector<8x128xf32>
    %302 = arith.addf %299, %301 : vector<8x128xf32>
    %cst_125 = arith.constant 5.000000e-01 : f32
    %303 = vector.broadcast %cst_125 : f32 to vector<8x128xf32>
    %304 = arith.mulf %303, %302 : vector<8x128xf32>
    %305 = math.tanh %304 : vector<8x128xf32>
    %cst_126 = arith.constant 5.000000e-01 : f32
    %306 = vector.broadcast %cst_126 : f32 to vector<8x128xf32>
    %307 = arith.mulf %306, %305 : vector<8x128xf32>
    %cst_127 = arith.constant 5.000000e-01 : f32
    %308 = vector.broadcast %cst_127 : f32 to vector<8x128xf32>
    %309 = arith.addf %307, %308 : vector<8x128xf32>
    %310 = vector.extract_strided_slice %309 {offsets = [0, 0], sizes = [8, 32], strides = [1, 1]} : vector<8x128xf32> to vector<8x32xf32>
    %311 = vector.extract_strided_slice %309 {offsets = [0, 32], sizes = [8, 32], strides = [1, 1]} : vector<8x128xf32> to vector<8x32xf32>
    %312 = vector.extract_strided_slice %305 {offsets = [0, 64], sizes = [8, 32], strides = [1, 1]} : vector<8x128xf32> to vector<8x32xf32>
    %313 = vector.extract_strided_slice %309 {offsets = [0, 96], sizes = [8, 32], strides = [1, 1]} : vector<8x128xf32> to vector<8x32xf32>
    %314 = arith.mulf %311, %294 : vector<8x32xf32>
    %315 = arith.mulf %310, %312 : vector<8x32xf32>
    %316 = arith.addf %314, %315 : vector<8x32xf32>
    %317 = math.tanh %316 : vector<8x32xf32>
    %318 = arith.mulf %313, %317 : vector<8x32xf32>
    %c3_i32_128 = arith.constant 3 : i32
    %319 = arith.index_cast %c3_i32_128 : i32 to index
    %c0_129 = arith.constant 0 : index
    %c0_130 = arith.constant 0 : index
    %320 = vector.load %arg15[%319, %c0_129, %c0_130] : memref<8x8x128xf32, #tpu.memory_space<vmem>>, vector<1x8x128xf32>
    %321 = vector.shape_cast %320 : vector<1x8x128xf32> to vector<8x128xf32>
    %322 = arith.truncf %318 : vector<8x32xf32> to vector<8x32xbf16>
    %cst_131 = arith.constant dense<0.000000e+00> : vector<8x128xf32>
    %323 = tpu.matmul %322, %248, %cst_131 {dimension_numbers = #tpu.dot_dimension_numbers<[1], [0], [0], [1], [0, 0, 1, 1], [], []>} : vector<8x32xbf16>, vector<32x128xbf16>, vector<8x128xf32> -> vector<8x128xf32>
    %324 = arith.addf %321, %323 : vector<8x128xf32>
    %cst_132 = arith.constant 5.000000e-01 : f32
    %325 = vector.broadcast %cst_132 : f32 to vector<8x128xf32>
    %326 = arith.mulf %325, %324 : vector<8x128xf32>
    %327 = math.tanh %326 : vector<8x128xf32>
    %cst_133 = arith.constant 5.000000e-01 : f32
    %328 = vector.broadcast %cst_133 : f32 to vector<8x128xf32>
    %329 = arith.mulf %328, %327 : vector<8x128xf32>
    %cst_134 = arith.constant 5.000000e-01 : f32
    %330 = vector.broadcast %cst_134 : f32 to vector<8x128xf32>
    %331 = arith.addf %329, %330 : vector<8x128xf32>
    %332 = vector.extract_strided_slice %331 {offsets = [0, 0], sizes = [8, 32], strides = [1, 1]} : vector<8x128xf32> to vector<8x32xf32>
    %333 = vector.extract_strided_slice %331 {offsets = [0, 32], sizes = [8, 32], strides = [1, 1]} : vector<8x128xf32> to vector<8x32xf32>
    %334 = vector.extract_strided_slice %327 {offsets = [0, 64], sizes = [8, 32], strides = [1, 1]} : vector<8x128xf32> to vector<8x32xf32>
    %335 = vector.extract_strided_slice %331 {offsets = [0, 96], sizes = [8, 32], strides = [1, 1]} : vector<8x128xf32> to vector<8x32xf32>
    %336 = arith.mulf %333, %316 : vector<8x32xf32>
    %337 = arith.mulf %332, %334 : vector<8x32xf32>
    %338 = arith.addf %336, %337 : vector<8x32xf32>
    %339 = math.tanh %338 : vector<8x32xf32>
    %340 = arith.mulf %335, %339 : vector<8x32xf32>
    %c4_i32_135 = arith.constant 4 : i32
    %341 = arith.index_cast %c4_i32_135 : i32 to index
    %c0_136 = arith.constant 0 : index
    %c0_137 = arith.constant 0 : index
    %342 = vector.load %arg15[%341, %c0_136, %c0_137] : memref<8x8x128xf32, #tpu.memory_space<vmem>>, vector<1x8x128xf32>
    %343 = vector.shape_cast %342 : vector<1x8x128xf32> to vector<8x128xf32>
    %344 = arith.truncf %340 : vector<8x32xf32> to vector<8x32xbf16>
    %cst_138 = arith.constant dense<0.000000e+00> : vector<8x128xf32>
    %345 = tpu.matmul %344, %248, %cst_138 {dimension_numbers = #tpu.dot_dimension_numbers<[1], [0], [0], [1], [0, 0, 1, 1], [], []>} : vector<8x32xbf16>, vector<32x128xbf16>, vector<8x128xf32> -> vector<8x128xf32>
    %346 = arith.addf %343, %345 : vector<8x128xf32>
    %cst_139 = arith.constant 5.000000e-01 : f32
    %347 = vector.broadcast %cst_139 : f32 to vector<8x128xf32>
    %348 = arith.mulf %347, %346 : vector<8x128xf32>
    %349 = math.tanh %348 : vector<8x128xf32>
    %cst_140 = arith.constant 5.000000e-01 : f32
    %350 = vector.broadcast %cst_140 : f32 to vector<8x128xf32>
    %351 = arith.mulf %350, %349 : vector<8x128xf32>
    %cst_141 = arith.constant 5.000000e-01 : f32
    %352 = vector.broadcast %cst_141 : f32 to vector<8x128xf32>
    %353 = arith.addf %351, %352 : vector<8x128xf32>
    %354 = vector.extract_strided_slice %353 {offsets = [0, 0], sizes = [8, 32], strides = [1, 1]} : vector<8x128xf32> to vector<8x32xf32>
    %355 = vector.extract_strided_slice %353 {offsets = [0, 32], sizes = [8, 32], strides = [1, 1]} : vector<8x128xf32> to vector<8x32xf32>
    %356 = vector.extract_strided_slice %349 {offsets = [0, 64], sizes = [8, 32], strides = [1, 1]} : vector<8x128xf32> to vector<8x32xf32>
    %357 = vector.extract_strided_slice %353 {offsets = [0, 96], sizes = [8, 32], strides = [1, 1]} : vector<8x128xf32> to vector<8x32xf32>
    %358 = arith.mulf %355, %338 : vector<8x32xf32>
    %359 = arith.mulf %354, %356 : vector<8x32xf32>
    %360 = arith.addf %358, %359 : vector<8x32xf32>
    %361 = math.tanh %360 : vector<8x32xf32>
    %362 = arith.mulf %357, %361 : vector<8x32xf32>
    %c5_i32_142 = arith.constant 5 : i32
    %363 = arith.index_cast %c5_i32_142 : i32 to index
    %c0_143 = arith.constant 0 : index
    %c0_144 = arith.constant 0 : index
    %364 = vector.load %arg15[%363, %c0_143, %c0_144] : memref<8x8x128xf32, #tpu.memory_space<vmem>>, vector<1x8x128xf32>
    %365 = vector.shape_cast %364 : vector<1x8x128xf32> to vector<8x128xf32>
    %366 = arith.truncf %362 : vector<8x32xf32> to vector<8x32xbf16>
    %cst_145 = arith.constant dense<0.000000e+00> : vector<8x128xf32>
    %367 = tpu.matmul %366, %248, %cst_145 {dimension_numbers = #tpu.dot_dimension_numbers<[1], [0], [0], [1], [0, 0, 1, 1], [], []>} : vector<8x32xbf16>, vector<32x128xbf16>, vector<8x128xf32> -> vector<8x128xf32>
    %368 = arith.addf %365, %367 : vector<8x128xf32>
    %cst_146 = arith.constant 5.000000e-01 : f32
    %369 = vector.broadcast %cst_146 : f32 to vector<8x128xf32>
    %370 = arith.mulf %369, %368 : vector<8x128xf32>
    %371 = math.tanh %370 : vector<8x128xf32>
    %cst_147 = arith.constant 5.000000e-01 : f32
    %372 = vector.broadcast %cst_147 : f32 to vector<8x128xf32>
    %373 = arith.mulf %372, %371 : vector<8x128xf32>
    %cst_148 = arith.constant 5.000000e-01 : f32
    %374 = vector.broadcast %cst_148 : f32 to vector<8x128xf32>
    %375 = arith.addf %373, %374 : vector<8x128xf32>
    %376 = vector.extract_strided_slice %375 {offsets = [0, 0], sizes = [8, 32], strides = [1, 1]} : vector<8x128xf32> to vector<8x32xf32>
    %377 = vector.extract_strided_slice %375 {offsets = [0, 32], sizes = [8, 32], strides = [1, 1]} : vector<8x128xf32> to vector<8x32xf32>
    %378 = vector.extract_strided_slice %371 {offsets = [0, 64], sizes = [8, 32], strides = [1, 1]} : vector<8x128xf32> to vector<8x32xf32>
    %379 = vector.extract_strided_slice %375 {offsets = [0, 96], sizes = [8, 32], strides = [1, 1]} : vector<8x128xf32> to vector<8x32xf32>
    %380 = arith.mulf %377, %360 : vector<8x32xf32>
    %381 = arith.mulf %376, %378 : vector<8x32xf32>
    %382 = arith.addf %380, %381 : vector<8x32xf32>
    %383 = math.tanh %382 : vector<8x32xf32>
    %384 = arith.mulf %379, %383 : vector<8x32xf32>
    %c6_i32_149 = arith.constant 6 : i32
    %385 = arith.index_cast %c6_i32_149 : i32 to index
    %c0_150 = arith.constant 0 : index
    %c0_151 = arith.constant 0 : index
    %386 = vector.load %arg15[%385, %c0_150, %c0_151] : memref<8x8x128xf32, #tpu.memory_space<vmem>>, vector<1x8x128xf32>
    %387 = vector.shape_cast %386 : vector<1x8x128xf32> to vector<8x128xf32>
    %388 = arith.truncf %384 : vector<8x32xf32> to vector<8x32xbf16>
    %cst_152 = arith.constant dense<0.000000e+00> : vector<8x128xf32>
    %389 = tpu.matmul %388, %248, %cst_152 {dimension_numbers = #tpu.dot_dimension_numbers<[1], [0], [0], [1], [0, 0, 1, 1], [], []>} : vector<8x32xbf16>, vector<32x128xbf16>, vector<8x128xf32> -> vector<8x128xf32>
    %390 = arith.addf %387, %389 : vector<8x128xf32>
    %cst_153 = arith.constant 5.000000e-01 : f32
    %391 = vector.broadcast %cst_153 : f32 to vector<8x128xf32>
    %392 = arith.mulf %391, %390 : vector<8x128xf32>
    %393 = math.tanh %392 : vector<8x128xf32>
    %cst_154 = arith.constant 5.000000e-01 : f32
    %394 = vector.broadcast %cst_154 : f32 to vector<8x128xf32>
    %395 = arith.mulf %394, %393 : vector<8x128xf32>
    %cst_155 = arith.constant 5.000000e-01 : f32
    %396 = vector.broadcast %cst_155 : f32 to vector<8x128xf32>
    %397 = arith.addf %395, %396 : vector<8x128xf32>
    %398 = vector.extract_strided_slice %397 {offsets = [0, 0], sizes = [8, 32], strides = [1, 1]} : vector<8x128xf32> to vector<8x32xf32>
    %399 = vector.extract_strided_slice %397 {offsets = [0, 32], sizes = [8, 32], strides = [1, 1]} : vector<8x128xf32> to vector<8x32xf32>
    %400 = vector.extract_strided_slice %393 {offsets = [0, 64], sizes = [8, 32], strides = [1, 1]} : vector<8x128xf32> to vector<8x32xf32>
    %401 = vector.extract_strided_slice %397 {offsets = [0, 96], sizes = [8, 32], strides = [1, 1]} : vector<8x128xf32> to vector<8x32xf32>
    %402 = arith.mulf %399, %382 : vector<8x32xf32>
    %403 = arith.mulf %398, %400 : vector<8x32xf32>
    %404 = arith.addf %402, %403 : vector<8x32xf32>
    %405 = math.tanh %404 : vector<8x32xf32>
    %406 = arith.mulf %401, %405 : vector<8x32xf32>
    %c7_i32_156 = arith.constant 7 : i32
    %407 = arith.index_cast %c7_i32_156 : i32 to index
    %c0_157 = arith.constant 0 : index
    %c0_158 = arith.constant 0 : index
    %408 = vector.load %arg15[%407, %c0_157, %c0_158] : memref<8x8x128xf32, #tpu.memory_space<vmem>>, vector<1x8x128xf32>
    %409 = vector.shape_cast %408 : vector<1x8x128xf32> to vector<8x128xf32>
    %410 = arith.truncf %406 : vector<8x32xf32> to vector<8x32xbf16>
    %cst_159 = arith.constant dense<0.000000e+00> : vector<8x128xf32>
    %411 = tpu.matmul %410, %248, %cst_159 {dimension_numbers = #tpu.dot_dimension_numbers<[1], [0], [0], [1], [0, 0, 1, 1], [], []>} : vector<8x32xbf16>, vector<32x128xbf16>, vector<8x128xf32> -> vector<8x128xf32>
    %412 = arith.addf %409, %411 : vector<8x128xf32>
    %cst_160 = arith.constant 5.000000e-01 : f32
    %413 = vector.broadcast %cst_160 : f32 to vector<8x128xf32>
    %414 = arith.mulf %413, %412 : vector<8x128xf32>
    %415 = math.tanh %414 : vector<8x128xf32>
    %cst_161 = arith.constant 5.000000e-01 : f32
    %416 = vector.broadcast %cst_161 : f32 to vector<8x128xf32>
    %417 = arith.mulf %416, %415 : vector<8x128xf32>
    %cst_162 = arith.constant 5.000000e-01 : f32
    %418 = vector.broadcast %cst_162 : f32 to vector<8x128xf32>
    %419 = arith.addf %417, %418 : vector<8x128xf32>
    %420 = vector.extract_strided_slice %419 {offsets = [0, 0], sizes = [8, 32], strides = [1, 1]} : vector<8x128xf32> to vector<8x32xf32>
    %421 = vector.extract_strided_slice %419 {offsets = [0, 32], sizes = [8, 32], strides = [1, 1]} : vector<8x128xf32> to vector<8x32xf32>
    %422 = vector.extract_strided_slice %415 {offsets = [0, 64], sizes = [8, 32], strides = [1, 1]} : vector<8x128xf32> to vector<8x32xf32>
    %423 = vector.extract_strided_slice %419 {offsets = [0, 96], sizes = [8, 32], strides = [1, 1]} : vector<8x128xf32> to vector<8x32xf32>
    %424 = arith.mulf %421, %404 : vector<8x32xf32>
    %425 = arith.mulf %420, %422 : vector<8x32xf32>
    %426 = arith.addf %424, %425 : vector<8x32xf32>
    %427 = math.tanh %426 : vector<8x32xf32>
    %428 = arith.mulf %423, %427 : vector<8x32xf32>
    %c8_i32_163 = arith.constant 8 : i32
    %c1_164 = arith.constant 1 : index
    %c0_165 = arith.constant 0 : index
    %c0_166 = arith.constant 0 : index
    %429 = vector.load %arg12[%c1_164, %c0_165, %c0_166] : memref<2x8x32xf32, #tpu.memory_space<vmem>>, vector<1x8x32xf32>
    %430 = vector.shape_cast %429 : vector<1x8x32xf32> to vector<8x32xf32>
    %431 = vector.shape_cast %428 : vector<8x32xf32> to vector<1x8x32xf32>
    tpu.vector_store %arg12[%c1_164, %c0_165, %c0_166], %431 {strides = array<i32>} : memref<2x8x32xf32, #tpu.memory_space<vmem>>, vector<1x8x32xf32>,
    %c1_167 = arith.constant 1 : index
    %c0_168 = arith.constant 0 : index
    %c0_169 = arith.constant 0 : index
    %432 = vector.load %arg13[%c1_167, %c0_168, %c0_169] : memref<2x8x32xf32, #tpu.memory_space<vmem>>, vector<1x8x32xf32>
    %433 = vector.shape_cast %432 : vector<1x8x32xf32> to vector<8x32xf32>
    %434 = vector.shape_cast %426 : vector<8x32xf32> to vector<1x8x32xf32>
    tpu.vector_store %arg13[%c1_167, %c0_168, %c0_169], %434 {strides = array<i32>} : memref<2x8x32xf32, #tpu.memory_space<vmem>>, vector<1x8x32xf32>,
    %c1_i32_170 = arith.constant 1 : i32
    %435 = arith.cmpi eq, %arg1, %c1_i32_170 : i32
    %436 = arith.extui %435 : i1 to i32
    %c0_i32_171 = arith.constant 0 : i32
    %437 = arith.cmpi ne, %436, %c0_i32_171 : i32
    scf.if %437 {
      %c1_172 = arith.constant 1 : index
      %c0_173 = arith.constant 0 : index
      %c0_174 = arith.constant 0 : index
      %438 = vector.load %arg12[%c1_172, %c0_173, %c0_174] : memref<2x8x32xf32, #tpu.memory_space<vmem>>, vector<1x8x32xf32>
      %439 = vector.shape_cast %438 : vector<1x8x32xf32> to vector<8x32xf32>
      %c0_175 = arith.constant 0 : index
      %c0_176 = arith.constant 0 : index
      %440 = vector.load %arg9[%c0_175, %c0_176] : memref<32x128xf32, #tpu.memory_space<vmem>>, vector<32x128xf32>
      %cst_177 = arith.constant dense<0.000000e+00> : vector<8x128xf32>
      %441 = tpu.matmul %439, %440, %cst_177 {dimension_numbers = #tpu.dot_dimension_numbers<[1], [0], [0], [1], [0, 0, 1, 1], [], []>} : vector<8x32xf32>, vector<32x128xf32>, vector<8x128xf32> -> vector<8x128xf32>
      %c0_178 = arith.constant 0 : index
      %c0_179 = arith.constant 0 : index
      %442 = vector.load %arg10[%c0_178, %c0_179] : memref<1x128xf32, #tpu.memory_space<vmem>>, vector<1x128xf32>
      %443 = vector.broadcast %442 : vector<1x128xf32> to vector<8x128xf32>
      %444 = arith.addf %441, %443 : vector<8x128xf32>
      %c0_180 = arith.constant 0 : index
      %c0_181 = arith.constant 0 : index
      %445 = vector.load %arg11[%c0_180, %c0_181] : memref<8x128xf32, #tpu.memory_space<vmem>>, vector<8x128xf32>
      tpu.vector_store %arg11[%c0_180, %c0_181], %444 {strides = array<i32>} : memref<8x128xf32, #tpu.memory_space<vmem>>, vector<8x128xf32>,
    } else {
    }
    return
  }
  func.func @transform_0(%arg0: i32, %arg1: i32) -> (i32, i32, i32) {
    %c0_i32 = arith.constant 0 : i32
    %c0_i32_0 = arith.constant 0 : i32
    return %arg1, %arg0, %c0_i32 : i32, i32, i32
  }
  func.func @transform_1(%arg0: i32, %arg1: i32) -> (i32, i32) {
    %c0_i32 = arith.constant 0 : i32
    %c0_i32_0 = arith.constant 0 : i32
    %c0_i32_1 = arith.constant 0 : i32
    return %c0_i32, %c0_i32_0 : i32, i32
  }
  func.func @transform_2(%arg0: i32, %arg1: i32) -> (i32, i32) {
    %c0_i32 = arith.constant 0 : i32
    %c0_i32_0 = arith.constant 0 : i32
    %c0_i32_1 = arith.constant 0 : i32
    return %c0_i32, %c0_i32_0 : i32, i32
  }
  func.func @transform_3(%arg0: i32, %arg1: i32) -> (i32, i32) {
    %c0_i32 = arith.constant 0 : i32
    %c0_i32_0 = arith.constant 0 : i32
    %c0_i32_1 = arith.constant 0 : i32
    return %c0_i32, %c0_i32_0 : i32, i32
  }
  func.func @transform_4(%arg0: i32, %arg1: i32) -> (i32, i32) {
    %c0_i32 = arith.constant 0 : i32
    %c0_i32_0 = arith.constant 0 : i32
    %c0_i32_1 = arith.constant 0 : i32
    return %c0_i32, %c0_i32_0 : i32, i32
  }
  func.func @transform_5(%arg0: i32, %arg1: i32) -> (i32, i32) {
    %c0_i32 = arith.constant 0 : i32
    %c0_i32_0 = arith.constant 0 : i32
    %c0_i32_1 = arith.constant 0 : i32
    return %c0_i32, %c0_i32_0 : i32, i32
  }
  func.func @transform_6(%arg0: i32, %arg1: i32) -> (i32, i32) {
    %c0_i32 = arith.constant 0 : i32
    %c0_i32_0 = arith.constant 0 : i32
    %c0_i32_1 = arith.constant 0 : i32
    return %c0_i32, %c0_i32_0 : i32, i32
  }
  func.func @transform_7(%arg0: i32, %arg1: i32) -> (i32, i32) {
    %c0_i32 = arith.constant 0 : i32
    %c0_i32_0 = arith.constant 0 : i32
    %c0_i32_1 = arith.constant 0 : i32
    return %c0_i32, %c0_i32_0 : i32, i32
  }
  func.func @transform_8(%arg0: i32, %arg1: i32) -> (i32, i32) {
    %c0_i32 = arith.constant 0 : i32
    %c0_i32_0 = arith.constant 0 : i32
    %c0_i32_1 = arith.constant 0 : i32
    return %c0_i32, %c0_i32_0 : i32, i32
  }
  func.func @transform_9(%arg0: i32, %arg1: i32) -> (i32, i32) {
    %c0_i32 = arith.constant 0 : i32
    %c0_i32_0 = arith.constant 0 : i32
    return %arg0, %c0_i32 : i32, i32
  }
}

</mosaic_0001>

<llo_original>
// kernel: tpu_custom_call.1
$region0: #{tpu_custom_call.1}
  #allocation0 [shape = 'u32[]', space=smem, size = 0x4, offset = 0x4, fixed_abs, tag = 'smem constant byte address 0x4 - core index']
  #allocation1 [shape = 'u32[144,128]{1,0:T(1,128)}', space=vmem, size = 0x12000, scoped, tag = 'internal scratch']
  #allocation2 [shape = 'f32[2,8,32]{2,1,0:T(8,128)}', space=vmem, size = 0x2000, scoped, tag = 'scratch operand']
  #allocation3 [shape = 'f32[2,8,32]{2,1,0:T(8,128)}', space=vmem, size = 0x2000, scoped, tag = 'scratch operand']
  #allocation4 [shape = 'bf16[8,8,32]{2,1,0:T(8,128)(2,1)}', space=vmem, size = 0x4000, scoped, tag = 'scratch operand']
  #allocation5 [shape = 'f32[8,8,128]{2,1,0:T(8,128)}', space=vmem, size = 0x8000, scoped, tag = 'scratch operand']
  %s0 = inlined_call_operand.hbm [shape: bf16[16,8,16], index: 0, kind: input, shape index: {}]
  %s1 = inlined_call_operand.hbm [shape: bf16[16,128], index: 1, kind: input, shape index: {}]
  %s2 = inlined_call_operand.hbm [shape: bf16[32,128], index: 2, kind: input, shape index: {}]
  %s3 = inlined_call_operand.vmem [shape: f32[1,128], index: 3, kind: input, shape index: {}]
  %s4 = inlined_call_operand.hbm [shape: bf16[32,128], index: 4, kind: input, shape index: {}]
  %s5 = inlined_call_operand.hbm [shape: bf16[32,128], index: 5, kind: input, shape index: {}]
  %s6 = inlined_call_operand.vmem [shape: f32[1,128], index: 6, kind: input, shape index: {}]
  %s7 = inlined_call_operand.hbm [shape: f32[32,128], index: 7, kind: input, shape index: {}]
  %s8 = inlined_call_operand.vmem [shape: f32[1,128], index: 8, kind: input, shape index: {}]
  %s9 = inlined_call_operand.hbm [shape: f32[8,128], index: 9, kind: output, shape index: {}]
  %s10 = sld [smem:[#allocation0]]
  $region101: #{tpu_custom_call.1} parent=0
    _
  %s12 = ssub.s32 1, %s10
  %s13 = scalar_select 0, %s12, %s10
  $region1: #{tpu_custom_call.1} parent=0
    #allocation6 [shape = 'u8[32768]{0}', space=vmem, size = 0x8000, scoped, tag = 'input window, operand 0']
    #allocation7 [shape = 's32[2]{0}', space=sflag, size = 0x8, scoped, tag = 'scoped memory for tpu_custom_call.1']
    #allocation8 [shape = 's32[2]{0}', space=sflag, size = 0x8, scoped, tag = 'scoped memory for tpu_custom_call.1']
    #allocation9 [shape = 'u8[4096]{0}', space=vmem, size = 0x1000, scoped, tag = 'input window, operand 1, single buffered']
    #allocation10 [shape = 's32[1]{0}', space=sflag, size = 0x4, scoped, tag = 'scoped memory for tpu_custom_call.1']
    #allocation11 [shape = 'u8[8192]{0}', space=vmem, size = 0x2000, scoped, tag = 'input window, operand 2, single buffered']
    #allocation12 [shape = 'u8[8192]{0}', space=vmem, size = 0x2000, scoped, tag = 'input window, operand 4, single buffered']
    #allocation13 [shape = 's32[1]{0}', space=sflag, size = 0x4, scoped, tag = 'scoped memory for tpu_custom_call.1']
    #allocation14 [shape = 'u8[8192]{0}', space=vmem, size = 0x2000, scoped, tag = 'input window, operand 5, single buffered']
    #allocation15 [shape = 'u8[16384]{0}', space=vmem, size = 0x4000, scoped, tag = 'input window, operand 7, single buffered']
    #allocation16 [shape = 's32[1]{0}', space=sflag, size = 0x4, scoped, tag = 'scoped memory for tpu_custom_call.1']
    #allocation17 [shape = 'u8[4096]{0}', space=vmem, size = 0x1000, scoped, tag = 'output window, operand 0, single buffered']
    %14 = vsyncpa [#allocation7], 0
    %s15 = scalar_lea.sflag [#allocation7], 1
    %16 = vsyncpa %s15, 0
    %17 = vsyncpa [#allocation10], 0
    %18 = vsyncpa [#allocation13], 0
    %19 = vsyncpa [#allocation16], 0
    %20 = vsyncpa [#allocation8], 0
    loop: start=0, step=1, limit=4
    $region2: #{tpu_custom_call.1} parent=1 // loop_pre_header
      _
    $region3: #{tpu_custom_call.1} parent=1 // loop_header
      %s22 = sphi 0, %s26
      %p23 = scmp.ge.s32.totalorder %s22, 4
      %s29 = sphi 0, %s41
      %s30 = sphi 0, %s37
      %s31 = sphi 0, %s29
      %s32 = sphi 0, %s30
      %s33 = sphi 0, %s31
      %s34 = sphi 0, %s32
      %s46 = sphi 0, %s48
      %s49 = sphi 0, %s46
      %s50 = sphi 0, %s49
      %s66 = sphi 0, %s50
      %s70 = sphi 0, %s70
      %s72 = sphi 0, %s70
      %s73 = sphi 0, %s72
      %s87 = sphi 0, %s73
      %s91 = sphi 0, %s91
      %s93 = sphi 0, %s91
      %s94 = sphi 0, %s93
      %s108 = sphi 0, %s94
      %s112 = sphi 0, %s112
      %s114 = sphi 0, %s112
      %s115 = sphi 0, %s114
      %s129 = sphi 0, %s115
      %s133 = sphi 0, %s133
      %s135 = sphi 0, %s133
      %s136 = sphi 0, %s135
      %s150 = sphi 0, %s136
      %s154 = sphi 0, %s154
      %s156 = sphi 0, %s154
      %s157 = sphi 0, %s156
      %s171 = sphi 0, %s157
      %s175 = sphi 0, %s175
      %s177 = sphi 0, %s175
      %s178 = sphi 0, %s177
      %s192 = sphi 0, %s178
      %s196 = sphi 0, %s196
      %s198 = sphi 0, %s196
      %s199 = sphi 0, %s198
      %s213 = sphi 0, %s199
      %s217 = sphi 0, %s217
      %s219 = sphi 0, %s217
      %s220 = sphi 0, %s219
      %s234 = sphi 0, %s220
      %s240 = sphi 0, %s242
      %s243 = sphi 0, %s240
      %s244 = sphi 0, %s243
      %s260 = sphi 0, %s244
    $region4: #{tpu_custom_call.1} parent=1 // loop_header_branch
      %25 = sbr.rel (%p23) target = $region8
    $region5: #{tpu_custom_call.1} parent=1 // loop_body
      %s27 = ssub.s32 %s22, 1
      %s28 = ssub.s32 %s22, 2
      %s35 = sadd.s32 1, %s30
      %p36 = scmp.ge.s32.totalorder %s35, 2
      %s37 = scalar_select %p36, 0, %s35
      %s38 = sadd.s32 1, %s29
      %s39 = scalar_select %p36, %s38, %s29
      %p40 = scmp.ge.s32.totalorder %s39, 1
      %s41 = scalar_select %p40, 0, %s39
      %s42 = ssub.s32 %s30, %s37
      %s43 = ssub.s32 %s29, %s41
      %s44 = sor.u32 %s42, %s43
      %p45 = scmp.eq.s32.totalorder %s44, 0
      %s47 = sadd.s32 %s46, 1
      %s48 = scalar_select %p45, %s46, %s47
      %p51 = pneg %p45
      %p52 = scmp.eq.s32.totalorder %s22, 1
      %p53 = por %p51, %p52
      %p54 = scmp.ne.s32.totalorder %s46, %s49
      %p55 = scmp.eq.s32.totalorder %s22, 0
      %p56 = por %p54, %p55
      %p57 = scmp.ne.s32.totalorder %s46, %s49
      %p58 = scmp.eq.s32.totalorder %s27, 1
      %p59 = por %p57, %p58
      %p60 = scmp.ne.s32.totalorder %s49, %s50
      %p61 = scmp.eq.s32.totalorder %s27, 0
      %p62 = por %p60, %p61
      %p63 = scmp.ne.s32.totalorder %s49, %s50
      %p64 = scmp.eq.s32.totalorder %s28, 1
      %p65 = por %p63, %p64
      %p67 = scmp.ne.s32.totalorder %s50, %s66
      %p68 = scmp.eq.s32.totalorder %s28, 0
      %p69 = por %p67, %p68
      %s71 = sadd.s32 %s70, 1
      %p74 = scmp.eq.s32.totalorder %s22, 1
      %p75 = scmp.ne.s32.totalorder %s70, %s72
      %p76 = scmp.eq.s32.totalorder %s22, 0
      %p77 = por %p75, %p76
      %p78 = scmp.ne.s32.totalorder %s70, %s72
      %p79 = scmp.eq.s32.totalorder %s27, 1
      %p80 = por %p78, %p79
      %p81 = scmp.ne.s32.totalorder %s72, %s73
      %p82 = scmp.eq.s32.totalorder %s27, 0
      %p83 = por %p81, %p82
      %p84 = scmp.ne.s32.totalorder %s72, %s73
      %p85 = scmp.eq.s32.totalorder %s28, 1
      %p86 = por %p84, %p85
      %p88 = scmp.ne.s32.totalorder %s73, %s87
      %p89 = scmp.eq.s32.totalorder %s28, 0
      %p90 = por %p88, %p89
      %s92 = sadd.s32 %s91, 1
      %p95 = scmp.eq.s32.totalorder %s22, 1
      %p96 = scmp.ne.s32.totalorder %s91, %s93
      %p97 = scmp.eq.s32.totalorder %s22, 0
      %p98 = por %p96, %p97
      %p99 = scmp.ne.s32.totalorder %s91, %s93
      %p100 = scmp.eq.s32.totalorder %s27, 1
      %p101 = por %p99, %p100
      %p102 = scmp.ne.s32.totalorder %s93, %s94
      %p103 = scmp.eq.s32.totalorder %s27, 0
      %p104 = por %p102, %p103
      %p105 = scmp.ne.s32.totalorder %s93, %s94
      %p106 = scmp.eq.s32.totalorder %s28, 1
      %p107 = por %p105, %p106
      %p109 = scmp.ne.s32.totalorder %s94, %s108
      %p110 = scmp.eq.s32.totalorder %s28, 0
      %p111 = por %p109, %p110
      %s113 = sadd.s32 %s112, 1
      %p116 = scmp.eq.s32.totalorder %s22, 1
      %p117 = scmp.ne.s32.totalorder %s112, %s114
      %p118 = scmp.eq.s32.totalorder %s22, 0
      %p119 = por %p117, %p118
      %p120 = scmp.ne.s32.totalorder %s112, %s114
      %p121 = scmp.eq.s32.totalorder %s27, 1
      %p122 = por %p120, %p121
      %p123 = scmp.ne.s32.totalorder %s114, %s115
      %p124 = scmp.eq.s32.totalorder %s27, 0
      %p125 = por %p123, %p124
      %p126 = scmp.ne.s32.totalorder %s114, %s115
      %p127 = scmp.eq.s32.totalorder %s28, 1
      %p128 = por %p126, %p127
      %p130 = scmp.ne.s32.totalorder %s115, %s129
      %p131 = scmp.eq.s32.totalorder %s28, 0
      %p132 = por %p130, %p131
      %s134 = sadd.s32 %s133, 1
      %p137 = scmp.eq.s32.totalorder %s22, 1
      %p138 = scmp.ne.s32.totalorder %s133, %s135
      %p139 = scmp.eq.s32.totalorder %s22, 0
      %p140 = por %p138, %p139
      %p141 = scmp.ne.s32.totalorder %s133, %s135
      %p142 = scmp.eq.s32.totalorder %s27, 1
      %p143 = por %p141, %p142
      %p144 = scmp.ne.s32.totalorder %s135, %s136
      %p145 = scmp.eq.s32.totalorder %s27, 0
      %p146 = por %p144, %p145
      %p147 = scmp.ne.s32.totalorder %s135, %s136
      %p148 = scmp.eq.s32.totalorder %s28, 1
      %p149 = por %p147, %p148
      %p151 = scmp.ne.s32.totalorder %s136, %s150
      %p152 = scmp.eq.s32.totalorder %s28, 0
      %p153 = por %p151, %p152
      %s155 = sadd.s32 %s154, 1
      %p158 = scmp.eq.s32.totalorder %s22, 1
      %p159 = scmp.ne.s32.totalorder %s154, %s156
      %p160 = scmp.eq.s32.totalorder %s22, 0
      %p161 = por %p159, %p160
      %p162 = scmp.ne.s32.totalorder %s154, %s156
      %p163 = scmp.eq.s32.totalorder %s27, 1
      %p164 = por %p162, %p163
      %p165 = scmp.ne.s32.totalorder %s156, %s157
      %p166 = scmp.eq.s32.totalorder %s27, 0
      %p167 = por %p165, %p166
      %p168 = scmp.ne.s32.totalorder %s156, %s157
      %p169 = scmp.eq.s32.totalorder %s28, 1
      %p170 = por %p168, %p169
      %p172 = scmp.ne.s32.totalorder %s157, %s171
      %p173 = scmp.eq.s32.totalorder %s28, 0
      %p174 = por %p172, %p173
      %s176 = sadd.s32 %s175, 1
      %p179 = scmp.eq.s32.totalorder %s22, 1
      %p180 = scmp.ne.s32.totalorder %s175, %s177
      %p181 = scmp.eq.s32.totalorder %s22, 0
      %p182 = por %p180, %p181
      %p183 = scmp.ne.s32.totalorder %s175, %s177
      %p184 = scmp.eq.s32.totalorder %s27, 1
      %p185 = por %p183, %p184
      %p186 = scmp.ne.s32.totalorder %s177, %s178
      %p187 = scmp.eq.s32.totalorder %s27, 0
      %p188 = por %p186, %p187
      %p189 = scmp.ne.s32.totalorder %s177, %s178
      %p190 = scmp.eq.s32.totalorder %s28, 1
      %p191 = por %p189, %p190
      %p193 = scmp.ne.s32.totalorder %s178, %s192
      %p194 = scmp.eq.s32.totalorder %s28, 0
      %p195 = por %p193, %p194
      %s197 = sadd.s32 %s196, 1
      %p200 = scmp.eq.s32.totalorder %s22, 1
      %p201 = scmp.ne.s32.totalorder %s196, %s198
      %p202 = scmp.eq.s32.totalorder %s22, 0
      %p203 = por %p201, %p202
      %p204 = scmp.ne.s32.totalorder %s196, %s198
      %p205 = scmp.eq.s32.totalorder %s27, 1
      %p206 = por %p204, %p205
      %p207 = scmp.ne.s32.totalorder %s198, %s199
      %p208 = scmp.eq.s32.totalorder %s27, 0
      %p209 = por %p207, %p208
      %p210 = scmp.ne.s32.totalorder %s198, %s199
      %p211 = scmp.eq.s32.totalorder %s28, 1
      %p212 = por %p210, %p211
      %p214 = scmp.ne.s32.totalorder %s199, %s213
      %p215 = scmp.eq.s32.totalorder %s28, 0
      %p216 = por %p214, %p215
      %s218 = sadd.s32 %s217, 1
      %p221 = scmp.eq.s32.totalorder %s22, 1
      %p222 = scmp.ne.s32.totalorder %s217, %s219
      %p223 = scmp.eq.s32.totalorder %s22, 0
      %p224 = por %p222, %p223
      %p225 = scmp.ne.s32.totalorder %s217, %s219
      %p226 = scmp.eq.s32.totalorder %s27, 1
      %p227 = por %p225, %p226
      %p228 = scmp.ne.s32.totalorder %s219, %s220
      %p229 = scmp.eq.s32.totalorder %s27, 0
      %p230 = por %p228, %p229
      %p231 = scmp.ne.s32.totalorder %s219, %s220
      %p232 = scmp.eq.s32.totalorder %s28, 1
      %p233 = por %p231, %p232
      %p235 = scmp.ne.s32.totalorder %s220, %s234
      %p236 = scmp.eq.s32.totalorder %s28, 0
      %p237 = por %p235, %p236
      %s238 = ssub.s32 %s29, %s41
      %p239 = scmp.eq.s32.totalorder %s238, 0
      %s241 = sadd.s32 %s240, 1
      %s242 = scalar_select %p239, %s240, %s241
      %p245 = pneg %p239
      %p246 = scmp.eq.s32.totalorder %s22, 1
      %p247 = por %p245, %p246
      %p248 = scmp.ne.s32.totalorder %s240, %s243
      %p249 = scmp.eq.s32.totalorder %s22, 0
      %p250 = por %p248, %p249
      %p251 = scmp.ne.s32.totalorder %s240, %s243
      %p252 = scmp.eq.s32.totalorder %s27, 1
      %p253 = por %p251, %p252
      %p254 = scmp.ne.s32.totalorder %s243, %s244
      %p255 = scmp.eq.s32.totalorder %s27, 0
      %p256 = por %p254, %p255
      %p257 = scmp.ne.s32.totalorder %s243, %s244
      %p258 = scmp.eq.s32.totalorder %s28, 1
      %p259 = por %p257, %p258
      %p261 = scmp.ne.s32.totalorder %s244, %s260
      %p262 = scmp.eq.s32.totalorder %s28, 0
      %p263 = por %p261, %p262
      %p264 = scmp.le.s32.totalorder 1, %s22
      %p265 = scmp.lt.s32.totalorder %s22, 3
      %p266 = pnand %p264, %p265
      %p267 = pneg %p266
      // Predicated region
      $region9: #{tpu_custom_call.1} parent=5 // pred_check
        _
      $region10: #{tpu_custom_call.1} parent=5 // pred_check_branch
        %269 = sbr.rel (%p266) target = $region12
      $region11: #{tpu_custom_call.1} parent=5 // pred_region
        %s270 = ssub.s32 %s22, 1
        // Predicated region
        $region13: #{tpu_custom_call.1} parent=11 // pred_check
          %p271 = pneg %p83
        $region14: #{tpu_custom_call.1} parent=11 // pred_check_branch
          %273 = sbr.rel (%p271) target = $region16
        $region15: #{tpu_custom_call.1} parent=11 // pred_region
          %s275 = ssub.s32 128, 128
          %276 = vsyncadd [#allocation10], %s275
          %s277 = sshll.u32 [#allocation9], 4
          %s278 = int_to_ptr.vmem [resolvable:$true] %s277
          %283 = dma.hbm_to_vmem [thread:$0]  %s1, 128, %s278, [#allocation10], 64, 64, 4
        $region16: #{tpu_custom_call.1} parent=11 // pred_fallthru
          _
        // Predicated region
        $region17: #{tpu_custom_call.1} parent=11 // pred_check
          %p284 = pneg %p104
        $region18: #{tpu_custom_call.1} parent=11 // pred_check_branch
          %286 = sbr.rel (%p284) target = $region20
        $region19: #{tpu_custom_call.1} parent=11 // pred_region
          %s288 = ssub.s32 256, 256
          %289 = vsyncadd [#allocation10], %s288
          %s290 = sshll.u32 [#allocation11], 4
          %s291 = int_to_ptr.vmem [resolvable:$true] %s290
          %296 = dma.hbm_to_vmem [thread:$0]  %s2, 256, %s291, [#allocation10], 64, 64, 4
        $region20: #{tpu_custom_call.1} parent=11 // pred_fallthru
          _
        // Predicated region
        $region21: #{tpu_custom_call.1} parent=11 // pred_check
          %p297 = pneg %p125
        $region22: #{tpu_custom_call.1} parent=11 // pred_check_branch
          %299 = sbr.rel (%p297) target = $region24
        $region23: #{tpu_custom_call.1} parent=11 // pred_region
          _
        $region24: #{tpu_custom_call.1} parent=11 // pred_fallthru
          _
        // Predicated region
        $region25: #{tpu_custom_call.1} parent=11 // pred_check
          %p300 = pneg %p146
        $region26: #{tpu_custom_call.1} parent=11 // pred_check_branch
          %302 = sbr.rel (%p300) target = $region28
        $region27: #{tpu_custom_call.1} parent=11 // pred_region
          %s304 = ssub.s32 256, 256
          %305 = vsyncadd [#allocation13], %s304
          %s306 = sshll.u32 [#allocation12], 4
          %s307 = int_to_ptr.vmem [resolvable:$true] %s306
          %312 = dma.hbm_to_vmem [thread:$0]  %s4, 256, %s307, [#allocation13], 64, 64, 4
        $region28: #{tpu_custom_call.1} parent=11 // pred_fallthru
          _
        // Predicated region
        $region29: #{tpu_custom_call.1} parent=11 // pred_check
          %p313 = pneg %p167
        $region30: #{tpu_custom_call.1} parent=11 // pred_check_branch
          %315 = sbr.rel (%p313) target = $region32
        $region31: #{tpu_custom_call.1} parent=11 // pred_region
          %s317 = ssub.s32 256, 256
          %318 = vsyncadd [#allocation13], %s317
          %s319 = sshll.u32 [#allocation14], 4
          %s320 = int_to_ptr.vmem [resolvable:$true] %s319
          %325 = dma.hbm_to_vmem [thread:$0]  %s5, 256, %s320, [#allocation13], 64, 64, 4
        $region32: #{tpu_custom_call.1} parent=11 // pred_fallthru
          _
        // Predicated region
        $region33: #{tpu_custom_call.1} parent=11 // pred_check
          %p326 = pneg %p188
        $region34: #{tpu_custom_call.1} parent=11 // pred_check_branch
          %328 = sbr.rel (%p326) target = $region36
        $region35: #{tpu_custom_call.1} parent=11 // pred_region
          _
        $region36: #{tpu_custom_call.1} parent=11 // pred_fallthru
          _
        // Predicated region
        $region37: #{tpu_custom_call.1} parent=11 // pred_check
          %p329 = pneg %p209
        $region38: #{tpu_custom_call.1} parent=11 // pred_check_branch
          %331 = sbr.rel (%p329) target = $region40
        $region39: #{tpu_custom_call.1} parent=11 // pred_region
          %s333 = ssub.s32 512, 512
          %334 = vsyncadd [#allocation16], %s333
          %s335 = sshll.u32 [#allocation15], 4
          %s336 = int_to_ptr.vmem [resolvable:$true] %s335
          %341 = dma.hbm_to_vmem [thread:$0]  %s7, 512, %s336, [#allocation16], 128, 128, 8
        $region40: #{tpu_custom_call.1} parent=11 // pred_fallthru
          _
        // Predicated region
        $region41: #{tpu_custom_call.1} parent=11 // pred_check
          %p342 = pneg %p230
        $region42: #{tpu_custom_call.1} parent=11 // pred_check_branch
          %344 = sbr.rel (%p342) target = $region44
        $region43: #{tpu_custom_call.1} parent=11 // pred_region
          _
        $region44: #{tpu_custom_call.1} parent=11 // pred_fallthru
          _
      $region12: #{tpu_custom_call.1} parent=5 // pred_fallthru
        _
      %p345 = scmp.lt.s32.totalorder %s22, 2
      // Predicated region
      $region45: #{tpu_custom_call.1} parent=5 // pred_check
        %p346 = pneg %p345
      $region46: #{tpu_custom_call.1} parent=5 // pred_check_branch
        %348 = sbr.rel (%p346) target = $region48
      $region47: #{tpu_custom_call.1} parent=5 // pred_region
        // Predicated region
        $region49: #{tpu_custom_call.1} parent=47 // pred_check
          %p349 = pneg %p56
        $region50: #{tpu_custom_call.1} parent=47 // pred_check_branch
          %351 = sbr.rel (%p349) target = $region52
        $region51: #{tpu_custom_call.1} parent=47 // pred_region
          %s352 = sand.u32 %s46, 1
          %s353 = scalar_lea.sflag [#allocation7], %s352
          %s354 = sand.u32 %s46, 1
          %s355 = smul.addr %s354, 32
          %s356 = scalar_lea.vmem [#allocation6], %s355
          %s357 = smul.u32 8, %s30
          %s359 = ssub.s32 512, 512
          %360 = vsyncadd %s353, %s359
          %s361 = sadd.s32 %s29, %s357
          %s362 = smul.addr %s361, 64
          %s363 = scalar_lea.hbm %s0, %s362
          %s364 = sshll.u32 %s356, 4
          %s365 = int_to_ptr.vmem [resolvable:$true] %s364
          %370 = dma.hbm_to_vmem [thread:$0]  %s363, 512, %s365, %s353, 64, 64, 4
        $region52: #{tpu_custom_call.1} parent=47 // pred_fallthru
          _
      $region48: #{tpu_custom_call.1} parent=5 // pred_fallthru
        _
      %p371 = scmp.le.s32.totalorder 1, %s22
      %p372 = scmp.lt.s32.totalorder %s22, 3
      %p373 = pnand %p371, %p372
      %p374 = pneg %p373
      // Predicated region
      $region53: #{tpu_custom_call.1} parent=5 // pred_check
        _
      $region54: #{tpu_custom_call.1} parent=5 // pred_check_branch
        %376 = sbr.rel (%p373) target = $region56
      $region55: #{tpu_custom_call.1} parent=5 // pred_region
        %s377 = ssub.s32 %s22, 1
        %s378 = sand.u32 %s49, 1
        %s379 = scalar_lea.sflag [#allocation7], %s378
        %s380 = sand.u32 %s49, 1
        %s381 = smul.addr %s380, 32
        %s382 = scalar_lea.vmem [#allocation6], %s381
        // Predicated region
        $region57: #{tpu_custom_call.1} parent=55 // pred_check
          %p383 = pneg %p62
        $region58: #{tpu_custom_call.1} parent=55 // pred_check_branch
          %385 = sbr.rel (%p383) target = $region60
        $region59: #{tpu_custom_call.1} parent=55 // pred_region
          %386 = dma.done %s379, 512
        $region60: #{tpu_custom_call.1} parent=55 // pred_fallthru
          _
        // Predicated region
        $region61: #{tpu_custom_call.1} parent=55 // pred_check
          %p387 = pneg %p83
        $region62: #{tpu_custom_call.1} parent=55 // pred_check_branch
          %389 = sbr.rel (%p387) target = $region64
        $region63: #{tpu_custom_call.1} parent=55 // pred_region
          %390 = dma.done [#allocation10], 128
        $region64: #{tpu_custom_call.1} parent=55 // pred_fallthru
          _
        // Predicated region
        $region65: #{tpu_custom_call.1} parent=55 // pred_check
          %p391 = pneg %p104
        $region66: #{tpu_custom_call.1} parent=55 // pred_check_branch
          %393 = sbr.rel (%p391) target = $region68
        $region67: #{tpu_custom_call.1} parent=55 // pred_region
          %394 = dma.done [#allocation10], 256
        $region68: #{tpu_custom_call.1} parent=55 // pred_fallthru
          _
        // Predicated region
        $region69: #{tpu_custom_call.1} parent=55 // pred_check
          %p395 = pneg %p146
        $region70: #{tpu_custom_call.1} parent=55 // pred_check_branch
          %397 = sbr.rel (%p395) target = $region72
        $region71: #{tpu_custom_call.1} parent=55 // pred_region
          %398 = dma.done [#allocation13], 256
        $region72: #{tpu_custom_call.1} parent=55 // pred_fallthru
          _
        // Predicated region
        $region73: #{tpu_custom_call.1} parent=55 // pred_check
          %p399 = pneg %p167
        $region74: #{tpu_custom_call.1} parent=55 // pred_check_branch
          %401 = sbr.rel (%p399) target = $region76
        $region75: #{tpu_custom_call.1} parent=55 // pred_region
          %402 = dma.done [#allocation13], 256
        $region76: #{tpu_custom_call.1} parent=55 // pred_fallthru
          _
        // Predicated region
        $region77: #{tpu_custom_call.1} parent=55 // pred_check
          %p403 = pneg %p209
        $region78: #{tpu_custom_call.1} parent=55 // pred_check_branch
          %405 = sbr.rel (%p403) target = $region80
        $region79: #{tpu_custom_call.1} parent=55 // pred_region
          %406 = dma.done [#allocation16], 512
        $region80: #{tpu_custom_call.1} parent=55 // pred_fallthru
          _
        %s407 = sand.u32 %s49, 1
        %s408 = scalar_lea.sflag [#allocation7], %s407
        %s409 = sand.u32 %s49, 1
        %s410 = smul.addr %s409, 32
        %s411 = scalar_lea.vmem [#allocation6], %s410
        %p412 = pneg %p62
        %p413 = pneg %p59
        %p414 = pneg %p83
        %p415 = pneg %p80
        %p416 = pneg %p104
        %p417 = pneg %p101
        %p418 = pneg %p125
        %p419 = pneg %p122
        %p420 = pneg %p146
        %p421 = pneg %p143
        %p422 = pneg %p167
        %p423 = pneg %p164
        %p424 = pneg %p188
        %p425 = pneg %p185
        %p426 = pneg %p209
        %p427 = pneg %p206
        %p428 = pneg %p230
        %p429 = pneg %p227
        %p430 = pneg %p256
        %p431 = pneg %p253
        %s432 = smul.u32 8, %s32
        %p434 = scmp.eq.s32.totalorder %s32, 0
        // Predicated region
        $region81: #{tpu_custom_call.1} parent=55 // pred_check
          %p435 = pneg %p434
        $region82: #{tpu_custom_call.1} parent=55 // pred_check_branch
          %437 = sbr.rel (%p435) target = $region84
        $region83: #{tpu_custom_call.1} parent=55 // pred_region
          %vm438 = vcmask 261120
          %439 = vst.msk [vmem:[#allocation2] sm:$0xff] %vm438, 0.0
          %440 = vst.msk [vmem:[#allocation2 + $0x8] sm:$0xff] %vm438, 0.0
          %441 = vst.msk [vmem:[#allocation3] sm:$0xff] %vm438, 0.0
          %442 = vst.msk [vmem:[#allocation3 + $0x8] sm:$0xff] %vm438, 0.0
        $region84: #{tpu_custom_call.1} parent=55 // pred_fallthru
          _
        %v443 = vld [vmem:[%s382] sm:$0xf]
        %v444 = vld [vmem:[%s382 + $0x4] sm:$0xf]
        %v445 = vld [vmem:[%s382 + $0x8] sm:$0xf]
        %v446 = vld [vmem:[%s382 + $0xc] sm:$0xf]
        %v447 = vld [vmem:[%s382 + $0x10] sm:$0xf]
        %v448 = vld [vmem:[%s382 + $0x14] sm:$0xf]
        %v449 = vld [vmem:[%s382 + $0x18] sm:$0xf]
        %v450 = vld [vmem:[%s382 + $0x1c] sm:$0xf]
        %v451 = vld [vmem:[#allocation9] sm:$0xf]
        %v452 = vld [vmem:[#allocation9 + $0x4] sm:$0xf]
        %v453 = vld [vmem:[%s3] sm:$0x1]
        %v455 = vlaneseq
        %v456 = vshrl.u32 %v455, 7
        %v457 = vsub.s32 0, %v456
        %v458 = vrot.slane %v453, %v457
        %v468 = vunpack.c.l.b16 %v443
        %v469 = vunpack.c.l.b16 %v444
        %v470 = vunpack.c.l.b16 %v445
        %v471 = vunpack.c.l.b16 %v446
        %v472 = vunpack.c.l.b16 %v447
        %v473 = vunpack.c.l.b16 %v448
        %v474 = vunpack.c.l.b16 %v449
        %v475 = vunpack.c.l.b16 %v450
        %v476 = vpack.c.b16 %v469, %v468
        %v477 = vpack.c.b16 %v471, %v470
        %v478 = vpack.c.b16 %v473, %v472
        %v479 = vpack.c.b16 %v475, %v474
        %v482 = vunpack.c.l.b16 %v451
        %v483 = vunpack.c.l.b16 %v452
        %v484 = vpack.c.b16 %v483, %v482
        %vm486 = vcmask 130048
        %v488 = vsel %vm486, %v476, 0
        %v491 = vsel %vm486, %v477, 0
        %v494 = vsel %vm486, %v478, 0
        %v497 = vsel %vm486, %v479, 0
        %499 = vmatprep.subr.bf16.mxu0 0
        %500 = vmatpush1.bf16.msra.mxu0 0
        %501 = vmatprep.subr.bf16.mxu0 0
        %502 = vmatpush1.bf16.msra.mxu0 0
        %503 = vmatprep.subr.bf16.mxu0 0
        %504 = vmatpush1.bf16.msra.mxu0 0
        %505 = vmatprep.subr.bf16.mxu0 0
        %506 = vmatpush1.bf16.msra.mxu0 0
        %507 = vmatprep.subr.bf16.mxu0 0
        %508 = vmatpush1.bf16.msra.mxu0 0
        %509 = vmatprep.subr.bf16.mxu0 0
        %510 = vmatpush1.bf16.msra.mxu0 0
        %511 = vmatprep.subr.bf16.mxu0 0
        %512 = vmatpush1.bf16.msra.mxu0 0
        %513 = vmatprep.subr.bf16.mxu0 0
        %514 = vmatpush1.bf16.msra.mxu0 %v484
        %515 = vmatprep.subr.bf16.mxu0 0
        %516 = vmatpush2.bf16.msra.mxu0 0
        %517 = vmatprep.subr.bf16.mxu0 0
        %518 = vmatpush2.bf16.msra.mxu0 0
        %519 = vmatprep.subr.bf16.mxu0 0
        %520 = vmatpush2.bf16.msra.mxu0 0
        %521 = vmatprep.subr.bf16.mxu0 0
        %522 = vmatpush2.bf16.msra.mxu0 0
        %523 = vmatprep.subr.bf16.mxu0 0
        %524 = vmatpush2.bf16.msra.mxu0 0
        %525 = vmatprep.subr.bf16.mxu0 0
        %526 = vmatpush2.bf16.msra.mxu0 0
        %527 = vmatprep.subr.bf16.mxu0 0
        %528 = vmatpush2.bf16.msra.mxu0 0
        %529 = vmatprep.subr.bf16.mxu0 0
        %530 = vmatpush2.bf16.msra.mxu0 0
        %531 = vmatprep.mubr.bf16.mxu0 0
        %532 = vmatmul.mubr.bf16.gmra.mxu0 %v488
        %v533 = vpop.f32.mrf.mxu0
        %v534 = vadd.f32 %v458, %v533
        %v535 = vpop.f32.mrf.mxu0
        %v536 = vpop.f32.mrf.mxu0
        %v537 = vadd.f32 %v458, %v536
        %v538 = vpop.f32.mrf.mxu0
        %539 = vmatprep.mubr.bf16.mxu0 0
        %540 = vmatmul.mubr.bf16.gmra.mxu0 %v491
        %v541 = vpop.f32.mrf.mxu0
        %v542 = vadd.f32 %v458, %v541
        %v543 = vpop.f32.mrf.mxu0
        %v544 = vpop.f32.mrf.mxu0
        %v545 = vadd.f32 %v458, %v544
        %v546 = vpop.f32.mrf.mxu0
        %547 = vmatprep.mubr.bf16.mxu0 0
        %548 = vmatmul.mubr.bf16.gmra.mxu0 %v494
        %v549 = vpop.f32.mrf.mxu0
        %v550 = vadd.f32 %v458, %v549
        %v551 = vpop.f32.mrf.mxu0
        %v552 = vpop.f32.mrf.mxu0
        %v553 = vadd.f32 %v458, %v552
        %v554 = vpop.f32.mrf.mxu0
        %555 = vmatprep.mubr.bf16.mxu0 0
        %556 = vmatmul.mubr.bf16.gmra.mxu0 %v497
        %v557 = vpop.f32.mrf.mxu0
        %v558 = vadd.f32 %v458, %v557
        %v559 = vpop.f32.mrf.mxu0
        %v560 = vpop.f32.mrf.mxu0
        %v561 = vadd.f32 %v458, %v560
        %v562 = vpop.f32.mrf.mxu0
        %563 = vdwg.mxu0
        %564 = vst [vmem:[#allocation5] sm:$0xff] %v534
        %565 = vst [vmem:[#allocation5 + $0x8] sm:$0xff] %v537
        %566 = vst [vmem:[#allocation5 + $0x10] sm:$0xff] %v542
        %567 = vst [vmem:[#allocation5 + $0x18] sm:$0xff] %v545
        %568 = vst [vmem:[#allocation5 + $0x20] sm:$0xff] %v550
        %569 = vst [vmem:[#allocation5 + $0x28] sm:$0xff] %v553
        %570 = vst [vmem:[#allocation5 + $0x30] sm:$0xff] %v558
        %571 = vst [vmem:[#allocation5 + $0x38] sm:$0xff] %v561
        %v572 = vld [vmem:[#allocation11] sm:$0xf]
        %v573 = vld [vmem:[#allocation11 + $0x4] sm:$0xf]
        %v574 = vld [vmem:[#allocation11 + $0x8] sm:$0xf]
        %v575 = vld [vmem:[#allocation11 + $0xc] sm:$0xf]
        %v576 = vld [vmem:[#allocation2] sm:$0xff]
        %v577 = vld [vmem:[#allocation3] sm:$0xff]
        %v578 = vld [vmem:[#allocation5] sm:$0xff]
        %v579 = vpack.c.bf16 %v576, %v576
        %v584 = vunpack.c.l.b16 %v572
        %v585 = vunpack.c.l.b16 %v573
        %v586 = vunpack.c.l.b16 %v574
        %v587 = vunpack.c.l.b16 %v575
        %v588 = vpack.c.b16 %v585, %v584
        %v589 = vpack.c.b16 %v587, %v586
        %vm592 = vcmask 261120
        %v594 = vsel %vm592, %v579, 0
        %596 = vmatprep.subr.bf16.mxu0 0
        %597 = vmatpush1.bf16.msra.mxu0 0
        %598 = vmatprep.subr.bf16.mxu0 0
        %599 = vmatpush1.bf16.msra.mxu0 0
        %600 = vmatprep.subr.bf16.mxu0 0
        %601 = vmatpush1.bf16.msra.mxu0 0
        %602 = vmatprep.subr.bf16.mxu0 0
        %603 = vmatpush1.bf16.msra.mxu0 0
        %604 = vmatprep.subr.bf16.mxu0 0
        %605 = vmatpush1.bf16.msra.mxu0 0
        %606 = vmatprep.subr.bf16.mxu0 0
        %607 = vmatpush1.bf16.msra.mxu0 0
        %608 = vmatprep.subr.bf16.mxu0 0
        %609 = vmatpush1.bf16.msra.mxu0 %v589
        %610 = vmatprep.subr.bf16.mxu0 0
        %611 = vmatpush1.bf16.msra.mxu0 %v588
        %612 = vmatprep.subr.bf16.mxu0 0
        %613 = vmatpush2.bf16.msra.mxu0 0
        %614 = vmatprep.subr.bf16.mxu0 0
        %615 = vmatpush2.bf16.msra.mxu0 0
        %616 = vmatprep.subr.bf16.mxu0 0
        %617 = vmatpush2.bf16.msra.mxu0 0
        %618 = vmatprep.subr.bf16.mxu0 0
        %619 = vmatpush2.bf16.msra.mxu0 0
        %620 = vmatprep.subr.bf16.mxu0 0
        %621 = vmatpush2.bf16.msra.mxu0 0
        %622 = vmatprep.subr.bf16.mxu0 0
        %623 = vmatpush2.bf16.msra.mxu0 0
        %624 = vmatprep.subr.bf16.mxu0 0
        %625 = vmatpush2.bf16.msra.mxu0 0
        %626 = vmatprep.subr.bf16.mxu0 0
        %627 = vmatpush2.bf16.msra.mxu0 0
        %628 = vmatprep.mubr.bf16.mxu0 0
        %629 = vmatmul.mubr.bf16.gmra.mxu0 %v594
        %v630 = vpop.f32.mrf.mxu0
        %v631 = vadd.f32 0.0, %v630
        %v632 = vpop.f32.mrf.mxu0
        %v633 = vpop.f32.mrf.mxu0
        %v634 = vpop.f32.mrf.mxu0
        %635 = vdwg.mxu0
        %v636 = vadd.f32 %v578, %v631
        %v637 = vmul.f32 %v636, 0.5
        %v638 = vtanh.pop %v637
        %v639 = vmul.f32 %v638, 0.5
        %v640 = vadd.f32 %v639, 0.5
        %642 = vrot.lane.b32.xlu0 %v577, 32
        %v643 = vpop.permute.xlu0 %642
        %v645 = vmul.f32 %v640, %v643
        %647 = vrot.lane.b32.xlu0 %v638, 64
        %v648 = vpop.permute.xlu0 %647
        %v650 = vmul.f32 %v640, %v648
        %652 = vrot.lane.b32.xlu0 %v650, 32
        %v653 = vpop.permute.xlu0 %652
        %v655 = vadd.f32 %v645, %v653
        %v656 = vtanh.pop %v655
        %658 = vrot.lane.b32.xlu0 %v656, 64
        %v659 = vpop.permute.xlu0 %658
        %v661 = vmul.f32 %v640, %v659
        %v662 = vpack.c.bf16 %v661, %v661
        %v664 = vunpack.c.l.b16 %v662
        %v665 = vpack.c.b16 %v664, %v664
        %666 = vrot.lane.b32.xlu0 %v665, 32
        %v667 = vpop.permute.xlu0 %666
        %vm669 = vcmask 257024
        %670 = vst.msk [vmem:[#allocation4] sm:$0xf] %vm669, %v667
        %s671 = scalar_lea.vmem [#allocation5], 8
        %v672 = vld [vmem:[%s671] sm:$0xff]
        %673 = vrot.lane.b32.xlu0 %v662, 32
        %v674 = vpop.permute.xlu0 %673
        %v676 = vsel %vm592, %v674, 0
        %678 = vmatprep.subr.bf16.mxu0 0
        %679 = vmatpush1.bf16.msra.mxu0 0
        %680 = vmatprep.subr.bf16.mxu0 0
        %681 = vmatpush1.bf16.msra.mxu0 0
        %682 = vmatprep.subr.bf16.mxu0 0
        %683 = vmatpush1.bf16.msra.mxu0 0
        %684 = vmatprep.subr.bf16.mxu0 0
        %685 = vmatpush1.bf16.msra.mxu0 0
        %686 = vmatprep.subr.bf16.mxu0 0
        %687 = vmatpush1.bf16.msra.mxu0 0
        %688 = vmatprep.subr.bf16.mxu0 0
        %689 = vmatpush1.bf16.msra.mxu0 0
        %690 = vmatprep.subr.bf16.mxu0 0
        %691 = vmatpush1.bf16.msra.mxu0 %v589
        %692 = vmatprep.subr.bf16.mxu0 0
        %693 = vmatpush1.bf16.msra.mxu0 %v588
        %694 = vmatprep.subr.bf16.mxu0 0
        %695 = vmatpush2.bf16.msra.mxu0 0
        %696 = vmatprep.subr.bf16.mxu0 0
        %697 = vmatpush2.bf16.msra.mxu0 0
        %698 = vmatprep.subr.bf16.mxu0 0
        %699 = vmatpush2.bf16.msra.mxu0 0
        %700 = vmatprep.subr.bf16.mxu0 0
        %701 = vmatpush2.bf16.msra.mxu0 0
        %702 = vmatprep.subr.bf16.mxu0 0
        %703 = vmatpush2.bf16.msra.mxu0 0
        %704 = vmatprep.subr.bf16.mxu0 0
        %705 = vmatpush2.bf16.msra.mxu0 0
        %706 = vmatprep.subr.bf16.mxu0 0
        %707 = vmatpush2.bf16.msra.mxu0 0
        %708 = vmatprep.subr.bf16.mxu0 0
        %709 = vmatpush2.bf16.msra.mxu0 0
        %710 = vmatprep.mubr.bf16.mxu0 0
        %711 = vmatmul.mubr.bf16.gmra.mxu0 %v676
        %v712 = vpop.f32.mrf.mxu0
        %v713 = vadd.f32 0.0, %v712
        %v714 = vpop.f32.mrf.mxu0
        %v715 = vpop.f32.mrf.mxu0
        %v716 = vpop.f32.mrf.mxu0
        %717 = vdwg.mxu0
        %v718 = vadd.f32 %v672, %v713
        %v719 = vmul.f32 %v718, 0.5
        %v720 = vtanh.pop %v719
        %v721 = vmul.f32 %v720, 0.5
        %v722 = vadd.f32 %v721, 0.5
        %v723 = vmul.f32 %v722, %v655
        %725 = vrot.lane.b32.xlu0 %v720, 64
        %v726 = vpop.permute.xlu0 %725
        %v728 = vmul.f32 %v722, %v726
        %730 = vrot.lane.b32.xlu0 %v728, 32
        %v731 = vpop.permute.xlu0 %730
        %v733 = vadd.f32 %v723, %v731
        %v734 = vtanh.pop %v733
        %736 = vrot.lane.b32.xlu0 %v734, 64
        %v737 = vpop.permute.xlu0 %736
        %v739 = vmul.f32 %v722, %v737
        %v740 = vpack.c.bf16 %v739, %v739
        %v742 = vunpack.c.l.b16 %v740
        %v743 = vpack.c.b16 %v742, %v742
        %744 = vrot.lane.b32.xlu0 %v743, 32
        %v745 = vpop.permute.xlu0 %744
        %s747 = scalar_lea.vmem [#allocation4], 4
        %748 = vst.msk [vmem:[%s747] sm:$0xf] %vm669, %v745
        %s749 = scalar_lea.vmem [#allocation5], 16
        %v750 = vld [vmem:[%s749] sm:$0xff]
        %751 = vrot.lane.b32.xlu0 %v740, 32
        %v752 = vpop.permute.xlu0 %751
        %v754 = vsel %vm592, %v752, 0
        %756 = vmatprep.subr.bf16.mxu0 0
        %757 = vmatpush1.bf16.msra.mxu0 0
        %758 = vmatprep.subr.bf16.mxu0 0
        %759 = vmatpush1.bf16.msra.mxu0 0
        %760 = vmatprep.subr.bf16.mxu0 0
        %761 = vmatpush1.bf16.msra.mxu0 0
        %762 = vmatprep.subr.bf16.mxu0 0
        %763 = vmatpush1.bf16.msra.mxu0 0
        %764 = vmatprep.subr.bf16.mxu0 0
        %765 = vmatpush1.bf16.msra.mxu0 0
        %766 = vmatprep.subr.bf16.mxu0 0
        %767 = vmatpush1.bf16.msra.mxu0 0
        %768 = vmatprep.subr.bf16.mxu0 0
        %769 = vmatpush1.bf16.msra.mxu0 %v589
        %770 = vmatprep.subr.bf16.mxu0 0
        %771 = vmatpush1.bf16.msra.mxu0 %v588
        %772 = vmatprep.subr.bf16.mxu0 0
        %773 = vmatpush2.bf16.msra.mxu0 0
        %774 = vmatprep.subr.bf16.mxu0 0
        %775 = vmatpush2.bf16.msra.mxu0 0
        %776 = vmatprep.subr.bf16.mxu0 0
        %777 = vmatpush2.bf16.msra.mxu0 0
        %778 = vmatprep.subr.bf16.mxu0 0
        %779 = vmatpush2.bf16.msra.mxu0 0
        %780 = vmatprep.subr.bf16.mxu0 0
        %781 = vmatpush2.bf16.msra.mxu0 0
        %782 = vmatprep.subr.bf16.mxu0 0
        %783 = vmatpush2.bf16.msra.mxu0 0
        %784 = vmatprep.subr.bf16.mxu0 0
        %785 = vmatpush2.bf16.msra.mxu0 0
        %786 = vmatprep.subr.bf16.mxu0 0
        %787 = vmatpush2.bf16.msra.mxu0 0
        %788 = vmatprep.mubr.bf16.mxu0 0
        %789 = vmatmul.mubr.bf16.gmra.mxu0 %v754
        %v790 = vpop.f32.mrf.mxu0
        %v791 = vadd.f32 0.0, %v790
        %v792 = vpop.f32.mrf.mxu0
        %v793 = vpop.f32.mrf.mxu0
        %v794 = vpop.f32.mrf.mxu0
        %795 = vdwg.mxu0
        %v796 = vadd.f32 %v750, %v791
        %v797 = vmul.f32 %v796, 0.5
        %v798 = vtanh.pop %v797
        %v799 = vmul.f32 %v798, 0.5
        %v800 = vadd.f32 %v799, 0.5
        %v801 = vmul.f32 %v800, %v733
        %803 = vrot.lane.b32.xlu0 %v798, 64
        %v804 = vpop.permute.xlu0 %803
        %v806 = vmul.f32 %v800, %v804
        %808 = vrot.lane.b32.xlu0 %v806, 32
        %v809 = vpop.permute.xlu0 %808
        %v811 = vadd.f32 %v801, %v809
        %v812 = vtanh.pop %v811
        %814 = vrot.lane.b32.xlu0 %v812, 64
        %v815 = vpop.permute.xlu0 %814
        %v817 = vmul.f32 %v800, %v815
        %v818 = vpack.c.bf16 %v817, %v817
        %v820 = vunpack.c.l.b16 %v818
        %v821 = vpack.c.b16 %v820, %v820
        %822 = vrot.lane.b32.xlu0 %v821, 32
        %v823 = vpop.permute.xlu0 %822
        %s825 = scalar_lea.vmem [#allocation4], 8
        %826 = vst.msk [vmem:[%s825] sm:$0xf] %vm669, %v823
        %s827 = scalar_lea.vmem [#allocation5], 24
        %v828 = vld [vmem:[%s827] sm:$0xff]
        %829 = vrot.lane.b32.xlu0 %v818, 32
        %v830 = vpop.permute.xlu0 %829
        %v832 = vsel %vm592, %v830, 0
        %834 = vmatprep.subr.bf16.mxu0 0
        %835 = vmatpush1.bf16.msra.mxu0 0
        %836 = vmatprep.subr.bf16.mxu0 0
        %837 = vmatpush1.bf16.msra.mxu0 0
        %838 = vmatprep.subr.bf16.mxu0 0
        %839 = vmatpush1.bf16.msra.mxu0 0
        %840 = vmatprep.subr.bf16.mxu0 0
        %841 = vmatpush1.bf16.msra.mxu0 0
        %842 = vmatprep.subr.bf16.mxu0 0
        %843 = vmatpush1.bf16.msra.mxu0 0
        %844 = vmatprep.subr.bf16.mxu0 0
        %845 = vmatpush1.bf16.msra.mxu0 0
        %846 = vmatprep.subr.bf16.mxu0 0
        %847 = vmatpush1.bf16.msra.mxu0 %v589
        %848 = vmatprep.subr.bf16.mxu0 0
        %849 = vmatpush1.bf16.msra.mxu0 %v588
        %850 = vmatprep.subr.bf16.mxu0 0
        %851 = vmatpush2.bf16.msra.mxu0 0
        %852 = vmatprep.subr.bf16.mxu0 0
        %853 = vmatpush2.bf16.msra.mxu0 0
        %854 = vmatprep.subr.bf16.mxu0 0
        %855 = vmatpush2.bf16.msra.mxu0 0
        %856 = vmatprep.subr.bf16.mxu0 0
        %857 = vmatpush2.bf16.msra.mxu0 0
        %858 = vmatprep.subr.bf16.mxu0 0
        %859 = vmatpush2.bf16.msra.mxu0 0
        %860 = vmatprep.subr.bf16.mxu0 0
        %861 = vmatpush2.bf16.msra.mxu0 0
        %862 = vmatprep.subr.bf16.mxu0 0
        %863 = vmatpush2.bf16.msra.mxu0 0
        %864 = vmatprep.subr.bf16.mxu0 0
        %865 = vmatpush2.bf16.msra.mxu0 0
        %866 = vmatprep.mubr.bf16.mxu0 0
        %867 = vmatmul.mubr.bf16.gmra.mxu0 %v832
        %v868 = vpop.f32.mrf.mxu0
        %v869 = vadd.f32 0.0, %v868
        %v870 = vpop.f32.mrf.mxu0
        %v871 = vpop.f32.mrf.mxu0
        %v872 = vpop.f32.mrf.mxu0
        %873 = vdwg.mxu0
        %v874 = vadd.f32 %v828, %v869
        %v875 = vmul.f32 %v874, 0.5
        %v876 = vtanh.pop %v875
        %v877 = vmul.f32 %v876, 0.5
        %v878 = vadd.f32 %v877, 0.5
        %v879 = vmul.f32 %v878, %v811
        %881 = vrot.lane.b32.xlu0 %v876, 64
        %v882 = vpop.permute.xlu0 %881
        %v884 = vmul.f32 %v878, %v882
        %886 = vrot.lane.b32.xlu0 %v884, 32
        %v887 = vpop.permute.xlu0 %886
        %v889 = vadd.f32 %v879, %v887
        %v890 = vtanh.pop %v889
        %892 = vrot.lane.b32.xlu0 %v890, 64
        %v893 = vpop.permute.xlu0 %892
        %v895 = vmul.f32 %v878, %v893
        %v896 = vpack.c.bf16 %v895, %v895
        %v898 = vunpack.c.l.b16 %v896
        %v899 = vpack.c.b16 %v898, %v898
        %900 = vrot.lane.b32.xlu0 %v899, 32
        %v901 = vpop.permute.xlu0 %900
        %s903 = scalar_lea.vmem [#allocation4], 12
        %904 = vst.msk [vmem:[%s903] sm:$0xf] %vm669, %v901
        %s905 = scalar_lea.vmem [#allocation5], 32
        %v906 = vld [vmem:[%s905] sm:$0xff]
        %907 = vrot.lane.b32.xlu0 %v896, 32
        %v908 = vpop.permute.xlu0 %907
        %v910 = vsel %vm592, %v908, 0
        %912 = vmatprep.subr.bf16.mxu0 0
        %913 = vmatpush1.bf16.msra.mxu0 0
        %914 = vmatprep.subr.bf16.mxu0 0
        %915 = vmatpush1.bf16.msra.mxu0 0
        %916 = vmatprep.subr.bf16.mxu0 0
        %917 = vmatpush1.bf16.msra.mxu0 0
        %918 = vmatprep.subr.bf16.mxu0 0
        %919 = vmatpush1.bf16.msra.mxu0 0
        %920 = vmatprep.subr.bf16.mxu0 0
        %921 = vmatpush1.bf16.msra.mxu0 0
        %922 = vmatprep.subr.bf16.mxu0 0
        %923 = vmatpush1.bf16.msra.mxu0 0
        %924 = vmatprep.subr.bf16.mxu0 0
        %925 = vmatpush1.bf16.msra.mxu0 %v589
        %926 = vmatprep.subr.bf16.mxu0 0
        %927 = vmatpush1.bf16.msra.mxu0 %v588
        %928 = vmatprep.subr.bf16.mxu0 0
        %929 = vmatpush2.bf16.msra.mxu0 0
        %930 = vmatprep.subr.bf16.mxu0 0
        %931 = vmatpush2.bf16.msra.mxu0 0
        %932 = vmatprep.subr.bf16.mxu0 0
        %933 = vmatpush2.bf16.msra.mxu0 0
        %934 = vmatprep.subr.bf16.mxu0 0
        %935 = vmatpush2.bf16.msra.mxu0 0
        %936 = vmatprep.subr.bf16.mxu0 0
        %937 = vmatpush2.bf16.msra.mxu0 0
        %938 = vmatprep.subr.bf16.mxu0 0
        %939 = vmatpush2.bf16.msra.mxu0 0
        %940 = vmatprep.subr.bf16.mxu0 0
        %941 = vmatpush2.bf16.msra.mxu0 0
        %942 = vmatprep.subr.bf16.mxu0 0
        %943 = vmatpush2.bf16.msra.mxu0 0
        %944 = vmatprep.mubr.bf16.mxu0 0
        %945 = vmatmul.mubr.bf16.gmra.mxu0 %v910
        %v946 = vpop.f32.mrf.mxu0
        %v947 = vadd.f32 0.0, %v946
        %v948 = vpop.f32.mrf.mxu0
        %v949 = vpop.f32.mrf.mxu0
        %v950 = vpop.f32.mrf.mxu0
        %951 = vdwg.mxu0
        %v952 = vadd.f32 %v906, %v947
        %v953 = vmul.f32 %v952, 0.5
        %v954 = vtanh.pop %v953
        %v955 = vmul.f32 %v954, 0.5
        %v956 = vadd.f32 %v955, 0.5
        %v957 = vmul.f32 %v956, %v889
        %959 = vrot.lane.b32.xlu0 %v954, 64
        %v960 = vpop.permute.xlu0 %959
        %v962 = vmul.f32 %v956, %v960
        %964 = vrot.lane.b32.xlu0 %v962, 32
        %v965 = vpop.permute.xlu0 %964
        %v967 = vadd.f32 %v957, %v965
        %v968 = vtanh.pop %v967
        %970 = vrot.lane.b32.xlu0 %v968, 64
        %v971 = vpop.permute.xlu0 %970
        %v973 = vmul.f32 %v956, %v971
        %v974 = vpack.c.bf16 %v973, %v973
        %v976 = vunpack.c.l.b16 %v974
        %v977 = vpack.c.b16 %v976, %v976
        %978 = vrot.lane.b32.xlu0 %v977, 32
        %v979 = vpop.permute.xlu0 %978
        %s981 = scalar_lea.vmem [#allocation4], 16
        %982 = vst.msk [vmem:[%s981] sm:$0xf] %vm669, %v979
        %s983 = scalar_lea.vmem [#allocation5], 40
        %v984 = vld [vmem:[%s983] sm:$0xff]
        %985 = vrot.lane.b32.xlu0 %v974, 32
        %v986 = vpop.permute.xlu0 %985
        %v988 = vsel %vm592, %v986, 0
        %990 = vmatprep.subr.bf16.mxu0 0
        %991 = vmatpush1.bf16.msra.mxu0 0
        %992 = vmatprep.subr.bf16.mxu0 0
        %993 = vmatpush1.bf16.msra.mxu0 0
        %994 = vmatprep.subr.bf16.mxu0 0
        %995 = vmatpush1.bf16.msra.mxu0 0
        %996 = vmatprep.subr.bf16.mxu0 0
        %997 = vmatpush1.bf16.msra.mxu0 0
        %998 = vmatprep.subr.bf16.mxu0 0
        %999 = vmatpush1.bf16.msra.mxu0 0
        %1000 = vmatprep.subr.bf16.mxu0 0
        %1001 = vmatpush1.bf16.msra.mxu0 0
        %1002 = vmatprep.subr.bf16.mxu0 0
        %1003 = vmatpush1.bf16.msra.mxu0 %v589
        %1004 = vmatprep.subr.bf16.mxu0 0
        %1005 = vmatpush1.bf16.msra.mxu0 %v588
        %1006 = vmatprep.subr.bf16.mxu0 0
        %1007 = vmatpush2.bf16.msra.mxu0 0
        %1008 = vmatprep.subr.bf16.mxu0 0
        %1009 = vmatpush2.bf16.msra.mxu0 0
        %1010 = vmatprep.subr.bf16.mxu0 0
        %1011 = vmatpush2.bf16.msra.mxu0 0
        %1012 = vmatprep.subr.bf16.mxu0 0
        %1013 = vmatpush2.bf16.msra.mxu0 0
        %1014 = vmatprep.subr.bf16.mxu0 0
        %1015 = vmatpush2.bf16.msra.mxu0 0
        %1016 = vmatprep.subr.bf16.mxu0 0
        %1017 = vmatpush2.bf16.msra.mxu0 0
        %1018 = vmatprep.subr.bf16.mxu0 0
        %1019 = vmatpush2.bf16.msra.mxu0 0
        %1020 = vmatprep.subr.bf16.mxu0 0
        %1021 = vmatpush2.bf16.msra.mxu0 0
        %1022 = vmatprep.mubr.bf16.mxu0 0
        %1023 = vmatmul.mubr.bf16.gmra.mxu0 %v988
        %v1024 = vpop.f32.mrf.mxu0
        %v1025 = vadd.f32 0.0, %v1024
        %v1026 = vpop.f32.mrf.mxu0
        %v1027 = vpop.f32.mrf.mxu0
        %v1028 = vpop.f32.mrf.mxu0
        %1029 = vdwg.mxu0
        %v1030 = vadd.f32 %v984, %v1025
        %v1031 = vmul.f32 %v1030, 0.5
        %v1032 = vtanh.pop %v1031
        %v1033 = vmul.f32 %v1032, 0.5
        %v1034 = vadd.f32 %v1033, 0.5
        %v1035 = vmul.f32 %v1034, %v967
        %1037 = vrot.lane.b32.xlu0 %v1032, 64
        %v1038 = vpop.permute.xlu0 %1037
        %v1040 = vmul.f32 %v1034, %v1038
        %1042 = vrot.lane.b32.xlu0 %v1040, 32
        %v1043 = vpop.permute.xlu0 %1042
        %v1045 = vadd.f32 %v1035, %v1043
        %v1046 = vtanh.pop %v1045
        %1048 = vrot.lane.b32.xlu0 %v1046, 64
        %v1049 = vpop.permute.xlu0 %1048
        %v1051 = vmul.f32 %v1034, %v1049
        %v1052 = vpack.c.bf16 %v1051, %v1051
        %v1054 = vunpack.c.l.b16 %v1052
        %v1055 = vpack.c.b16 %v1054, %v1054
        %1056 = vrot.lane.b32.xlu0 %v1055, 32
        %v1057 = vpop.permute.xlu0 %1056
        %s1059 = scalar_lea.vmem [#allocation4], 20
        %1060 = vst.msk [vmem:[%s1059] sm:$0xf] %vm669, %v1057
        %s1061 = scalar_lea.vmem [#allocation5], 48
        %v1062 = vld [vmem:[%s1061] sm:$0xff]
        %1063 = vrot.lane.b32.xlu0 %v1052, 32
        %v1064 = vpop.permute.xlu0 %1063
        %v1066 = vsel %vm592, %v1064, 0
        %1068 = vmatprep.subr.bf16.mxu0 0
        %1069 = vmatpush1.bf16.msra.mxu0 0
        %1070 = vmatprep.subr.bf16.mxu0 0
        %1071 = vmatpush1.bf16.msra.mxu0 0
        %1072 = vmatprep.subr.bf16.mxu0 0
        %1073 = vmatpush1.bf16.msra.mxu0 0
        %1074 = vmatprep.subr.bf16.mxu0 0
        %1075 = vmatpush1.bf16.msra.mxu0 0
        %1076 = vmatprep.subr.bf16.mxu0 0
        %1077 = vmatpush1.bf16.msra.mxu0 0
        %1078 = vmatprep.subr.bf16.mxu0 0
        %1079 = vmatpush1.bf16.msra.mxu0 0
        %1080 = vmatprep.subr.bf16.mxu0 0
        %1081 = vmatpush1.bf16.msra.mxu0 %v589
        %1082 = vmatprep.subr.bf16.mxu0 0
        %1083 = vmatpush1.bf16.msra.mxu0 %v588
        %1084 = vmatprep.subr.bf16.mxu0 0
        %1085 = vmatpush2.bf16.msra.mxu0 0
        %1086 = vmatprep.subr.bf16.mxu0 0
        %1087 = vmatpush2.bf16.msra.mxu0 0
        %1088 = vmatprep.subr.bf16.mxu0 0
        %1089 = vmatpush2.bf16.msra.mxu0 0
        %1090 = vmatprep.subr.bf16.mxu0 0
        %1091 = vmatpush2.bf16.msra.mxu0 0
        %1092 = vmatprep.subr.bf16.mxu0 0
        %1093 = vmatpush2.bf16.msra.mxu0 0
        %1094 = vmatprep.subr.bf16.mxu0 0
        %1095 = vmatpush2.bf16.msra.mxu0 0
        %1096 = vmatprep.subr.bf16.mxu0 0
        %1097 = vmatpush2.bf16.msra.mxu0 0
        %1098 = vmatprep.subr.bf16.mxu0 0
        %1099 = vmatpush2.bf16.msra.mxu0 0
        %1100 = vmatprep.mubr.bf16.mxu0 0
        %1101 = vmatmul.mubr.bf16.gmra.mxu0 %v1066
        %v1102 = vpop.f32.mrf.mxu0
        %v1103 = vadd.f32 0.0, %v1102
        %v1104 = vpop.f32.mrf.mxu0
        %v1105 = vpop.f32.mrf.mxu0
        %v1106 = vpop.f32.mrf.mxu0
        %1107 = vdwg.mxu0
        %v1108 = vadd.f32 %v1062, %v1103
        %v1109 = vmul.f32 %v1108, 0.5
        %v1110 = vtanh.pop %v1109
        %v1111 = vmul.f32 %v1110, 0.5
        %v1112 = vadd.f32 %v1111, 0.5
        %v1113 = vmul.f32 %v1112, %v1045
        %1115 = vrot.lane.b32.xlu0 %v1110, 64
        %v1116 = vpop.permute.xlu0 %1115
        %v1118 = vmul.f32 %v1112, %v1116
        %1120 = vrot.lane.b32.xlu0 %v1118, 32
        %v1121 = vpop.permute.xlu0 %1120
        %v1123 = vadd.f32 %v1113, %v1121
        %v1124 = vtanh.pop %v1123
        %1126 = vrot.lane.b32.xlu0 %v1124, 64
        %v1127 = vpop.permute.xlu0 %1126
        %v1129 = vmul.f32 %v1112, %v1127
        %v1130 = vpack.c.bf16 %v1129, %v1129
        %v1132 = vunpack.c.l.b16 %v1130
        %v1133 = vpack.c.b16 %v1132, %v1132
        %1134 = vrot.lane.b32.xlu0 %v1133, 32
        %v1135 = vpop.permute.xlu0 %1134
        %s1137 = scalar_lea.vmem [#allocation4], 24
        %1138 = vst.msk [vmem:[%s1137] sm:$0xf] %vm669, %v1135
        %s1139 = scalar_lea.vmem [#allocation5], 56
        %v1140 = vld [vmem:[%s1139] sm:$0xff]
        %1141 = vrot.lane.b32.xlu0 %v1130, 32
        %v1142 = vpop.permute.xlu0 %1141
        %v1144 = vsel %vm592, %v1142, 0
        %1146 = vmatprep.subr.bf16.mxu0 0
        %1147 = vmatpush1.bf16.msra.mxu0 0
        %1148 = vmatprep.subr.bf16.mxu0 0
        %1149 = vmatpush1.bf16.msra.mxu0 0
        %1150 = vmatprep.subr.bf16.mxu0 0
        %1151 = vmatpush1.bf16.msra.mxu0 0
        %1152 = vmatprep.subr.bf16.mxu0 0
        %1153 = vmatpush1.bf16.msra.mxu0 0
        %1154 = vmatprep.subr.bf16.mxu0 0
        %1155 = vmatpush1.bf16.msra.mxu0 0
        %1156 = vmatprep.subr.bf16.mxu0 0
        %1157 = vmatpush1.bf16.msra.mxu0 0
        %1158 = vmatprep.subr.bf16.mxu0 0
        %1159 = vmatpush1.bf16.msra.mxu0 %v589
        %1160 = vmatprep.subr.bf16.mxu0 0
        %1161 = vmatpush1.bf16.msra.mxu0 %v588
        %1162 = vmatprep.subr.bf16.mxu0 0
        %1163 = vmatpush2.bf16.msra.mxu0 0
        %1164 = vmatprep.subr.bf16.mxu0 0
        %1165 = vmatpush2.bf16.msra.mxu0 0
        %1166 = vmatprep.subr.bf16.mxu0 0
        %1167 = vmatpush2.bf16.msra.mxu0 0
        %1168 = vmatprep.subr.bf16.mxu0 0
        %1169 = vmatpush2.bf16.msra.mxu0 0
        %1170 = vmatprep.subr.bf16.mxu0 0
        %1171 = vmatpush2.bf16.msra.mxu0 0
        %1172 = vmatprep.subr.bf16.mxu0 0
        %1173 = vmatpush2.bf16.msra.mxu0 0
        %1174 = vmatprep.subr.bf16.mxu0 0
        %1175 = vmatpush2.bf16.msra.mxu0 0
        %1176 = vmatprep.subr.bf16.mxu0 0
        %1177 = vmatpush2.bf16.msra.mxu0 0
        %1178 = vmatprep.mubr.bf16.mxu0 0
        %1179 = vmatmul.mubr.bf16.gmra.mxu0 %v1144
        %v1180 = vpop.f32.mrf.mxu0
        %v1181 = vadd.f32 0.0, %v1180
        %v1182 = vpop.f32.mrf.mxu0
        %v1183 = vpop.f32.mrf.mxu0
        %v1184 = vpop.f32.mrf.mxu0
        %1185 = vdwg.mxu0
        %v1186 = vadd.f32 %v1140, %v1181
        %v1187 = vmul.f32 %v1186, 0.5
        %v1188 = vtanh.pop %v1187
        %v1189 = vmul.f32 %v1188, 0.5
        %v1190 = vadd.f32 %v1189, 0.5
        %v1191 = vmul.f32 %v1190, %v1123
        %1193 = vrot.lane.b32.xlu0 %v1188, 64
        %v1194 = vpop.permute.xlu0 %1193
        %v1196 = vmul.f32 %v1190, %v1194
        %1198 = vrot.lane.b32.xlu0 %v1196, 32
        %v1199 = vpop.permute.xlu0 %1198
        %v1201 = vadd.f32 %v1191, %v1199
        %v1202 = vtanh.pop %v1201
        %1204 = vrot.lane.b32.xlu0 %v1202, 64
        %v1205 = vpop.permute.xlu0 %1204
        %v1207 = vmul.f32 %v1190, %v1205
        %v1208 = vpack.c.bf16 %v1207, %v1207
        %v1210 = vunpack.c.l.b16 %v1208
        %v1211 = vpack.c.b16 %v1210, %v1210
        %1212 = vrot.lane.b32.xlu0 %v1211, 32
        %v1213 = vpop.permute.xlu0 %1212
        %s1215 = scalar_lea.vmem [#allocation4], 28
        %1216 = vst.msk [vmem:[%s1215] sm:$0xf] %vm669, %v1213
        %1218 = vrot.lane.b32.xlu0 %v1207, 32
        %v1219 = vpop.permute.xlu0 %1218
        %1221 = vst.msk [vmem:[#allocation2] sm:$0xff] %vm592, %v1219
        %1223 = vrot.lane.b32.xlu0 %v1201, 96
        %v1224 = vpop.permute.xlu0 %1223
        %1226 = vst.msk [vmem:[#allocation3] sm:$0xff] %vm592, %v1224
        %v1227 = vld [vmem:[#allocation4] sm:$0xf]
        %v1228 = vld [vmem:[#allocation4 + $0x4] sm:$0xf]
        %v1229 = vld [vmem:[#allocation4 + $0x8] sm:$0xf]
        %v1230 = vld [vmem:[#allocation4 + $0xc] sm:$0xf]
        %v1231 = vld [vmem:[#allocation4 + $0x10] sm:$0xf]
        %v1232 = vld [vmem:[#allocation4 + $0x14] sm:$0xf]
        %v1233 = vld [vmem:[#allocation4 + $0x18] sm:$0xf]
        %v1234 = vld [vmem:[#allocation4 + $0x1c] sm:$0xf]
        %v1235 = vld [vmem:[#allocation12] sm:$0xf]
        %v1236 = vld [vmem:[#allocation12 + $0x4] sm:$0xf]
        %v1237 = vld [vmem:[#allocation12 + $0x8] sm:$0xf]
        %v1238 = vld [vmem:[#allocation12 + $0xc] sm:$0xf]
        %v1239 = vld [vmem:[%s6] sm:$0x1]
        %v1241 = vlaneseq
        %v1242 = vshrl.u32 %v1241, 7
        %v1243 = vsub.s32 0, %v1242
        %v1244 = vrot.slane %v1239, %v1243
        %v1254 = vunpack.c.l.b16 %v1227
        %v1255 = vunpack.c.l.b16 %v1228
        %v1256 = vunpack.c.l.b16 %v1229
        %v1257 = vunpack.c.l.b16 %v1230
        %v1258 = vunpack.c.l.b16 %v1231
        %v1259 = vunpack.c.l.b16 %v1232
        %v1260 = vunpack.c.l.b16 %v1233
        %v1261 = vunpack.c.l.b16 %v1234
        %v1262 = vpack.c.b16 %v1255, %v1254
        %v1263 = vpack.c.b16 %v1257, %v1256
        %v1264 = vpack.c.b16 %v1259, %v1258
        %v1265 = vpack.c.b16 %v1261, %v1260
        %v1270 = vunpack.c.l.b16 %v1235
        %v1271 = vunpack.c.l.b16 %v1236
        %v1272 = vunpack.c.l.b16 %v1237
        %v1273 = vunpack.c.l.b16 %v1238
        %v1274 = vpack.c.b16 %v1271, %v1270
        %v1275 = vpack.c.b16 %v1273, %v1272
        %v1279 = vsel %vm592, %v1262, 0
        %v1282 = vsel %vm592, %v1263, 0
        %v1285 = vsel %vm592, %v1264, 0
        %v1288 = vsel %vm592, %v1265, 0
        %1290 = vmatprep.subr.bf16.mxu0 0
        %1291 = vmatpush1.bf16.msra.mxu0 0
        %1292 = vmatprep.subr.bf16.mxu0 0
        %1293 = vmatpush1.bf16.msra.mxu0 0
        %1294 = vmatprep.subr.bf16.mxu0 0
        %1295 = vmatpush1.bf16.msra.mxu0 0
        %1296 = vmatprep.subr.bf16.mxu0 0
        %1297 = vmatpush1.bf16.msra.mxu0 0
        %1298 = vmatprep.subr.bf16.mxu0 0
        %1299 = vmatpush1.bf16.msra.mxu0 0
        %1300 = vmatprep.subr.bf16.mxu0 0
        %1301 = vmatpush1.bf16.msra.mxu0 0
        %1302 = vmatprep.subr.bf16.mxu0 0
        %1303 = vmatpush1.bf16.msra.mxu0 %v1275
        %1304 = vmatprep.subr.bf16.mxu0 0
        %1305 = vmatpush1.bf16.msra.mxu0 %v1274
        %1306 = vmatprep.subr.bf16.mxu0 0
        %1307 = vmatpush2.bf16.msra.mxu0 0
        %1308 = vmatprep.subr.bf16.mxu0 0
        %1309 = vmatpush2.bf16.msra.mxu0 0
        %1310 = vmatprep.subr.bf16.mxu0 0
        %1311 = vmatpush2.bf16.msra.mxu0 0
        %1312 = vmatprep.subr.bf16.mxu0 0
        %1313 = vmatpush2.bf16.msra.mxu0 0
        %1314 = vmatprep.subr.bf16.mxu0 0
        %1315 = vmatpush2.bf16.msra.mxu0 0
        %1316 = vmatprep.subr.bf16.mxu0 0
        %1317 = vmatpush2.bf16.msra.mxu0 0
        %1318 = vmatprep.subr.bf16.mxu0 0
        %1319 = vmatpush2.bf16.msra.mxu0 0
        %1320 = vmatprep.subr.bf16.mxu0 0
        %1321 = vmatpush2.bf16.msra.mxu0 0
        %1322 = vmatprep.mubr.bf16.mxu0 0
        %1323 = vmatmul.mubr.bf16.gmra.mxu0 %v1279
        %v1324 = vpop.f32.mrf.mxu0
        %v1325 = vadd.f32 %v1244, %v1324
        %v1326 = vpop.f32.mrf.mxu0
        %v1327 = vpop.f32.mrf.mxu0
        %v1328 = vadd.f32 %v1244, %v1327
        %v1329 = vpop.f32.mrf.mxu0
        %1330 = vmatprep.mubr.bf16.mxu0 0
        %1331 = vmatmul.mubr.bf16.gmra.mxu0 %v1282
        %v1332 = vpop.f32.mrf.mxu0
        %v1333 = vadd.f32 %v1244, %v1332
        %v1334 = vpop.f32.mrf.mxu0
        %v1335 = vpop.f32.mrf.mxu0
        %v1336 = vadd.f32 %v1244, %v1335
        %v1337 = vpop.f32.mrf.mxu0
        %1338 = vmatprep.mubr.bf16.mxu0 0
        %1339 = vmatmul.mubr.bf16.gmra.mxu0 %v1285
        %v1340 = vpop.f32.mrf.mxu0
        %v1341 = vadd.f32 %v1244, %v1340
        %v1342 = vpop.f32.mrf.mxu0
        %v1343 = vpop.f32.mrf.mxu0
        %v1344 = vadd.f32 %v1244, %v1343
        %v1345 = vpop.f32.mrf.mxu0
        %1346 = vmatprep.mubr.bf16.mxu0 0
        %1347 = vmatmul.mubr.bf16.gmra.mxu0 %v1288
        %v1348 = vpop.f32.mrf.mxu0
        %v1349 = vadd.f32 %v1244, %v1348
        %v1350 = vpop.f32.mrf.mxu0
        %v1351 = vpop.f32.mrf.mxu0
        %v1352 = vadd.f32 %v1244, %v1351
        %v1353 = vpop.f32.mrf.mxu0
        %1354 = vdwg.mxu0
        %1355 = vst [vmem:[#allocation5] sm:$0xff] %v1325
        %1356 = vst [vmem:[#allocation5 + $0x8] sm:$0xff] %v1328
        %1357 = vst [vmem:[#allocation5 + $0x10] sm:$0xff] %v1333
        %1358 = vst [vmem:[#allocation5 + $0x18] sm:$0xff] %v1336
        %1359 = vst [vmem:[#allocation5 + $0x20] sm:$0xff] %v1341
        %1360 = vst [vmem:[#allocation5 + $0x28] sm:$0xff] %v1344
        %1361 = vst [vmem:[#allocation5 + $0x30] sm:$0xff] %v1349
        %1362 = vst [vmem:[#allocation5 + $0x38] sm:$0xff] %v1352
        %v1363 = vld [vmem:[#allocation14] sm:$0xf]
        %v1364 = vld [vmem:[#allocation14 + $0x4] sm:$0xf]
        %v1365 = vld [vmem:[#allocation14 + $0x8] sm:$0xf]
        %v1366 = vld [vmem:[#allocation14 + $0xc] sm:$0xf]
        %s1367 = scalar_lea.vmem [#allocation2], 8
        %v1368 = vld [vmem:[%s1367] sm:$0xff]
        %s1369 = scalar_lea.vmem [#allocation3], 8
        %v1370 = vld [vmem:[%s1369] sm:$0xff]
        %v1371 = vld [vmem:[#allocation5] sm:$0xff]
        %v1372 = vpack.c.bf16 %v1368, %v1368
        %v1377 = vunpack.c.l.b16 %v1363
        %v1378 = vunpack.c.l.b16 %v1364
        %v1379 = vunpack.c.l.b16 %v1365
        %v1380 = vunpack.c.l.b16 %v1366
        %v1381 = vpack.c.b16 %v1378, %v1377
        %v1382 = vpack.c.b16 %v1380, %v1379
        %v1386 = vsel %vm592, %v1372, 0
        %1388 = vmatprep.subr.bf16.mxu0 0
        %1389 = vmatpush1.bf16.msra.mxu0 0
        %1390 = vmatprep.subr.bf16.mxu0 0
        %1391 = vmatpush1.bf16.msra.mxu0 0
        %1392 = vmatprep.subr.bf16.mxu0 0
        %1393 = vmatpush1.bf16.msra.mxu0 0
        %1394 = vmatprep.subr.bf16.mxu0 0
        %1395 = vmatpush1.bf16.msra.mxu0 0
        %1396 = vmatprep.subr.bf16.mxu0 0
        %1397 = vmatpush1.bf16.msra.mxu0 0
        %1398 = vmatprep.subr.bf16.mxu0 0
        %1399 = vmatpush1.bf16.msra.mxu0 0
        %1400 = vmatprep.subr.bf16.mxu0 0
        %1401 = vmatpush1.bf16.msra.mxu0 %v1382
        %1402 = vmatprep.subr.bf16.mxu0 0
        %1403 = vmatpush1.bf16.msra.mxu0 %v1381
        %1404 = vmatprep.subr.bf16.mxu0 0
        %1405 = vmatpush2.bf16.msra.mxu0 0
        %1406 = vmatprep.subr.bf16.mxu0 0
        %1407 = vmatpush2.bf16.msra.mxu0 0
        %1408 = vmatprep.subr.bf16.mxu0 0
        %1409 = vmatpush2.bf16.msra.mxu0 0
        %1410 = vmatprep.subr.bf16.mxu0 0
        %1411 = vmatpush2.bf16.msra.mxu0 0
        %1412 = vmatprep.subr.bf16.mxu0 0
        %1413 = vmatpush2.bf16.msra.mxu0 0
        %1414 = vmatprep.subr.bf16.mxu0 0
        %1415 = vmatpush2.bf16.msra.mxu0 0
        %1416 = vmatprep.subr.bf16.mxu0 0
        %1417 = vmatpush2.bf16.msra.mxu0 0
        %1418 = vmatprep.subr.bf16.mxu0 0
        %1419 = vmatpush2.bf16.msra.mxu0 0
        %1420 = vmatprep.mubr.bf16.mxu0 0
        %1421 = vmatmul.mubr.bf16.gmra.mxu0 %v1386
        %v1422 = vpop.f32.mrf.mxu0
        %v1423 = vadd.f32 0.0, %v1422
        %v1424 = vpop.f32.mrf.mxu0
        %v1425 = vpop.f32.mrf.mxu0
        %v1426 = vpop.f32.mrf.mxu0
        %1427 = vdwg.mxu0
        %v1428 = vadd.f32 %v1371, %v1423
        %v1429 = vmul.f32 %v1428, 0.5
        %v1430 = vtanh.pop %v1429
        %v1431 = vmul.f32 %v1430, 0.5
        %v1432 = vadd.f32 %v1431, 0.5
        %1434 = vrot.lane.b32.xlu0 %v1370, 32
        %v1435 = vpop.permute.xlu0 %1434
        %v1437 = vmul.f32 %v1432, %v1435
        %1439 = vrot.lane.b32.xlu0 %v1430, 64
        %v1440 = vpop.permute.xlu0 %1439
        %v1442 = vmul.f32 %v1432, %v1440
        %1444 = vrot.lane.b32.xlu0 %v1442, 32
        %v1445 = vpop.permute.xlu0 %1444
        %v1447 = vadd.f32 %v1437, %v1445
        %v1448 = vtanh.pop %v1447
        %1450 = vrot.lane.b32.xlu0 %v1448, 64
        %v1451 = vpop.permute.xlu0 %1450
        %v1453 = vmul.f32 %v1432, %v1451
        %v1454 = vld [vmem:[%s671] sm:$0xff]
        %v1455 = vpack.c.bf16 %v1453, %v1453
        %1457 = vrot.lane.b32.xlu0 %v1455, 32
        %v1458 = vpop.permute.xlu0 %1457
        %v1460 = vsel %vm592, %v1458, 0
        %1462 = vmatprep.subr.bf16.mxu0 0
        %1463 = vmatpush1.bf16.msra.mxu0 0
        %1464 = vmatprep.subr.bf16.mxu0 0
        %1465 = vmatpush1.bf16.msra.mxu0 0
        %1466 = vmatprep.subr.bf16.mxu0 0
        %1467 = vmatpush1.bf16.msra.mxu0 0
        %1468 = vmatprep.subr.bf16.mxu0 0
        %1469 = vmatpush1.bf16.msra.mxu0 0
        %1470 = vmatprep.subr.bf16.mxu0 0
        %1471 = vmatpush1.bf16.msra.mxu0 0
        %1472 = vmatprep.subr.bf16.mxu0 0
        %1473 = vmatpush1.bf16.msra.mxu0 0
        %1474 = vmatprep.subr.bf16.mxu0 0
        %1475 = vmatpush1.bf16.msra.mxu0 %v1382
        %1476 = vmatprep.subr.bf16.mxu0 0
        %1477 = vmatpush1.bf16.msra.mxu0 %v1381
        %1478 = vmatprep.subr.bf16.mxu0 0
        %1479 = vmatpush2.bf16.msra.mxu0 0
        %1480 = vmatprep.subr.bf16.mxu0 0
        %1481 = vmatpush2.bf16.msra.mxu0 0
        %1482 = vmatprep.subr.bf16.mxu0 0
        %1483 = vmatpush2.bf16.msra.mxu0 0
        %1484 = vmatprep.subr.bf16.mxu0 0
        %1485 = vmatpush2.bf16.msra.mxu0 0
        %1486 = vmatprep.subr.bf16.mxu0 0
        %1487 = vmatpush2.bf16.msra.mxu0 0
        %1488 = vmatprep.subr.bf16.mxu0 0
        %1489 = vmatpush2.bf16.msra.mxu0 0
        %1490 = vmatprep.subr.bf16.mxu0 0
        %1491 = vmatpush2.bf16.msra.mxu0 0
        %1492 = vmatprep.subr.bf16.mxu0 0
        %1493 = vmatpush2.bf16.msra.mxu0 0
        %1494 = vmatprep.mubr.bf16.mxu0 0
        %1495 = vmatmul.mubr.bf16.gmra.mxu0 %v1460
        %v1496 = vpop.f32.mrf.mxu0
        %v1497 = vadd.f32 0.0, %v1496
        %v1498 = vpop.f32.mrf.mxu0
        %v1499 = vpop.f32.mrf.mxu0
        %v1500 = vpop.f32.mrf.mxu0
        %1501 = vdwg.mxu0
        %v1502 = vadd.f32 %v1454, %v1497
        %v1503 = vmul.f32 %v1502, 0.5
        %v1504 = vtanh.pop %v1503
        %v1505 = vmul.f32 %v1504, 0.5
        %v1506 = vadd.f32 %v1505, 0.5
        %v1507 = vmul.f32 %v1506, %v1447
        %1509 = vrot.lane.b32.xlu0 %v1504, 64
        %v1510 = vpop.permute.xlu0 %1509
        %v1512 = vmul.f32 %v1506, %v1510
        %1514 = vrot.lane.b32.xlu0 %v1512, 32
        %v1515 = vpop.permute.xlu0 %1514
        %v1517 = vadd.f32 %v1507, %v1515
        %v1518 = vtanh.pop %v1517
        %1520 = vrot.lane.b32.xlu0 %v1518, 64
        %v1521 = vpop.permute.xlu0 %1520
        %v1523 = vmul.f32 %v1506, %v1521
        %v1524 = vld [vmem:[%s749] sm:$0xff]
        %v1525 = vpack.c.bf16 %v1523, %v1523
        %1527 = vrot.lane.b32.xlu0 %v1525, 32
        %v1528 = vpop.permute.xlu0 %1527
        %v1530 = vsel %vm592, %v1528, 0
        %1532 = vmatprep.subr.bf16.mxu0 0
        %1533 = vmatpush1.bf16.msra.mxu0 0
        %1534 = vmatprep.subr.bf16.mxu0 0
        %1535 = vmatpush1.bf16.msra.mxu0 0
        %1536 = vmatprep.subr.bf16.mxu0 0
        %1537 = vmatpush1.bf16.msra.mxu0 0
        %1538 = vmatprep.subr.bf16.mxu0 0
        %1539 = vmatpush1.bf16.msra.mxu0 0
        %1540 = vmatprep.subr.bf16.mxu0 0
        %1541 = vmatpush1.bf16.msra.mxu0 0
        %1542 = vmatprep.subr.bf16.mxu0 0
        %1543 = vmatpush1.bf16.msra.mxu0 0
        %1544 = vmatprep.subr.bf16.mxu0 0
        %1545 = vmatpush1.bf16.msra.mxu0 %v1382
        %1546 = vmatprep.subr.bf16.mxu0 0
        %1547 = vmatpush1.bf16.msra.mxu0 %v1381
        %1548 = vmatprep.subr.bf16.mxu0 0
        %1549 = vmatpush2.bf16.msra.mxu0 0
        %1550 = vmatprep.subr.bf16.mxu0 0
        %1551 = vmatpush2.bf16.msra.mxu0 0
        %1552 = vmatprep.subr.bf16.mxu0 0
        %1553 = vmatpush2.bf16.msra.mxu0 0
        %1554 = vmatprep.subr.bf16.mxu0 0
        %1555 = vmatpush2.bf16.msra.mxu0 0
        %1556 = vmatprep.subr.bf16.mxu0 0
        %1557 = vmatpush2.bf16.msra.mxu0 0
        %1558 = vmatprep.subr.bf16.mxu0 0
        %1559 = vmatpush2.bf16.msra.mxu0 0
        %1560 = vmatprep.subr.bf16.mxu0 0
        %1561 = vmatpush2.bf16.msra.mxu0 0
        %1562 = vmatprep.subr.bf16.mxu0 0
        %1563 = vmatpush2.bf16.msra.mxu0 0
        %1564 = vmatprep.mubr.bf16.mxu0 0
        %1565 = vmatmul.mubr.bf16.gmra.mxu0 %v1530
        %v1566 = vpop.f32.mrf.mxu0
        %v1567 = vadd.f32 0.0, %v1566
        %v1568 = vpop.f32.mrf.mxu0
        %v1569 = vpop.f32.mrf.mxu0
        %v1570 = vpop.f32.mrf.mxu0
        %1571 = vdwg.mxu0
        %v1572 = vadd.f32 %v1524, %v1567
        %v1573 = vmul.f32 %v1572, 0.5
        %v1574 = vtanh.pop %v1573
        %v1575 = vmul.f32 %v1574, 0.5
        %v1576 = vadd.f32 %v1575, 0.5
        %v1577 = vmul.f32 %v1576, %v1517
        %1579 = vrot.lane.b32.xlu0 %v1574, 64
        %v1580 = vpop.permute.xlu0 %1579
        %v1582 = vmul.f32 %v1576, %v1580
        %1584 = vrot.lane.b32.xlu0 %v1582, 32
        %v1585 = vpop.permute.xlu0 %1584
        %v1587 = vadd.f32 %v1577, %v1585
        %v1588 = vtanh.pop %v1587
        %1590 = vrot.lane.b32.xlu0 %v1588, 64
        %v1591 = vpop.permute.xlu0 %1590
        %v1593 = vmul.f32 %v1576, %v1591
        %v1594 = vld [vmem:[%s827] sm:$0xff]
        %v1595 = vpack.c.bf16 %v1593, %v1593
        %1597 = vrot.lane.b32.xlu0 %v1595, 32
        %v1598 = vpop.permute.xlu0 %1597
        %v1600 = vsel %vm592, %v1598, 0
        %1602 = vmatprep.subr.bf16.mxu0 0
        %1603 = vmatpush1.bf16.msra.mxu0 0
        %1604 = vmatprep.subr.bf16.mxu0 0
        %1605 = vmatpush1.bf16.msra.mxu0 0
        %1606 = vmatprep.subr.bf16.mxu0 0
        %1607 = vmatpush1.bf16.msra.mxu0 0
        %1608 = vmatprep.subr.bf16.mxu0 0
        %1609 = vmatpush1.bf16.msra.mxu0 0
        %1610 = vmatprep.subr.bf16.mxu0 0
        %1611 = vmatpush1.bf16.msra.mxu0 0
        %1612 = vmatprep.subr.bf16.mxu0 0
        %1613 = vmatpush1.bf16.msra.mxu0 0
        %1614 = vmatprep.subr.bf16.mxu0 0
        %1615 = vmatpush1.bf16.msra.mxu0 %v1382
        %1616 = vmatprep.subr.bf16.mxu0 0
        %1617 = vmatpush1.bf16.msra.mxu0 %v1381
        %1618 = vmatprep.subr.bf16.mxu0 0
        %1619 = vmatpush2.bf16.msra.mxu0 0
        %1620 = vmatprep.subr.bf16.mxu0 0
        %1621 = vmatpush2.bf16.msra.mxu0 0
        %1622 = vmatprep.subr.bf16.mxu0 0
        %1623 = vmatpush2.bf16.msra.mxu0 0
        %1624 = vmatprep.subr.bf16.mxu0 0
        %1625 = vmatpush2.bf16.msra.mxu0 0
        %1626 = vmatprep.subr.bf16.mxu0 0
        %1627 = vmatpush2.bf16.msra.mxu0 0
        %1628 = vmatprep.subr.bf16.mxu0 0
        %1629 = vmatpush2.bf16.msra.mxu0 0
        %1630 = vmatprep.subr.bf16.mxu0 0
        %1631 = vmatpush2.bf16.msra.mxu0 0
        %1632 = vmatprep.subr.bf16.mxu0 0
        %1633 = vmatpush2.bf16.msra.mxu0 0
        %1634 = vmatprep.mubr.bf16.mxu0 0
        %1635 = vmatmul.mubr.bf16.gmra.mxu0 %v1600
        %v1636 = vpop.f32.mrf.mxu0
        %v1637 = vadd.f32 0.0, %v1636
        %v1638 = vpop.f32.mrf.mxu0
        %v1639 = vpop.f32.mrf.mxu0
        %v1640 = vpop.f32.mrf.mxu0
        %1641 = vdwg.mxu0
        %v1642 = vadd.f32 %v1594, %v1637
        %v1643 = vmul.f32 %v1642, 0.5
        %v1644 = vtanh.pop %v1643
        %v1645 = vmul.f32 %v1644, 0.5
        %v1646 = vadd.f32 %v1645, 0.5
        %v1647 = vmul.f32 %v1646, %v1587
        %1649 = vrot.lane.b32.xlu0 %v1644, 64
        %v1650 = vpop.permute.xlu0 %1649
        %v1652 = vmul.f32 %v1646, %v1650
        %1654 = vrot.lane.b32.xlu0 %v1652, 32
        %v1655 = vpop.permute.xlu0 %1654
        %v1657 = vadd.f32 %v1647, %v1655
        %v1658 = vtanh.pop %v1657
        %1660 = vrot.lane.b32.xlu0 %v1658, 64
        %v1661 = vpop.permute.xlu0 %1660
        %v1663 = vmul.f32 %v1646, %v1661
        %v1664 = vld [vmem:[%s905] sm:$0xff]
        %v1665 = vpack.c.bf16 %v1663, %v1663
        %1667 = vrot.lane.b32.xlu0 %v1665, 32
        %v1668 = vpop.permute.xlu0 %1667
        %v1670 = vsel %vm592, %v1668, 0
        %1672 = vmatprep.subr.bf16.mxu0 0
        %1673 = vmatpush1.bf16.msra.mxu0 0
        %1674 = vmatprep.subr.bf16.mxu0 0
        %1675 = vmatpush1.bf16.msra.mxu0 0
        %1676 = vmatprep.subr.bf16.mxu0 0
        %1677 = vmatpush1.bf16.msra.mxu0 0
        %1678 = vmatprep.subr.bf16.mxu0 0
        %1679 = vmatpush1.bf16.msra.mxu0 0
        %1680 = vmatprep.subr.bf16.mxu0 0
        %1681 = vmatpush1.bf16.msra.mxu0 0
        %1682 = vmatprep.subr.bf16.mxu0 0
        %1683 = vmatpush1.bf16.msra.mxu0 0
        %1684 = vmatprep.subr.bf16.mxu0 0
        %1685 = vmatpush1.bf16.msra.mxu0 %v1382
        %1686 = vmatprep.subr.bf16.mxu0 0
        %1687 = vmatpush1.bf16.msra.mxu0 %v1381
        %1688 = vmatprep.subr.bf16.mxu0 0
        %1689 = vmatpush2.bf16.msra.mxu0 0
        %1690 = vmatprep.subr.bf16.mxu0 0
        %1691 = vmatpush2.bf16.msra.mxu0 0
        %1692 = vmatprep.subr.bf16.mxu0 0
        %1693 = vmatpush2.bf16.msra.mxu0 0
        %1694 = vmatprep.subr.bf16.mxu0 0
        %1695 = vmatpush2.bf16.msra.mxu0 0
        %1696 = vmatprep.subr.bf16.mxu0 0
        %1697 = vmatpush2.bf16.msra.mxu0 0
        %1698 = vmatprep.subr.bf16.mxu0 0
        %1699 = vmatpush2.bf16.msra.mxu0 0
        %1700 = vmatprep.subr.bf16.mxu0 0
        %1701 = vmatpush2.bf16.msra.mxu0 0
        %1702 = vmatprep.subr.bf16.mxu0 0
        %1703 = vmatpush2.bf16.msra.mxu0 0
        %1704 = vmatprep.mubr.bf16.mxu0 0
        %1705 = vmatmul.mubr.bf16.gmra.mxu0 %v1670
        %v1706 = vpop.f32.mrf.mxu0
        %v1707 = vadd.f32 0.0, %v1706
        %v1708 = vpop.f32.mrf.mxu0
        %v1709 = vpop.f32.mrf.mxu0
        %v1710 = vpop.f32.mrf.mxu0
        %1711 = vdwg.mxu0
        %v1712 = vadd.f32 %v1664, %v1707
        %v1713 = vmul.f32 %v1712, 0.5
        %v1714 = vtanh.pop %v1713
        %v1715 = vmul.f32 %v1714, 0.5
        %v1716 = vadd.f32 %v1715, 0.5
        %v1717 = vmul.f32 %v1716, %v1657
        %1719 = vrot.lane.b32.xlu0 %v1714, 64
        %v1720 = vpop.permute.xlu0 %1719
        %v1722 = vmul.f32 %v1716, %v1720
        %1724 = vrot.lane.b32.xlu0 %v1722, 32
        %v1725 = vpop.permute.xlu0 %1724
        %v1727 = vadd.f32 %v1717, %v1725
        %v1728 = vtanh.pop %v1727
        %1730 = vrot.lane.b32.xlu0 %v1728, 64
        %v1731 = vpop.permute.xlu0 %1730
        %v1733 = vmul.f32 %v1716, %v1731
        %v1734 = vld [vmem:[%s983] sm:$0xff]
        %v1735 = vpack.c.bf16 %v1733, %v1733
        %1737 = vrot.lane.b32.xlu0 %v1735, 32
        %v1738 = vpop.permute.xlu0 %1737
        %v1740 = vsel %vm592, %v1738, 0
        %1742 = vmatprep.subr.bf16.mxu0 0
        %1743 = vmatpush1.bf16.msra.mxu0 0
        %1744 = vmatprep.subr.bf16.mxu0 0
        %1745 = vmatpush1.bf16.msra.mxu0 0
        %1746 = vmatprep.subr.bf16.mxu0 0
        %1747 = vmatpush1.bf16.msra.mxu0 0
        %1748 = vmatprep.subr.bf16.mxu0 0
        %1749 = vmatpush1.bf16.msra.mxu0 0
        %1750 = vmatprep.subr.bf16.mxu0 0
        %1751 = vmatpush1.bf16.msra.mxu0 0
        %1752 = vmatprep.subr.bf16.mxu0 0
        %1753 = vmatpush1.bf16.msra.mxu0 0
        %1754 = vmatprep.subr.bf16.mxu0 0
        %1755 = vmatpush1.bf16.msra.mxu0 %v1382
        %1756 = vmatprep.subr.bf16.mxu0 0
        %1757 = vmatpush1.bf16.msra.mxu0 %v1381
        %1758 = vmatprep.subr.bf16.mxu0 0
        %1759 = vmatpush2.bf16.msra.mxu0 0
        %1760 = vmatprep.subr.bf16.mxu0 0
        %1761 = vmatpush2.bf16.msra.mxu0 0
        %1762 = vmatprep.subr.bf16.mxu0 0
        %1763 = vmatpush2.bf16.msra.mxu0 0
        %1764 = vmatprep.subr.bf16.mxu0 0
        %1765 = vmatpush2.bf16.msra.mxu0 0
        %1766 = vmatprep.subr.bf16.mxu0 0
        %1767 = vmatpush2.bf16.msra.mxu0 0
        %1768 = vmatprep.subr.bf16.mxu0 0
        %1769 = vmatpush2.bf16.msra.mxu0 0
        %1770 = vmatprep.subr.bf16.mxu0 0
        %1771 = vmatpush2.bf16.msra.mxu0 0
        %1772 = vmatprep.subr.bf16.mxu0 0
        %1773 = vmatpush2.bf16.msra.mxu0 0
        %1774 = vmatprep.mubr.bf16.mxu0 0
        %1775 = vmatmul.mubr.bf16.gmra.mxu0 %v1740
        %v1776 = vpop.f32.mrf.mxu0
        %v1777 = vadd.f32 0.0, %v1776
        %v1778 = vpop.f32.mrf.mxu0
        %v1779 = vpop.f32.mrf.mxu0
        %v1780 = vpop.f32.mrf.mxu0
        %1781 = vdwg.mxu0
        %v1782 = vadd.f32 %v1734, %v1777
        %v1783 = vmul.f32 %v1782, 0.5
        %v1784 = vtanh.pop %v1783
        %v1785 = vmul.f32 %v1784, 0.5
        %v1786 = vadd.f32 %v1785, 0.5
        %v1787 = vmul.f32 %v1786, %v1727
        %1789 = vrot.lane.b32.xlu0 %v1784, 64
        %v1790 = vpop.permute.xlu0 %1789
        %v1792 = vmul.f32 %v1786, %v1790
        %1794 = vrot.lane.b32.xlu0 %v1792, 32
        %v1795 = vpop.permute.xlu0 %1794
        %v1797 = vadd.f32 %v1787, %v1795
        %v1798 = vtanh.pop %v1797
        %1800 = vrot.lane.b32.xlu0 %v1798, 64
        %v1801 = vpop.permute.xlu0 %1800
        %v1803 = vmul.f32 %v1786, %v1801
        %v1804 = vld [vmem:[%s1061] sm:$0xff]
        %v1805 = vpack.c.bf16 %v1803, %v1803
        %1807 = vrot.lane.b32.xlu0 %v1805, 32
        %v1808 = vpop.permute.xlu0 %1807
        %v1810 = vsel %vm592, %v1808, 0
        %1812 = vmatprep.subr.bf16.mxu0 0
        %1813 = vmatpush1.bf16.msra.mxu0 0
        %1814 = vmatprep.subr.bf16.mxu0 0
        %1815 = vmatpush1.bf16.msra.mxu0 0
        %1816 = vmatprep.subr.bf16.mxu0 0
        %1817 = vmatpush1.bf16.msra.mxu0 0
        %1818 = vmatprep.subr.bf16.mxu0 0
        %1819 = vmatpush1.bf16.msra.mxu0 0
        %1820 = vmatprep.subr.bf16.mxu0 0
        %1821 = vmatpush1.bf16.msra.mxu0 0
        %1822 = vmatprep.subr.bf16.mxu0 0
        %1823 = vmatpush1.bf16.msra.mxu0 0
        %1824 = vmatprep.subr.bf16.mxu0 0
        %1825 = vmatpush1.bf16.msra.mxu0 %v1382
        %1826 = vmatprep.subr.bf16.mxu0 0
        %1827 = vmatpush1.bf16.msra.mxu0 %v1381
        %1828 = vmatprep.subr.bf16.mxu0 0
        %1829 = vmatpush2.bf16.msra.mxu0 0
        %1830 = vmatprep.subr.bf16.mxu0 0
        %1831 = vmatpush2.bf16.msra.mxu0 0
        %1832 = vmatprep.subr.bf16.mxu0 0
        %1833 = vmatpush2.bf16.msra.mxu0 0
        %1834 = vmatprep.subr.bf16.mxu0 0
        %1835 = vmatpush2.bf16.msra.mxu0 0
        %1836 = vmatprep.subr.bf16.mxu0 0
        %1837 = vmatpush2.bf16.msra.mxu0 0
        %1838 = vmatprep.subr.bf16.mxu0 0
        %1839 = vmatpush2.bf16.msra.mxu0 0
        %1840 = vmatprep.subr.bf16.mxu0 0
        %1841 = vmatpush2.bf16.msra.mxu0 0
        %1842 = vmatprep.subr.bf16.mxu0 0
        %1843 = vmatpush2.bf16.msra.mxu0 0
        %1844 = vmatprep.mubr.bf16.mxu0 0
        %1845 = vmatmul.mubr.bf16.gmra.mxu0 %v1810
        %v1846 = vpop.f32.mrf.mxu0
        %v1847 = vadd.f32 0.0, %v1846
        %v1848 = vpop.f32.mrf.mxu0
        %v1849 = vpop.f32.mrf.mxu0
        %v1850 = vpop.f32.mrf.mxu0
        %1851 = vdwg.mxu0
        %v1852 = vadd.f32 %v1804, %v1847
        %v1853 = vmul.f32 %v1852, 0.5
        %v1854 = vtanh.pop %v1853
        %v1855 = vmul.f32 %v1854, 0.5
        %v1856 = vadd.f32 %v1855, 0.5
        %v1857 = vmul.f32 %v1856, %v1797
        %1859 = vrot.lane.b32.xlu0 %v1854, 64
        %v1860 = vpop.permute.xlu0 %1859
        %v1862 = vmul.f32 %v1856, %v1860
        %1864 = vrot.lane.b32.xlu0 %v1862, 32
        %v1865 = vpop.permute.xlu0 %1864
        %v1867 = vadd.f32 %v1857, %v1865
        %v1868 = vtanh.pop %v1867
        %1870 = vrot.lane.b32.xlu0 %v1868, 64
        %v1871 = vpop.permute.xlu0 %1870
        %v1873 = vmul.f32 %v1856, %v1871
        %v1874 = vld [vmem:[%s1139] sm:$0xff]
        %v1875 = vpack.c.bf16 %v1873, %v1873
        %1877 = vrot.lane.b32.xlu0 %v1875, 32
        %v1878 = vpop.permute.xlu0 %1877
        %v1880 = vsel %vm592, %v1878, 0
        %1882 = vmatprep.subr.bf16.mxu0 0
        %1883 = vmatpush1.bf16.msra.mxu0 0
        %1884 = vmatprep.subr.bf16.mxu0 0
        %1885 = vmatpush1.bf16.msra.mxu0 0
        %1886 = vmatprep.subr.bf16.mxu0 0
        %1887 = vmatpush1.bf16.msra.mxu0 0
        %1888 = vmatprep.subr.bf16.mxu0 0
        %1889 = vmatpush1.bf16.msra.mxu0 0
        %1890 = vmatprep.subr.bf16.mxu0 0
        %1891 = vmatpush1.bf16.msra.mxu0 0
        %1892 = vmatprep.subr.bf16.mxu0 0
        %1893 = vmatpush1.bf16.msra.mxu0 0
        %1894 = vmatprep.subr.bf16.mxu0 0
        %1895 = vmatpush1.bf16.msra.mxu0 %v1382
        %1896 = vmatprep.subr.bf16.mxu0 0
        %1897 = vmatpush1.bf16.msra.mxu0 %v1381
        %1898 = vmatprep.subr.bf16.mxu0 0
        %1899 = vmatpush2.bf16.msra.mxu0 0
        %1900 = vmatprep.subr.bf16.mxu0 0
        %1901 = vmatpush2.bf16.msra.mxu0 0
        %1902 = vmatprep.subr.bf16.mxu0 0
        %1903 = vmatpush2.bf16.msra.mxu0 0
        %1904 = vmatprep.subr.bf16.mxu0 0
        %1905 = vmatpush2.bf16.msra.mxu0 0
        %1906 = vmatprep.subr.bf16.mxu0 0
        %1907 = vmatpush2.bf16.msra.mxu0 0
        %1908 = vmatprep.subr.bf16.mxu0 0
        %1909 = vmatpush2.bf16.msra.mxu0 0
        %1910 = vmatprep.subr.bf16.mxu0 0
        %1911 = vmatpush2.bf16.msra.mxu0 0
        %1912 = vmatprep.subr.bf16.mxu0 0
        %1913 = vmatpush2.bf16.msra.mxu0 0
        %1914 = vmatprep.mubr.bf16.mxu0 0
        %1915 = vmatmul.mubr.bf16.gmra.mxu0 %v1880
        %v1916 = vpop.f32.mrf.mxu0
        %v1917 = vadd.f32 0.0, %v1916
        %v1918 = vpop.f32.mrf.mxu0
        %v1919 = vpop.f32.mrf.mxu0
        %v1920 = vpop.f32.mrf.mxu0
        %1921 = vdwg.mxu0
        %v1922 = vadd.f32 %v1874, %v1917
        %v1923 = vmul.f32 %v1922, 0.5
        %v1924 = vtanh.pop %v1923
        %v1925 = vmul.f32 %v1924, 0.5
        %v1926 = vadd.f32 %v1925, 0.5
        %v1927 = vmul.f32 %v1926, %v1867
        %1929 = vrot.lane.b32.xlu0 %v1924, 64
        %v1930 = vpop.permute.xlu0 %1929
        %v1932 = vmul.f32 %v1926, %v1930
        %1934 = vrot.lane.b32.xlu0 %v1932, 32
        %v1935 = vpop.permute.xlu0 %1934
        %v1937 = vadd.f32 %v1927, %v1935
        %v1938 = vtanh.pop %v1937
        %1940 = vrot.lane.b32.xlu0 %v1938, 64
        %v1941 = vpop.permute.xlu0 %1940
        %v1943 = vmul.f32 %v1926, %v1941
        %1945 = vrot.lane.b32.xlu0 %v1943, 32
        %v1946 = vpop.permute.xlu0 %1945
        %1948 = vst.msk [vmem:[%s1367] sm:$0xff] %vm592, %v1946
        %1950 = vrot.lane.b32.xlu0 %v1937, 96
        %v1951 = vpop.permute.xlu0 %1950
        %1953 = vst.msk [vmem:[%s1369] sm:$0xff] %vm592, %v1951
        %p1954 = scmp.eq.s32.totalorder %s32, 1
        // Predicated region
        $region85: #{tpu_custom_call.1} parent=55 // pred_check
          %p1955 = pneg %p1954
        $region86: #{tpu_custom_call.1} parent=55 // pred_check_branch
          %1957 = sbr.rel (%p1955) target = $region88
        $region87: #{tpu_custom_call.1} parent=55 // pred_region
          %v1958 = vld [vmem:[%s1367] sm:$0xff]
          %v1959 = vld [vmem:[#allocation15] sm:$0xff]
          %v1960 = vld [vmem:[#allocation15 + $0x8] sm:$0xff]
          %v1961 = vld [vmem:[#allocation15 + $0x10] sm:$0xff]
          %v1962 = vld [vmem:[#allocation15 + $0x18] sm:$0xff]
          %v1963 = vld [vmem:[%s8] sm:$0x1]
          %v1965 = vlaneseq
          %v1966 = vshrl.u32 %v1965, 7
          %v1967 = vsub.s32 0, %v1966
          %v1968 = vrot.slane %v1963, %v1967
          %v1971 = vsel %vm592, %v1958, 0
          %1973 = vmatprep.subr.mxu0 0.0
          %1974 = vmatpush1.msra.mxu0 0.0
          %1975 = vmatprep.subr.mxu0 0.0
          %1976 = vmatpush1.msra.mxu0 0.0
          %1977 = vmatprep.subr.mxu0 0.0
          %1978 = vmatpush1.msra.mxu0 0.0
          %1979 = vmatprep.subr.mxu0 0.0
          %1980 = vmatpush1.msra.mxu0 0.0
          %1981 = vmatprep.subr.mxu0 0.0
          %1982 = vmatpush1.msra.mxu0 0.0
          %1983 = vmatprep.subr.mxu0 0.0
          %1984 = vmatpush1.msra.mxu0 0.0
          %1985 = vmatprep.subr.mxu0 0.0
          %1986 = vmatpush1.msra.mxu0 0.0
          %1987 = vmatprep.subr.mxu0 0.0
          %1988 = vmatpush1.msra.mxu0 0.0
          %1989 = vmatprep.subr.mxu0 0.0
          %1990 = vmatpush1.msra.mxu0 0.0
          %1991 = vmatprep.subr.mxu0 0.0
          %1992 = vmatpush1.msra.mxu0 0.0
          %1993 = vmatprep.subr.mxu0 0.0
          %1994 = vmatpush1.msra.mxu0 0.0
          %1995 = vmatprep.subr.mxu0 0.0
          %1996 = vmatpush1.msra.mxu0 0.0
          %1997 = vmatprep.subr.mxu0 0.0
          %1998 = vmatpush1.msra.mxu0 %v1962
          %1999 = vmatprep.subr.mxu0 0.0
          %2000 = vmatpush1.msra.mxu0 %v1961
          %2001 = vmatprep.subr.mxu0 0.0
          %2002 = vmatpush1.msra.mxu0 %v1960
          %2003 = vmatprep.subr.mxu0 0.0
          %2004 = vmatpush1.msra.mxu0 %v1959
          %2005 = vmatprep.subr.mxu0 0.0
          %2006 = vmatpush2.msra.mxu0 0.0
          %2007 = vmatprep.subr.mxu0 0.0
          %2008 = vmatpush2.msra.mxu0 0.0
          %2009 = vmatprep.subr.mxu0 0.0
          %2010 = vmatpush2.msra.mxu0 0.0
          %2011 = vmatprep.subr.mxu0 0.0
          %2012 = vmatpush2.msra.mxu0 0.0
          %2013 = vmatprep.subr.mxu0 0.0
          %2014 = vmatpush2.msra.mxu0 0.0
          %2015 = vmatprep.subr.mxu0 0.0
          %2016 = vmatpush2.msra.mxu0 0.0
          %2017 = vmatprep.subr.mxu0 0.0
          %2018 = vmatpush2.msra.mxu0 0.0
          %2019 = vmatprep.subr.mxu0 0.0
          %2020 = vmatpush2.msra.mxu0 0.0
          %2021 = vmatprep.subr.mxu0 0.0
          %2022 = vmatpush2.msra.mxu0 0.0
          %2023 = vmatprep.subr.mxu0 0.0
          %2024 = vmatpush2.msra.mxu0 0.0
          %2025 = vmatprep.subr.mxu0 0.0
          %2026 = vmatpush2.msra.mxu0 0.0
          %2027 = vmatprep.subr.mxu0 0.0
          %2028 = vmatpush2.msra.mxu0 0.0
          %2029 = vmatprep.subr.mxu0 0.0
          %2030 = vmatpush2.msra.mxu0 0.0
          %2031 = vmatprep.subr.mxu0 0.0
          %2032 = vmatpush2.msra.mxu0 0.0
          %2033 = vmatprep.subr.mxu0 0.0
          %2034 = vmatpush2.msra.mxu0 0.0
          %2035 = vmatprep.subr.mxu0 0.0
          %2036 = vmatpush2.msra.mxu0 0.0
          %2037 = vmatprep.mubr.f32.mxu0 0.0
          %2038 = vmatmul.mubr.f32.gmra.mxu0 %v1971
          %v2039 = vpop.f32.mrf.mxu0
          %v2040 = vadd.f32 %v1968, %v2039
          %v2041 = vpop.f32.mrf.mxu0
          %2042 = vdwg.mxu0
          %2043 = vst [vmem:[#allocation17] sm:$0xff] %v2040
        $region88: #{tpu_custom_call.1} parent=55 // pred_fallthru
          _
        // Predicated region
        $region89: #{tpu_custom_call.1} parent=55 // pred_check
          %p2044 = pneg %p253
        $region90: #{tpu_custom_call.1} parent=55 // pred_check_branch
          %2046 = sbr.rel (%p2044) target = $region92
        $region91: #{tpu_custom_call.1} parent=55 // pred_region
          %s2048 = ssub.s32 128, 128
          %2049 = vsyncadd [#allocation8], %s2048
          %s2050 = smul.addr %s31, 128
          %s2051 = scalar_lea.hbm %s9, %s2050
          %s2053 = sshll.u32 [#allocation17], 4
          %s2054 = int_to_ptr.vmem [resolvable:$true] %s2053
          %2056 = dma.vmem_to_hbm [thread:$0]  %s2054, 128, %s2051, [#allocation8]
        $region92: #{tpu_custom_call.1} parent=55 // pred_fallthru
          _
        // Predicated region
        $region93: #{tpu_custom_call.1} parent=55 // pred_check
          %p2057 = pneg %p253
        $region94: #{tpu_custom_call.1} parent=55 // pred_check_branch
          %2059 = sbr.rel (%p2057) target = $region96
        $region95: #{tpu_custom_call.1} parent=55 // pred_region
          %2060 = dma.done [#allocation8], 128
        $region96: #{tpu_custom_call.1} parent=55 // pred_fallthru
          _
      $region56: #{tpu_custom_call.1} parent=5 // pred_fallthru
        _
      %p2061 = scmp.le.s32.totalorder 2, %s22
      // Predicated region
      $region97: #{tpu_custom_call.1} parent=5 // pred_check
        %p2062 = pneg %p2061
      $region98: #{tpu_custom_call.1} parent=5 // pred_check_branch
        %2064 = sbr.rel (%p2062) target = $region100
      $region99: #{tpu_custom_call.1} parent=5 // pred_region
        %s2065 = ssub.s32 %s22, 2
      $region100: #{tpu_custom_call.1} parent=5 // pred_fallthru
        _
    $region6: #{tpu_custom_call.1} parent=1 // loop_footer
      %s26 = sadd.s32 1, %s22
    $region7: #{tpu_custom_call.1} parent=1 // loop_footer_branch
      %21 = sbr.rel target = $region3
    $region8: #{tpu_custom_call.1} parent=1 // loop_exit
      _
    %2066 = vsyncpa [#allocation7], 1
    %s2067 = scalar_lea.sflag [#allocation7], 1
    %2068 = vsyncpa %s2067, 1
    %2069 = vsyncpa [#allocation10], 1
    %2070 = vsyncpa [#allocation13], 1
    %2071 = vsyncpa [#allocation16], 1
    %2072 = vsyncpa [#allocation8], 1
    %s2073 = scalar_lea.sflag [#allocation8], 1
    %2074 = vsyncpa %s2073, 1

// kernel: tpu_custom_call.1
$region0: #{tpu_custom_call.1}
  #allocation0 [shape = 'u32[]', space=smem, size = 0x4, offset = 0x4, fixed_abs, tag = 'smem constant byte address 0x4 - core index']
  #allocation1 [shape = 'u32[144,128]{1,0:T(1,128)}', space=vmem, size = 0x12000, scoped, tag = 'internal scratch']
  #allocation2 [shape = 'f32[2,8,32]{2,1,0:T(8,128)}', space=vmem, size = 0x2000, scoped, tag = 'scratch operand']
  #allocation3 [shape = 'f32[2,8,32]{2,1,0:T(8,128)}', space=vmem, size = 0x2000, scoped, tag = 'scratch operand']
  #allocation4 [shape = 'bf16[8,8,32]{2,1,0:T(8,128)(2,1)}', space=vmem, size = 0x4000, scoped, tag = 'scratch operand']
  #allocation5 [shape = 'f32[8,8,128]{2,1,0:T(8,128)}', space=vmem, size = 0x8000, scoped, tag = 'scratch operand']
  %s0 = inlined_call_operand.hbm [shape: bf16[16,8,16], index: 0, kind: input, shape index: {}]
  %s1 = inlined_call_operand.hbm [shape: bf16[16,128], index: 1, kind: input, shape index: {}]
  %s2 = inlined_call_operand.hbm [shape: bf16[32,128], index: 2, kind: input, shape index: {}]
  %s3 = inlined_call_operand.vmem [shape: f32[1,128], index: 3, kind: input, shape index: {}]
  %s4 = inlined_call_operand.hbm [shape: bf16[32,128], index: 4, kind: input, shape index: {}]
  %s5 = inlined_call_operand.hbm [shape: bf16[32,128], index: 5, kind: input, shape index: {}]
  %s6 = inlined_call_operand.vmem [shape: f32[1,128], index: 6, kind: input, shape index: {}]
  %s7 = inlined_call_operand.hbm [shape: f32[32,128], index: 7, kind: input, shape index: {}]
  %s8 = inlined_call_operand.vmem [shape: f32[1,128], index: 8, kind: input, shape index: {}]
  %s9 = inlined_call_operand.hbm [shape: f32[8,128], index: 9, kind: output, shape index: {}]
  %s10 = sld [smem:[#allocation0]]
  $region101: #{tpu_custom_call.1} parent=0
    _
  %s12 = ssub.s32 1, %s10
  %s13 = scalar_select 0, %s12, %s10
  $region1: #{tpu_custom_call.1} parent=0
    #allocation6 [shape = 'u8[32768]{0}', space=vmem, size = 0x8000, scoped, tag = 'input window, operand 0']
    #allocation7 [shape = 's32[2]{0}', space=sflag, size = 0x8, scoped, tag = 'scoped memory for tpu_custom_call.1']
    #allocation8 [shape = 's32[2]{0}', space=sflag, size = 0x8, scoped, tag = 'scoped memory for tpu_custom_call.1']
    #allocation9 [shape = 'u8[4096]{0}', space=vmem, size = 0x1000, scoped, tag = 'input window, operand 1, single buffered']
    #allocation10 [shape = 's32[1]{0}', space=sflag, size = 0x4, scoped, tag = 'scoped memory for tpu_custom_call.1']
    #allocation11 [shape = 'u8[8192]{0}', space=vmem, size = 0x2000, scoped, tag = 'input window, operand 2, single buffered']
    #allocation12 [shape = 'u8[8192]{0}', space=vmem, size = 0x2000, scoped, tag = 'input window, operand 4, single buffered']
    #allocation13 [shape = 's32[1]{0}', space=sflag, size = 0x4, scoped, tag = 'scoped memory for tpu_custom_call.1']
    #allocation14 [shape = 'u8[8192]{0}', space=vmem, size = 0x2000, scoped, tag = 'input window, operand 5, single buffered']
    #allocation15 [shape = 'u8[16384]{0}', space=vmem, size = 0x4000, scoped, tag = 'input window, operand 7, single buffered']
    #allocation16 [shape = 's32[1]{0}', space=sflag, size = 0x4, scoped, tag = 'scoped memory for tpu_custom_call.1']
    #allocation17 [shape = 'u8[4096]{0}', space=vmem, size = 0x1000, scoped, tag = 'output window, operand 0, single buffered']
    %14 = vsyncpa [#allocation7], 0
    %s15 = scalar_lea.sflag [#allocation7], 1
    %16 = vsyncpa %s15, 0
    %17 = vsyncpa [#allocation10], 0
    %18 = vsyncpa [#allocation13], 0
    %19 = vsyncpa [#allocation16], 0
    %20 = vsyncpa [#allocation8], 0
    loop: start=0, step=1, limit=4
    $region2: #{tpu_custom_call.1} parent=1 // loop_pre_header
      _
    $region3: #{tpu_custom_call.1} parent=1 // loop_header
      %s22 = sphi 0, %s26
      %p23 = scmp.ge.s32.totalorder %s22, 4
      %s29 = sphi 0, %s41
      %s30 = sphi 0, %s37
      %s31 = sphi 0, %s29
      %s32 = sphi 0, %s30
      %s33 = sphi 0, %s31
      %s34 = sphi 0, %s32
      %s46 = sphi 0, %s48
      %s49 = sphi 0, %s46
      %s50 = sphi 0, %s49
      %s66 = sphi 0, %s50
      %s70 = sphi 0, %s70
      %s72 = sphi 0, %s70
      %s73 = sphi 0, %s72
      %s87 = sphi 0, %s73
      %s91 = sphi 0, %s91
      %s93 = sphi 0, %s91
      %s94 = sphi 0, %s93
      %s108 = sphi 0, %s94
      %s112 = sphi 0, %s112
      %s114 = sphi 0, %s112
      %s115 = sphi 0, %s114
      %s129 = sphi 0, %s115
      %s133 = sphi 0, %s133
      %s135 = sphi 0, %s133
      %s136 = sphi 0, %s135
      %s150 = sphi 0, %s136
      %s154 = sphi 0, %s154
      %s156 = sphi 0, %s154
      %s157 = sphi 0, %s156
      %s171 = sphi 0, %s157
      %s175 = sphi 0, %s175
      %s177 = sphi 0, %s175
      %s178 = sphi 0, %s177
      %s192 = sphi 0, %s178
      %s196 = sphi 0, %s196
      %s198 = sphi 0, %s196
      %s199 = sphi 0, %s198
      %s213 = sphi 0, %s199
      %s217 = sphi 0, %s217
      %s219 = sphi 0, %s217
      %s220 = sphi 0, %s219
      %s234 = sphi 0, %s220
      %s240 = sphi 0, %s242
      %s243 = sphi 0, %s240
      %s244 = sphi 0, %s243
      %s260 = sphi 0, %s244
    $region4: #{tpu_custom_call.1} parent=1 // loop_header_branch
      %25 = sbr.rel (%p23) target = $region8
    $region5: #{tpu_custom_call.1} parent=1 // loop_body
      %s27 = ssub.s32 %s22, 1
      %s28 = ssub.s32 %s22, 2
      %s35 = sadd.s32 1, %s30
      %p36 = scmp.ge.s32.totalorder %s35, 2
      %s37 = scalar_select %p36, 0, %s35
      %s38 = sadd.s32 1, %s29
      %s39 = scalar_select %p36, %s38, %s29
      %p40 = scmp.ge.s32.totalorder %s39, 1
      %s41 = scalar_select %p40, 0, %s39
      %s42 = ssub.s32 %s30, %s37
      %s43 = ssub.s32 %s29, %s41
      %s44 = sor.u32 %s42, %s43
      %p45 = scmp.eq.s32.totalorder %s44, 0
      %s47 = sadd.s32 %s46, 1
      %s48 = scalar_select %p45, %s46, %s47
      %p51 = pneg %p45
      %p52 = scmp.eq.s32.totalorder %s22, 1
      %p53 = por %p51, %p52
      %p54 = scmp.ne.s32.totalorder %s46, %s49
      %p55 = scmp.eq.s32.totalorder %s22, 0
      %p56 = por %p54, %p55
      %p57 = scmp.ne.s32.totalorder %s46, %s49
      %p58 = scmp.eq.s32.totalorder %s27, 1
      %p59 = por %p57, %p58
      %p60 = scmp.ne.s32.totalorder %s49, %s50
      %p61 = scmp.eq.s32.totalorder %s27, 0
      %p62 = por %p60, %p61
      %p63 = scmp.ne.s32.totalorder %s49, %s50
      %p64 = scmp.eq.s32.totalorder %s28, 1
      %p65 = por %p63, %p64
      %p67 = scmp.ne.s32.totalorder %s50, %s66
      %p68 = scmp.eq.s32.totalorder %s28, 0
      %p69 = por %p67, %p68
      %s71 = sadd.s32 %s70, 1
      %p74 = scmp.eq.s32.totalorder %s22, 1
      %p75 = scmp.ne.s32.totalorder %s70, %s72
      %p76 = scmp.eq.s32.totalorder %s22, 0
      %p77 = por %p75, %p76
      %p78 = scmp.ne.s32.totalorder %s70, %s72
      %p79 = scmp.eq.s32.totalorder %s27, 1
      %p80 = por %p78, %p79
      %p81 = scmp.ne.s32.totalorder %s72, %s73
      %p82 = scmp.eq.s32.totalorder %s27, 0
      %p83 = por %p81, %p82
      %p84 = scmp.ne.s32.totalorder %s72, %s73
      %p85 = scmp.eq.s32.totalorder %s28, 1
      %p86 = por %p84, %p85
      %p88 = scmp.ne.s32.totalorder %s73, %s87
      %p89 = scmp.eq.s32.totalorder %s28, 0
      %p90 = por %p88, %p89
      %s92 = sadd.s32 %s91, 1
      %p95 = scmp.eq.s32.totalorder %s22, 1
      %p96 = scmp.ne.s32.totalorder %s91, %s93
      %p97 = scmp.eq.s32.totalorder %s22, 0
      %p98 = por %p96, %p97
      %p99 = scmp.ne.s32.totalorder %s91, %s93
      %p100 = scmp.eq.s32.totalorder %s27, 1
      %p101 = por %p99, %p100
      %p102 = scmp.ne.s32.totalorder %s93, %s94
      %p103 = scmp.eq.s32.totalorder %s27, 0
      %p104 = por %p102, %p103
      %p105 = scmp.ne.s32.totalorder %s93, %s94
      %p106 = scmp.eq.s32.totalorder %s28, 1
      %p107 = por %p105, %p106
      %p109 = scmp.ne.s32.totalorder %s94, %s108
      %p110 = scmp.eq.s32.totalorder %s28, 0
      %p111 = por %p109, %p110
      %s113 = sadd.s32 %s112, 1
      %p116 = scmp.eq.s32.totalorder %s22, 1
      %p117 = scmp.ne.s32.totalorder %s112, %s114
      %p118 = scmp.eq.s32.totalorder %s22, 0
      %p119 = por %p117, %p118
      %p120 = scmp.ne.s32.totalorder %s112, %s114
      %p121 = scmp.eq.s32.totalorder %s27, 1
      %p122 = por %p120, %p121
      %p123 = scmp.ne.s32.totalorder %s114, %s115
      %p124 = scmp.eq.s32.totalorder %s27, 0
      %p125 = por %p123, %p124
      %p126 = scmp.ne.s32.totalorder %s114, %s115
      %p127 = scmp.eq.s32.totalorder %s28, 1
      %p128 = por %p126, %p127
      %p130 = scmp.ne.s32.totalorder %s115, %s129
      %p131 = scmp.eq.s32.totalorder %s28, 0
      %p132 = por %p130, %p131
      %s134 = sadd.s32 %s133, 1
      %p137 = scmp.eq.s32.totalorder %s22, 1
      %p138 = scmp.ne.s32.totalorder %s133, %s135
      %p139 = scmp.eq.s32.totalorder %s22, 0
      %p140 = por %p138, %p139
      %p141 = scmp.ne.s32.totalorder %s133, %s135
      %p142 = scmp.eq.s32.totalorder %s27, 1
      %p143 = por %p141, %p142
      %p144 = scmp.ne.s32.totalorder %s135, %s136
      %p145 = scmp.eq.s32.totalorder %s27, 0
      %p146 = por %p144, %p145
      %p147 = scmp.ne.s32.totalorder %s135, %s136
      %p148 = scmp.eq.s32.totalorder %s28, 1
      %p149 = por %p147, %p148
      %p151 = scmp.ne.s32.totalorder %s136, %s150
      %p152 = scmp.eq.s32.totalorder %s28, 0
      %p153 = por %p151, %p152
      %s155 = sadd.s32 %s154, 1
      %p158 = scmp.eq.s32.totalorder %s22, 1
      %p159 = scmp.ne.s32.totalorder %s154, %s156
      %p160 = scmp.eq.s32.totalorder %s22, 0
      %p161 = por %p159, %p160
      %p162 = scmp.ne.s32.totalorder %s154, %s156
      %p163 = scmp.eq.s32.totalorder %s27, 1
      %p164 = por %p162, %p163
      %p165 = scmp.ne.s32.totalorder %s156, %s157
      %p166 = scmp.eq.s32.totalorder %s27, 0
      %p167 = por %p165, %p166
      %p168 = scmp.ne.s32.totalorder %s156, %s157
      %p169 = scmp.eq.s32.totalorder %s28, 1
      %p170 = por %p168, %p169
      %p172 = scmp.ne.s32.totalorder %s157, %s171
      %p173 = scmp.eq.s32.totalorder %s28, 0
      %p174 = por %p172, %p173
      %s176 = sadd.s32 %s175, 1
      %p179 = scmp.eq.s32.totalorder %s22, 1
      %p180 = scmp.ne.s32.totalorder %s175, %s177
      %p181 = scmp.eq.s32.totalorder %s22, 0
      %p182 = por %p180, %p181
      %p183 = scmp.ne.s32.totalorder %s175, %s177
      %p184 = scmp.eq.s32.totalorder %s27, 1
      %p185 = por %p183, %p184
      %p186 = scmp.ne.s32.totalorder %s177, %s178
      %p187 = scmp.eq.s32.totalorder %s27, 0
      %p188 = por %p186, %p187
      %p189 = scmp.ne.s32.totalorder %s177, %s178
      %p190 = scmp.eq.s32.totalorder %s28, 1
      %p191 = por %p189, %p190
      %p193 = scmp.ne.s32.totalorder %s178, %s192
      %p194 = scmp.eq.s32.totalorder %s28, 0
      %p195 = por %p193, %p194
      %s197 = sadd.s32 %s196, 1
      %p200 = scmp.eq.s32.totalorder %s22, 1
      %p201 = scmp.ne.s32.totalorder %s196, %s198
      %p202 = scmp.eq.s32.totalorder %s22, 0
      %p203 = por %p201, %p202
      %p204 = scmp.ne.s32.totalorder %s196, %s198
      %p205 = scmp.eq.s32.totalorder %s27, 1
      %p206 = por %p204, %p205
      %p207 = scmp.ne.s32.totalorder %s198, %s199
      %p208 = scmp.eq.s32.totalorder %s27, 0
      %p209 = por %p207, %p208
      %p210 = scmp.ne.s32.totalorder %s198, %s199
      %p211 = scmp.eq.s32.totalorder %s28, 1
      %p212 = por %p210, %p211
      %p214 = scmp.ne.s32.totalorder %s199, %s213
      %p215 = scmp.eq.s32.totalorder %s28, 0
      %p216 = por %p214, %p215
      %s218 = sadd.s32 %s217, 1
      %p221 = scmp.eq.s32.totalorder %s22, 1
      %p222 = scmp.ne.s32.totalorder %s217, %s219
      %p223 = scmp.eq.s32.totalorder %s22, 0
      %p224 = por %p222, %p223
      %p225 = scmp.ne.s32.totalorder %s217, %s219
      %p226 = scmp.eq.s32.totalorder %s27, 1
      %p227 = por %p225, %p226
      %p228 = scmp.ne.s32.totalorder %s219, %s220
      %p229 = scmp.eq.s32.totalorder %s27, 0
      %p230 = por %p228, %p229
      %p231 = scmp.ne.s32.totalorder %s219, %s220
      %p232 = scmp.eq.s32.totalorder %s28, 1
      %p233 = por %p231, %p232
      %p235 = scmp.ne.s32.totalorder %s220, %s234
      %p236 = scmp.eq.s32.totalorder %s28, 0
      %p237 = por %p235, %p236
      %s238 = ssub.s32 %s29, %s41
      %p239 = scmp.eq.s32.totalorder %s238, 0
      %s241 = sadd.s32 %s240, 1
      %s242 = scalar_select %p239, %s240, %s241
      %p245 = pneg %p239
      %p246 = scmp.eq.s32.totalorder %s22, 1
      %p247 = por %p245, %p246
      %p248 = scmp.ne.s32.totalorder %s240, %s243
      %p249 = scmp.eq.s32.totalorder %s22, 0
      %p250 = por %p248, %p249
      %p251 = scmp.ne.s32.totalorder %s240, %s243
      %p252 = scmp.eq.s32.totalorder %s27, 1
      %p253 = por %p251, %p252
      %p254 = scmp.ne.s32.totalorder %s243, %s244
      %p255 = scmp.eq.s32.totalorder %s27, 0
      %p256 = por %p254, %p255
      %p257 = scmp.ne.s32.totalorder %s243, %s244
      %p258 = scmp.eq.s32.totalorder %s28, 1
      %p259 = por %p257, %p258
      %p261 = scmp.ne.s32.totalorder %s244, %s260
      %p262 = scmp.eq.s32.totalorder %s28, 0
      %p263 = por %p261, %p262
      %p264 = scmp.le.s32.totalorder 1, %s22
      %p265 = scmp.lt.s32.totalorder %s22, 3
      %p266 = pnand %p264, %p265
      %p267 = pneg %p266
      // Predicated region
      $region9: #{tpu_custom_call.1} parent=5 // pred_check
        _
      $region10: #{tpu_custom_call.1} parent=5 // pred_check_branch
        %269 = sbr.rel (%p266) target = $region12
      $region11: #{tpu_custom_call.1} parent=5 // pred_region
        %s270 = ssub.s32 %s22, 1
        // Predicated region
        $region13: #{tpu_custom_call.1} parent=11 // pred_check
          %p271 = pneg %p83
        $region14: #{tpu_custom_call.1} parent=11 // pred_check_branch
          %273 = sbr.rel (%p271) target = $region16
        $region15: #{tpu_custom_call.1} parent=11 // pred_region
          %s275 = ssub.s32 128, 128
          %276 = vsyncadd [#allocation10], %s275
          %s277 = sshll.u32 [#allocation9], 4
          %s278 = int_to_ptr.vmem [resolvable:$true] %s277
          %283 = dma.hbm_to_vmem [thread:$0]  %s1, 128, %s278, [#allocation10], 64, 64, 4
        $region16: #{tpu_custom_call.1} parent=11 // pred_fallthru
          _
        // Predicated region
        $region17: #{tpu_custom_call.1} parent=11 // pred_check
          %p284 = pneg %p104
        $region18: #{tpu_custom_call.1} parent=11 // pred_check_branch
          %286 = sbr.rel (%p284) target = $region20
        $region19: #{tpu_custom_call.1} parent=11 // pred_region
          %s288 = ssub.s32 256, 256
          %289 = vsyncadd [#allocation10], %s288
          %s290 = sshll.u32 [#allocation11], 4
          %s291 = int_to_ptr.vmem [resolvable:$true] %s290
          %296 = dma.hbm_to_vmem [thread:$0]  %s2, 256, %s291, [#allocation10], 64, 64, 4
        $region20: #{tpu_custom_call.1} parent=11 // pred_fallthru
          _
        // Predicated region
        $region21: #{tpu_custom_call.1} parent=11 // pred_check
          %p297 = pneg %p125
        $region22: #{tpu_custom_call.1} parent=11 // pred_check_branch
          %299 = sbr.rel (%p297) target = $region24
        $region23: #{tpu_custom_call.1} parent=11 // pred_region
          _
        $region24: #{tpu_custom_call.1} parent=11 // pred_fallthru
          _
        // Predicated region
        $region25: #{tpu_custom_call.1} parent=11 // pred_check
          %p300 = pneg %p146
        $region26: #{tpu_custom_call.1} parent=11 // pred_check_branch
          %302 = sbr.rel (%p300) target = $region28
        $region27: #{tpu_custom_call.1} parent=11 // pred_region
          %s304 = ssub.s32 256, 256
          %305 = vsyncadd [#allocation13], %s304
          %s306 = sshll.u32 [#allocation12], 4
          %s307 = int_to_ptr.vmem [resolvable:$true] %s306
          %312 = dma.hbm_to_vmem [thread:$0]  %s4, 256, %s307, [#allocation13], 64, 64, 4
        $region28: #{tpu_custom_call.1} parent=11 // pred_fallthru
          _
        // Predicated region
        $region29: #{tpu_custom_call.1} parent=11 // pred_check
          %p313 = pneg %p167
        $region30: #{tpu_custom_call.1} parent=11 // pred_check_branch
          %315 = sbr.rel (%p313) target = $region32
        $region31: #{tpu_custom_call.1} parent=11 // pred_region
          %s317 = ssub.s32 256, 256
          %318 = vsyncadd [#allocation13], %s317
          %s319 = sshll.u32 [#allocation14], 4
          %s320 = int_to_ptr.vmem [resolvable:$true] %s319
          %325 = dma.hbm_to_vmem [thread:$0]  %s5, 256, %s320, [#allocation13], 64, 64, 4
        $region32: #{tpu_custom_call.1} parent=11 // pred_fallthru
          _
        // Predicated region
        $region33: #{tpu_custom_call.1} parent=11 // pred_check
          %p326 = pneg %p188
        $region34: #{tpu_custom_call.1} parent=11 // pred_check_branch
          %328 = sbr.rel (%p326) target = $region36
        $region35: #{tpu_custom_call.1} parent=11 // pred_region
          _
        $region36: #{tpu_custom_call.1} parent=11 // pred_fallthru
          _
        // Predicated region
        $region37: #{tpu_custom_call.1} parent=11 // pred_check
          %p329 = pneg %p209
        $region38: #{tpu_custom_call.1} parent=11 // pred_check_branch
          %331 = sbr.rel (%p329) target = $region40
        $region39: #{tpu_custom_call.1} parent=11 // pred_region
          %s333 = ssub.s32 512, 512
          %334 = vsyncadd [#allocation16], %s333
          %s335 = sshll.u32 [#allocation15], 4
          %s336 = int_to_ptr.vmem [resolvable:$true] %s335
          %341 = dma.hbm_to_vmem [thread:$0]  %s7, 512, %s336, [#allocation16], 128, 128, 8
        $region40: #{tpu_custom_call.1} parent=11 // pred_fallthru
          _
        // Predicated region
        $region41: #{tpu_custom_call.1} parent=11 // pred_check
          %p342 = pneg %p230
        $region42: #{tpu_custom_call.1} parent=11 // pred_check_branch
          %344 = sbr.rel (%p342) target = $region44
        $region43: #{tpu_custom_call.1} parent=11 // pred_region
          _
        $region44: #{tpu_custom_call.1} parent=11 // pred_fallthru
          _
      $region12: #{tpu_custom_call.1} parent=5 // pred_fallthru
        _
      %p345 = scmp.lt.s32.totalorder %s22, 2
      // Predicated region
      $region45: #{tpu_custom_call.1} parent=5 // pred_check
        %p346 = pneg %p345
      $region46: #{tpu_custom_call.1} parent=5 // pred_check_branch
        %348 = sbr.rel (%p346) target = $region48
      $region47: #{tpu_custom_call.1} parent=5 // pred_region
        // Predicated region
        $region49: #{tpu_custom_call.1} parent=47 // pred_check
          %p349 = pneg %p56
        $region50: #{tpu_custom_call.1} parent=47 // pred_check_branch
          %351 = sbr.rel (%p349) target = $region52
        $region51: #{tpu_custom_call.1} parent=47 // pred_region
          %s352 = sand.u32 %s46, 1
          %s353 = scalar_lea.sflag [#allocation7], %s352
          %s354 = sand.u32 %s46, 1
          %s355 = smul.addr %s354, 32
          %s356 = scalar_lea.vmem [#allocation6], %s355
          %s357 = smul.u32 8, %s30
          %s359 = ssub.s32 512, 512
          %360 = vsyncadd %s353, %s359
          %s361 = sadd.s32 %s29, %s357
          %s362 = smul.addr %s361, 64
          %s363 = scalar_lea.hbm %s0, %s362
          %s364 = sshll.u32 %s356, 4
          %s365 = int_to_ptr.vmem [resolvable:$true] %s364
          %370 = dma.hbm_to_vmem [thread:$0]  %s363, 512, %s365, %s353, 64, 64, 4
        $region52: #{tpu_custom_call.1} parent=47 // pred_fallthru
          _
      $region48: #{tpu_custom_call.1} parent=5 // pred_fallthru
        _
      %p371 = scmp.le.s32.totalorder 1, %s22
      %p372 = scmp.lt.s32.totalorder %s22, 3
      %p373 = pnand %p371, %p372
      %p374 = pneg %p373
      // Predicated region
      $region53: #{tpu_custom_call.1} parent=5 // pred_check
        _
      $region54: #{tpu_custom_call.1} parent=5 // pred_check_branch
        %376 = sbr.rel (%p373) target = $region56
      $region55: #{tpu_custom_call.1} parent=5 // pred_region
        %s377 = ssub.s32 %s22, 1
        %s378 = sand.u32 %s49, 1
        %s379 = scalar_lea.sflag [#allocation7], %s378
        %s380 = sand.u32 %s49, 1
        %s381 = smul.addr %s380, 32
        %s382 = scalar_lea.vmem [#allocation6], %s381
        // Predicated region
        $region57: #{tpu_custom_call.1} parent=55 // pred_check
          %p383 = pneg %p62
        $region58: #{tpu_custom_call.1} parent=55 // pred_check_branch
          %385 = sbr.rel (%p383) target = $region60
        $region59: #{tpu_custom_call.1} parent=55 // pred_region
          %386 = dma.done %s379, 512
        $region60: #{tpu_custom_call.1} parent=55 // pred_fallthru
          _
        // Predicated region
        $region61: #{tpu_custom_call.1} parent=55 // pred_check
          %p387 = pneg %p83
        $region62: #{tpu_custom_call.1} parent=55 // pred_check_branch
          %389 = sbr.rel (%p387) target = $region64
        $region63: #{tpu_custom_call.1} parent=55 // pred_region
          %390 = dma.done [#allocation10], 128
        $region64: #{tpu_custom_call.1} parent=55 // pred_fallthru
          _
        // Predicated region
        $region65: #{tpu_custom_call.1} parent=55 // pred_check
          %p391 = pneg %p104
        $region66: #{tpu_custom_call.1} parent=55 // pred_check_branch
          %393 = sbr.rel (%p391) target = $region68
        $region67: #{tpu_custom_call.1} parent=55 // pred_region
          %394 = dma.done [#allocation10], 256
        $region68: #{tpu_custom_call.1} parent=55 // pred_fallthru
          _
        // Predicated region
        $region69: #{tpu_custom_call.1} parent=55 // pred_check
          %p395 = pneg %p146
        $region70: #{tpu_custom_call.1} parent=55 // pred_check_branch
          %397 = sbr.rel (%p395) target = $region72
        $region71: #{tpu_custom_call.1} parent=55 // pred_region
          %398 = dma.done [#allocation13], 256
        $region72: #{tpu_custom_call.1} parent=55 // pred_fallthru
          _
        // Predicated region
        $region73: #{tpu_custom_call.1} parent=55 // pred_check
          %p399 = pneg %p167
        $region74: #{tpu_custom_call.1} parent=55 // pred_check_branch
          %401 = sbr.rel (%p399) target = $region76
        $region75: #{tpu_custom_call.1} parent=55 // pred_region
          %402 = dma.done [#allocation13], 256
        $region76: #{tpu_custom_call.1} parent=55 // pred_fallthru
          _
        // Predicated region
        $region77: #{tpu_custom_call.1} parent=55 // pred_check
          %p403 = pneg %p209
        $region78: #{tpu_custom_call.1} parent=55 // pred_check_branch
          %405 = sbr.rel (%p403) target = $region80
        $region79: #{tpu_custom_call.1} parent=55 // pred_region
          %406 = dma.done [#allocation16], 512
        $region80: #{tpu_custom_call.1} parent=55 // pred_fallthru
          _
        %s407 = sand.u32 %s49, 1
        %s408 = scalar_lea.sflag [#allocation7], %s407
        %s409 = sand.u32 %s49, 1
        %s410 = smul.addr %s409, 32
        %s411 = scalar_lea.vmem [#allocation6], %s410
        %p412 = pneg %p62
        %p413 = pneg %p59
        %p414 = pneg %p83
        %p415 = pneg %p80
        %p416 = pneg %p104
        %p417 = pneg %p101
        %p418 = pneg %p125
        %p419 = pneg %p122
        %p420 = pneg %p146
        %p421 = pneg %p143
        %p422 = pneg %p167
        %p423 = pneg %p164
        %p424 = pneg %p188
        %p425 = pneg %p185
        %p426 = pneg %p209
        %p427 = pneg %p206
        %p428 = pneg %p230
        %p429 = pneg %p227
        %p430 = pneg %p256
        %p431 = pneg %p253
        %s432 = smul.u32 8, %s32
        %p434 = scmp.eq.s32.totalorder %s32, 0
        // Predicated region
        $region81: #{tpu_custom_call.1} parent=55 // pred_check
          %p435 = pneg %p434
        $region82: #{tpu_custom_call.1} parent=55 // pred_check_branch
          %437 = sbr.rel (%p435) target = $region84
        $region83: #{tpu_custom_call.1} parent=55 // pred_region
          %vm438 = vcmask 261120
          %439 = vst.msk [vmem:[#allocation2] sm:$0xff] %vm438, 0.0
          %440 = vst.msk [vmem:[#allocation2 + $0x8] sm:$0xff] %vm438, 0.0
          %441 = vst.msk [vmem:[#allocation3] sm:$0xff] %vm438, 0.0
          %442 = vst.msk [vmem:[#allocation3 + $0x8] sm:$0xff] %vm438, 0.0
        $region84: #{tpu_custom_call.1} parent=55 // pred_fallthru
          _
        %v443 = vld [vmem:[%s382] sm:$0xf]
        %v444 = vld [vmem:[%s382 + $0x4] sm:$0xf]
        %v445 = vld [vmem:[%s382 + $0x8] sm:$0xf]
        %v446 = vld [vmem:[%s382 + $0xc] sm:$0xf]
        %v447 = vld [vmem:[%s382 + $0x10] sm:$0xf]
        %v448 = vld [vmem:[%s382 + $0x14] sm:$0xf]
        %v449 = vld [vmem:[%s382 + $0x18] sm:$0xf]
        %v450 = vld [vmem:[%s382 + $0x1c] sm:$0xf]
        %v451 = vld [vmem:[#allocation9] sm:$0xf]
        %v452 = vld [vmem:[#allocation9 + $0x4] sm:$0xf]
        %v453 = vld [vmem:[%s3] sm:$0x1]
        %v455 = vlaneseq
        %v456 = vshrl.u32 %v455, 7
        %v457 = vsub.s32 0, %v456
        %v458 = vrot.slane %v453, %v457
        %v468 = vunpack.c.l.b16 %v443
        %v469 = vunpack.c.l.b16 %v444
        %v470 = vunpack.c.l.b16 %v445
        %v471 = vunpack.c.l.b16 %v446
        %v472 = vunpack.c.l.b16 %v447
        %v473 = vunpack.c.l.b16 %v448
        %v474 = vunpack.c.l.b16 %v449
        %v475 = vunpack.c.l.b16 %v450
        %v476 = vpack.c.b16 %v469, %v468
        %v477 = vpack.c.b16 %v471, %v470
        %v478 = vpack.c.b16 %v473, %v472
        %v479 = vpack.c.b16 %v475, %v474
        %v482 = vunpack.c.l.b16 %v451
        %v483 = vunpack.c.l.b16 %v452
        %v484 = vpack.c.b16 %v483, %v482
        %vm486 = vcmask 130048
        %v488 = vsel %vm486, %v476, 0
        %v491 = vsel %vm486, %v477, 0
        %v494 = vsel %vm486, %v478, 0
        %v497 = vsel %vm486, %v479, 0
        %499 = vmatprep.subr.bf16.mxu0 0
        %500 = vmatpush1.bf16.msra.mxu0 0
        %501 = vmatprep.subr.bf16.mxu0 0
        %502 = vmatpush1.bf16.msra.mxu0 0
        %503 = vmatprep.subr.bf16.mxu0 0
        %504 = vmatpush1.bf16.msra.mxu0 0
        %505 = vmatprep.subr.bf16.mxu0 0
        %506 = vmatpush1.bf16.msra.mxu0 0
        %507 = vmatprep.subr.bf16.mxu0 0
        %508 = vmatpush1.bf16.msra.mxu0 0
        %509 = vmatprep.subr.bf16.mxu0 0
        %510 = vmatpush1.bf16.msra.mxu0 0
        %511 = vmatprep.subr.bf16.mxu0 0
        %512 = vmatpush1.bf16.msra.mxu0 0
        %513 = vmatprep.subr.bf16.mxu0 0
        %514 = vmatpush1.bf16.msra.mxu0 %v484
        %515 = vmatprep.subr.bf16.mxu0 0
        %516 = vmatpush2.bf16.msra.mxu0 0
        %517 = vmatprep.subr.bf16.mxu0 0
        %518 = vmatpush2.bf16.msra.mxu0 0
        %519 = vmatprep.subr.bf16.mxu0 0
        %520 = vmatpush2.bf16.msra.mxu0 0
        %521 = vmatprep.subr.bf16.mxu0 0
        %522 = vmatpush2.bf16.msra.mxu0 0
        %523 = vmatprep.subr.bf16.mxu0 0
        %524 = vmatpush2.bf16.msra.mxu0 0
        %525 = vmatprep.subr.bf16.mxu0 0
        %526 = vmatpush2.bf16.msra.mxu0 0
        %527 = vmatprep.subr.bf16.mxu0 0
        %528 = vmatpush2.bf16.msra.mxu0 0
        %529 = vmatprep.subr.bf16.mxu0 0
        %530 = vmatpush2.bf16.msra.mxu0 0
        %531 = vmatprep.mubr.bf16.mxu0 0
        %532 = vmatmul.mubr.bf16.gmra.mxu0 %v488
        %v533 = vpop.f32.mrf.mxu0
        %v534 = vadd.f32 %v458, %v533
        %v535 = vpop.f32.mrf.mxu0
        %v536 = vpop.f32.mrf.mxu0
        %v537 = vadd.f32 %v458, %v536
        %v538 = vpop.f32.mrf.mxu0
        %539 = vmatprep.mubr.bf16.mxu0 0
        %540 = vmatmul.mubr.bf16.gmra.mxu0 %v491
        %v541 = vpop.f32.mrf.mxu0
        %v542 = vadd.f32 %v458, %v541
        %v543 = vpop.f32.mrf.mxu0
        %v544 = vpop.f32.mrf.mxu0
        %v545 = vadd.f32 %v458, %v544
        %v546 = vpop.f32.mrf.mxu0
        %547 = vmatprep.mubr.bf16.mxu0 0
        %548 = vmatmul.mubr.bf16.gmra.mxu0 %v494
        %v549 = vpop.f32.mrf.mxu0
        %v550 = vadd.f32 %v458, %v549
        %v551 = vpop.f32.mrf.mxu0
        %v552 = vpop.f32.mrf.mxu0
        %v553 = vadd.f32 %v458, %v552
        %v554 = vpop.f32.mrf.mxu0
        %555 = vmatprep.mubr.bf16.mxu0 0
        %556 = vmatmul.mubr.bf16.gmra.mxu0 %v497
        %v557 = vpop.f32.mrf.mxu0
        %v558 = vadd.f32 %v458, %v557
        %v559 = vpop.f32.mrf.mxu0
        %v560 = vpop.f32.mrf.mxu0
        %v561 = vadd.f32 %v458, %v560
        %v562 = vpop.f32.mrf.mxu0
        %563 = vdwg.mxu0
        %564 = vst [vmem:[#allocation5] sm:$0xff] %v534
        %565 = vst [vmem:[#allocation5 + $0x8] sm:$0xff] %v537
        %566 = vst [vmem:[#allocation5 + $0x10] sm:$0xff] %v542
        %567 = vst [vmem:[#allocation5 + $0x18] sm:$0xff] %v545
        %568 = vst [vmem:[#allocation5 + $0x20] sm:$0xff] %v550
        %569 = vst [vmem:[#allocation5 + $0x28] sm:$0xff] %v553
        %570 = vst [vmem:[#allocation5 + $0x30] sm:$0xff] %v558
        %571 = vst [vmem:[#allocation5 + $0x38] sm:$0xff] %v561
        %v572 = vld [vmem:[#allocation11] sm:$0xf]
        %v573 = vld [vmem:[#allocation11 + $0x4] sm:$0xf]
        %v574 = vld [vmem:[#allocation11 + $0x8] sm:$0xf]
        %v575 = vld [vmem:[#allocation11 + $0xc] sm:$0xf]
        %v576 = vld [vmem:[#allocation2] sm:$0xff]
        %v577 = vld [vmem:[#allocation3] sm:$0xff]
        %v578 = vld [vmem:[#allocation5] sm:$0xff]
        %v579 = vpack.c.bf16 %v576, %v576
        %v584 = vunpack.c.l.b16 %v572
        %v585 = vunpack.c.l.b16 %v573
        %v586 = vunpack.c.l.b16 %v574
        %v587 = vunpack.c.l.b16 %v575
        %v588 = vpack.c.b16 %v585, %v584
        %v589 = vpack.c.b16 %v587, %v586
        %vm592 = vcmask 261120
        %v594 = vsel %vm592, %v579, 0
        %596 = vmatprep.subr.bf16.mxu0 0
        %597 = vmatpush1.bf16.msra.mxu0 0
        %598 = vmatprep.subr.bf16.mxu0 0
        %599 = vmatpush1.bf16.msra.mxu0 0
        %600 = vmatprep.subr.bf16.mxu0 0
        %601 = vmatpush1.bf16.msra.mxu0 0
        %602 = vmatprep.subr.bf16.mxu0 0
        %603 = vmatpush1.bf16.msra.mxu0 0
        %604 = vmatprep.subr.bf16.mxu0 0
        %605 = vmatpush1.bf16.msra.mxu0 0
        %606 = vmatprep.subr.bf16.mxu0 0
        %607 = vmatpush1.bf16.msra.mxu0 0
        %608 = vmatprep.subr.bf16.mxu0 0
        %609 = vmatpush1.bf16.msra.mxu0 %v589
        %610 = vmatprep.subr.bf16.mxu0 0
        %611 = vmatpush1.bf16.msra.mxu0 %v588
        %612 = vmatprep.subr.bf16.mxu0 0
        %613 = vmatpush2.bf16.msra.mxu0 0
        %614 = vmatprep.subr.bf16.mxu0 0
        %615 = vmatpush2.bf16.msra.mxu0 0
        %616 = vmatprep.subr.bf16.mxu0 0
        %617 = vmatpush2.bf16.msra.mxu0 0
        %618 = vmatprep.subr.bf16.mxu0 0
        %619 = vmatpush2.bf16.msra.mxu0 0
        %620 = vmatprep.subr.bf16.mxu0 0
        %621 = vmatpush2.bf16.msra.mxu0 0
        %622 = vmatprep.subr.bf16.mxu0 0
        %623 = vmatpush2.bf16.msra.mxu0 0
        %624 = vmatprep.subr.bf16.mxu0 0
        %625 = vmatpush2.bf16.msra.mxu0 0
        %626 = vmatprep.subr.bf16.mxu0 0
        %627 = vmatpush2.bf16.msra.mxu0 0
        %628 = vmatprep.mubr.bf16.mxu0 0
        %629 = vmatmul.mubr.bf16.gmra.mxu0 %v594
        %v630 = vpop.f32.mrf.mxu0
        %v631 = vadd.f32 0.0, %v630
        %v632 = vpop.f32.mrf.mxu0
        %v633 = vpop.f32.mrf.mxu0
        %v634 = vpop.f32.mrf.mxu0
        %635 = vdwg.mxu0
        %v636 = vadd.f32 %v578, %v631
        %v637 = vmul.f32 %v636, 0.5
        %v638 = vtanh.pop %v637
        %v639 = vmul.f32 %v638, 0.5
        %v640 = vadd.f32 %v639, 0.5
        %642 = vrot.lane.b32.xlu0 %v577, 32
        %v643 = vpop.permute.xlu0 %642
        %v645 = vmul.f32 %v640, %v643
        %647 = vrot.lane.b32.xlu0 %v638, 64
        %v648 = vpop.permute.xlu0 %647
        %v650 = vmul.f32 %v640, %v648
        %652 = vrot.lane.b32.xlu0 %v650, 32
        %v653 = vpop.permute.xlu0 %652
        %v655 = vadd.f32 %v645, %v653
        %v656 = vtanh.pop %v655
        %658 = vrot.lane.b32.xlu0 %v656, 64
        %v659 = vpop.permute.xlu0 %658
        %v661 = vmul.f32 %v640, %v659
        %v662 = vpack.c.bf16 %v661, %v661
        %v664 = vunpack.c.l.b16 %v662
        %v665 = vpack.c.b16 %v664, %v664
        %666 = vrot.lane.b32.xlu0 %v665, 32
        %v667 = vpop.permute.xlu0 %666
        %vm669 = vcmask 257024
        %670 = vst.msk [vmem:[#allocation4] sm:$0xf] %vm669, %v667
        %s671 = scalar_lea.vmem [#allocation5], 8
        %v672 = vld [vmem:[%s671] sm:$0xff]
        %673 = vrot.lane.b32.xlu0 %v662, 32
        %v674 = vpop.permute.xlu0 %673
        %v676 = vsel %vm592, %v674, 0
        %678 = vmatprep.subr.bf16.mxu0 0
        %679 = vmatpush1.bf16.msra.mxu0 0
        %680 = vmatprep.subr.bf16.mxu0 0
        %681 = vmatpush1.bf16.msra.mxu0 0
        %682 = vmatprep.subr.bf16.mxu0 0
        %683 = vmatpush1.bf16.msra.mxu0 0
        %684 = vmatprep.subr.bf16.mxu0 0
        %685 = vmatpush1.bf16.msra.mxu0 0
        %686 = vmatprep.subr.bf16.mxu0 0
        %687 = vmatpush1.bf16.msra.mxu0 0
        %688 = vmatprep.subr.bf16.mxu0 0
        %689 = vmatpush1.bf16.msra.mxu0 0
        %690 = vmatprep.subr.bf16.mxu0 0
        %691 = vmatpush1.bf16.msra.mxu0 %v589
        %692 = vmatprep.subr.bf16.mxu0 0
        %693 = vmatpush1.bf16.msra.mxu0 %v588
        %694 = vmatprep.subr.bf16.mxu0 0
        %695 = vmatpush2.bf16.msra.mxu0 0
        %696 = vmatprep.subr.bf16.mxu0 0
        %697 = vmatpush2.bf16.msra.mxu0 0
        %698 = vmatprep.subr.bf16.mxu0 0
        %699 = vmatpush2.bf16.msra.mxu0 0
        %700 = vmatprep.subr.bf16.mxu0 0
        %701 = vmatpush2.bf16.msra.mxu0 0
        %702 = vmatprep.subr.bf16.mxu0 0
        %703 = vmatpush2.bf16.msra.mxu0 0
        %704 = vmatprep.subr.bf16.mxu0 0
        %705 = vmatpush2.bf16.msra.mxu0 0
        %706 = vmatprep.subr.bf16.mxu0 0
        %707 = vmatpush2.bf16.msra.mxu0 0
        %708 = vmatprep.subr.bf16.mxu0 0
        %709 = vmatpush2.bf16.msra.mxu0 0
        %710 = vmatprep.mubr.bf16.mxu0 0
        %711 = vmatmul.mubr.bf16.gmra.mxu0 %v676
        %v712 = vpop.f32.mrf.mxu0
        %v713 = vadd.f32 0.0, %v712
        %v714 = vpop.f32.mrf.mxu0
        %v715 = vpop.f32.mrf.mxu0
        %v716 = vpop.f32.mrf.mxu0
        %717 = vdwg.mxu0
        %v718 = vadd.f32 %v672, %v713
        %v719 = vmul.f32 %v718, 0.5
        %v720 = vtanh.pop %v719
        %v721 = vmul.f32 %v720, 0.5
        %v722 = vadd.f32 %v721, 0.5
        %v723 = vmul.f32 %v722, %v655
        %725 = vrot.lane.b32.xlu0 %v720, 64
        %v726 = vpop.permute.xlu0 %725
        %v728 = vmul.f32 %v722, %v726
        %730 = vrot.lane.b32.xlu0 %v728, 32
        %v731 = vpop.permute.xlu0 %730
        %v733 = vadd.f32 %v723, %v731
        %v734 = vtanh.pop %v733
        %736 = vrot.lane.b32.xlu0 %v734, 64
        %v737 = vpop.permute.xlu0 %736
        %v739 = vmul.f32 %v722, %v737
        %v740 = vpack.c.bf16 %v739, %v739
        %v742 = vunpack.c.l.b16 %v740
        %v743 = vpack.c.b16 %v742, %v742
        %744 = vrot.lane.b32.xlu0 %v743, 32
        %v745 = vpop.permute.xlu0 %744
        %s747 = scalar_lea.vmem [#allocation4], 4
        %748 = vst.msk [vmem:[%s747] sm:$0xf] %vm669, %v745
        %s749 = scalar_lea.vmem [#allocation5], 16
        %v750 = vld [vmem:[%s749] sm:$0xff]
        %751 = vrot.lane.b32.xlu0 %v740, 32
        %v752 = vpop.permute.xlu0 %751
        %v754 = vsel %vm592, %v752, 0
        %756 = vmatprep.subr.bf16.mxu0 0
        %757 = vmatpush1.bf16.msra.mxu0 0
        %758 = vmatprep.subr.bf16.mxu0 0
        %759 = vmatpush1.bf16.msra.mxu0 0
        %760 = vmatprep.subr.bf16.mxu0 0
        %761 = vmatpush1.bf16.msra.mxu0 0
        %762 = vmatprep.subr.bf16.mxu0 0
        %763 = vmatpush1.bf16.msra.mxu0 0
        %764 = vmatprep.subr.bf16.mxu0 0
        %765 = vmatpush1.bf16.msra.mxu0 0
        %766 = vmatprep.subr.bf16.mxu0 0
        %767 = vmatpush1.bf16.msra.mxu0 0
        %768 = vmatprep.subr.bf16.mxu0 0
        %769 = vmatpush1.bf16.msra.mxu0 %v589
        %770 = vmatprep.subr.bf16.mxu0 0
        %771 = vmatpush1.bf16.msra.mxu0 %v588
        %772 = vmatprep.subr.bf16.mxu0 0
        %773 = vmatpush2.bf16.msra.mxu0 0
        %774 = vmatprep.subr.bf16.mxu0 0
        %775 = vmatpush2.bf16.msra.mxu0 0
        %776 = vmatprep.subr.bf16.mxu0 0
        %777 = vmatpush2.bf16.msra.mxu0 0
        %778 = vmatprep.subr.bf16.mxu0 0
        %779 = vmatpush2.bf16.msra.mxu0 0
        %780 = vmatprep.subr.bf16.mxu0 0
        %781 = vmatpush2.bf16.msra.mxu0 0
        %782 = vmatprep.subr.bf16.mxu0 0
        %783 = vmatpush2.bf16.msra.mxu0 0
        %784 = vmatprep.subr.bf16.mxu0 0
        %785 = vmatpush2.bf16.msra.mxu0 0
        %786 = vmatprep.subr.bf16.mxu0 0
        %787 = vmatpush2.bf16.msra.mxu0 0
        %788 = vmatprep.mubr.bf16.mxu0 0
        %789 = vmatmul.mubr.bf16.gmra.mxu0 %v754
        %v790 = vpop.f32.mrf.mxu0
        %v791 = vadd.f32 0.0, %v790
        %v792 = vpop.f32.mrf.mxu0
        %v793 = vpop.f32.mrf.mxu0
        %v794 = vpop.f32.mrf.mxu0
        %795 = vdwg.mxu0
        %v796 = vadd.f32 %v750, %v791
        %v797 = vmul.f32 %v796, 0.5
        %v798 = vtanh.pop %v797
        %v799 = vmul.f32 %v798, 0.5
        %v800 = vadd.f32 %v799, 0.5
        %v801 = vmul.f32 %v800, %v733
        %803 = vrot.lane.b32.xlu0 %v798, 64
        %v804 = vpop.permute.xlu0 %803
        %v806 = vmul.f32 %v800, %v804
        %808 = vrot.lane.b32.xlu0 %v806, 32
        %v809 = vpop.permute.xlu0 %808
        %v811 = vadd.f32 %v801, %v809
        %v812 = vtanh.pop %v811
        %814 = vrot.lane.b32.xlu0 %v812, 64
        %v815 = vpop.permute.xlu0 %814
        %v817 = vmul.f32 %v800, %v815
        %v818 = vpack.c.bf16 %v817, %v817
        %v820 = vunpack.c.l.b16 %v818
        %v821 = vpack.c.b16 %v820, %v820
        %822 = vrot.lane.b32.xlu0 %v821, 32
        %v823 = vpop.permute.xlu0 %822
        %s825 = scalar_lea.vmem [#allocation4], 8
        %826 = vst.msk [vmem:[%s825] sm:$0xf] %vm669, %v823
        %s827 = scalar_lea.vmem [#allocation5], 24
        %v828 = vld [vmem:[%s827] sm:$0xff]
        %829 = vrot.lane.b32.xlu0 %v818, 32
        %v830 = vpop.permute.xlu0 %829
        %v832 = vsel %vm592, %v830, 0
        %834 = vmatprep.subr.bf16.mxu0 0
        %835 = vmatpush1.bf16.msra.mxu0 0
        %836 = vmatprep.subr.bf16.mxu0 0
        %837 = vmatpush1.bf16.msra.mxu0 0
        %838 = vmatprep.subr.bf16.mxu0 0
        %839 = vmatpush1.bf16.msra.mxu0 0
        %840 = vmatprep.subr.bf16.mxu0 0
        %841 = vmatpush1.bf16.msra.mxu0 0
        %842 = vmatprep.subr.bf16.mxu0 0
        %843 = vmatpush1.bf16.msra.mxu0 0
        %844 = vmatprep.subr.bf16.mxu0 0
        %845 = vmatpush1.bf16.msra.mxu0 0
        %846 = vmatprep.subr.bf16.mxu0 0
        %847 = vmatpush1.bf16.msra.mxu0 %v589
        %848 = vmatprep.subr.bf16.mxu0 0
        %849 = vmatpush1.bf16.msra.mxu0 %v588
        %850 = vmatprep.subr.bf16.mxu0 0
        %851 = vmatpush2.bf16.msra.mxu0 0
        %852 = vmatprep.subr.bf16.mxu0 0
        %853 = vmatpush2.bf16.msra.mxu0 0
        %854 = vmatprep.subr.bf16.mxu0 0
        %855 = vmatpush2.bf16.msra.mxu0 0
        %856 = vmatprep.subr.bf16.mxu0 0
        %857 = vmatpush2.bf16.msra.mxu0 0
        %858 = vmatprep.subr.bf16.mxu0 0
        %859 = vmatpush2.bf16.msra.mxu0 0
        %860 = vmatprep.subr.bf16.mxu0 0
        %861 = vmatpush2.bf16.msra.mxu0 0
        %862 = vmatprep.subr.bf16.mxu0 0
        %863 = vmatpush2.bf16.msra.mxu0 0
        %864 = vmatprep.subr.bf16.mxu0 0
        %865 = vmatpush2.bf16.msra.mxu0 0
        %866 = vmatprep.mubr.bf16.mxu0 0
        %867 = vmatmul.mubr.bf16.gmra.mxu0 %v832
        %v868 = vpop.f32.mrf.mxu0
        %v869 = vadd.f32 0.0, %v868
        %v870 = vpop.f32.mrf.mxu0
        %v871 = vpop.f32.mrf.mxu0
        %v872 = vpop.f32.mrf.mxu0
        %873 = vdwg.mxu0
        %v874 = vadd.f32 %v828, %v869
        %v875 = vmul.f32 %v874, 0.5
        %v876 = vtanh.pop %v875
        %v877 = vmul.f32 %v876, 0.5
        %v878 = vadd.f32 %v877, 0.5
        %v879 = vmul.f32 %v878, %v811
        %881 = vrot.lane.b32.xlu0 %v876, 64
        %v882 = vpop.permute.xlu0 %881
        %v884 = vmul.f32 %v878, %v882
        %886 = vrot.lane.b32.xlu0 %v884, 32
        %v887 = vpop.permute.xlu0 %886
        %v889 = vadd.f32 %v879, %v887
        %v890 = vtanh.pop %v889
        %892 = vrot.lane.b32.xlu0 %v890, 64
        %v893 = vpop.permute.xlu0 %892
        %v895 = vmul.f32 %v878, %v893
        %v896 = vpack.c.bf16 %v895, %v895
        %v898 = vunpack.c.l.b16 %v896
        %v899 = vpack.c.b16 %v898, %v898
        %900 = vrot.lane.b32.xlu0 %v899, 32
        %v901 = vpop.permute.xlu0 %900
        %s903 = scalar_lea.vmem [#allocation4], 12
        %904 = vst.msk [vmem:[%s903] sm:$0xf] %vm669, %v901
        %s905 = scalar_lea.vmem [#allocation5], 32
        %v906 = vld [vmem:[%s905] sm:$0xff]
        %907 = vrot.lane.b32.xlu0 %v896, 32
        %v908 = vpop.permute.xlu0 %907
        %v910 = vsel %vm592, %v908, 0
        %912 = vmatprep.subr.bf16.mxu0 0
        %913 = vmatpush1.bf16.msra.mxu0 0
        %914 = vmatprep.subr.bf16.mxu0 0
        %915 = vmatpush1.bf16.msra.mxu0 0
        %916 = vmatprep.subr.bf16.mxu0 0
        %917 = vmatpush1.bf16.msra.mxu0 0
        %918 = vmatprep.subr.bf16.mxu0 0
        %919 = vmatpush1.bf16.msra.mxu0 0
        %920 = vmatprep.subr.bf16.mxu0 0
        %921 = vmatpush1.bf16.msra.mxu0 0
        %922 = vmatprep.subr.bf16.mxu0 0
        %923 = vmatpush1.bf16.msra.mxu0 0
        %924 = vmatprep.subr.bf16.mxu0 0
        %925 = vmatpush1.bf16.msra.mxu0 %v589
        %926 = vmatprep.subr.bf16.mxu0 0
        %927 = vmatpush1.bf16.msra.mxu0 %v588
        %928 = vmatprep.subr.bf16.mxu0 0
        %929 = vmatpush2.bf16.msra.mxu0 0
        %930 = vmatprep.subr.bf16.mxu0 0
        %931 = vmatpush2.bf16.msra.mxu0 0
        %932 = vmatprep.subr.bf16.mxu0 0
        %933 = vmatpush2.bf16.msra.mxu0 0
        %934 = vmatprep.subr.bf16.mxu0 0
        %935 = vmatpush2.bf16.msra.mxu0 0
        %936 = vmatprep.subr.bf16.mxu0 0
        %937 = vmatpush2.bf16.msra.mxu0 0
        %938 = vmatprep.subr.bf16.mxu0 0
        %939 = vmatpush2.bf16.msra.mxu0 0
        %940 = vmatprep.subr.bf16.mxu0 0
        %941 = vmatpush2.bf16.msra.mxu0 0
        %942 = vmatprep.subr.bf16.mxu0 0
        %943 = vmatpush2.bf16.msra.mxu0 0
        %944 = vmatprep.mubr.bf16.mxu0 0
        %945 = vmatmul.mubr.bf16.gmra.mxu0 %v910
        %v946 = vpop.f32.mrf.mxu0
        %v947 = vadd.f32 0.0, %v946
        %v948 = vpop.f32.mrf.mxu0
        %v949 = vpop.f32.mrf.mxu0
        %v950 = vpop.f32.mrf.mxu0
        %951 = vdwg.mxu0
        %v952 = vadd.f32 %v906, %v947
        %v953 = vmul.f32 %v952, 0.5
        %v954 = vtanh.pop %v953
        %v955 = vmul.f32 %v954, 0.5
        %v956 = vadd.f32 %v955, 0.5
        %v957 = vmul.f32 %v956, %v889
        %959 = vrot.lane.b32.xlu0 %v954, 64
        %v960 = vpop.permute.xlu0 %959
        %v962 = vmul.f32 %v956, %v960
        %964 = vrot.lane.b32.xlu0 %v962, 32
        %v965 = vpop.permute.xlu0 %964
        %v967 = vadd.f32 %v957, %v965
        %v968 = vtanh.pop %v967
        %970 = vrot.lane.b32.xlu0 %v968, 64
        %v971 = vpop.permute.xlu0 %970
        %v973 = vmul.f32 %v956, %v971
        %v974 = vpack.c.bf16 %v973, %v973
        %v976 = vunpack.c.l.b16 %v974
        %v977 = vpack.c.b16 %v976, %v976
        %978 = vrot.lane.b32.xlu0 %v977, 32
        %v979 = vpop.permute.xlu0 %978
        %s981 = scalar_lea.vmem [#allocation4], 16
        %982 = vst.msk [vmem:[%s981] sm:$0xf] %vm669, %v979
        %s983 = scalar_lea.vmem [#allocation5], 40
        %v984 = vld [vmem:[%s983] sm:$0xff]
        %985 = vrot.lane.b32.xlu0 %v974, 32
        %v986 = vpop.permute.xlu0 %985
        %v988 = vsel %vm592, %v986, 0
        %990 = vmatprep.subr.bf16.mxu0 0
        %991 = vmatpush1.bf16.msra.mxu0 0
        %992 = vmatprep.subr.bf16.mxu0 0
        %993 = vmatpush1.bf16.msra.mxu0 0
        %994 = vmatprep.subr.bf16.mxu0 0
        %995 = vmatpush1.bf16.msra.mxu0 0
        %996 = vmatprep.subr.bf16.mxu0 0
        %997 = vmatpush1.bf16.msra.mxu0 0
        %998 = vmatprep.subr.bf16.mxu0 0
        %999 = vmatpush1.bf16.msra.mxu0 0
        %1000 = vmatprep.subr.bf16.mxu0 0
        %1001 = vmatpush1.bf16.msra.mxu0 0
        %1002 = vmatprep.subr.bf16.mxu0 0
        %1003 = vmatpush1.bf16.msra.mxu0 %v589
        %1004 = vmatprep.subr.bf16.mxu0 0
        %1005 = vmatpush1.bf16.msra.mxu0 %v588
        %1006 = vmatprep.subr.bf16.mxu0 0
        %1007 = vmatpush2.bf16.msra.mxu0 0
        %1008 = vmatprep.subr.bf16.mxu0 0
        %1009 = vmatpush2.bf16.msra.mxu0 0
        %1010 = vmatprep.subr.bf16.mxu0 0
        %1011 = vmatpush2.bf16.msra.mxu0 0
        %1012 = vmatprep.subr.bf16.mxu0 0
        %1013 = vmatpush2.bf16.msra.mxu0 0
        %1014 = vmatprep.subr.bf16.mxu0 0
        %1015 = vmatpush2.bf16.msra.mxu0 0
        %1016 = vmatprep.subr.bf16.mxu0 0
        %1017 = vmatpush2.bf16.msra.mxu0 0
        %1018 = vmatprep.subr.bf16.mxu0 0
        %1019 = vmatpush2.bf16.msra.mxu0 0
        %1020 = vmatprep.subr.bf16.mxu0 0
        %1021 = vmatpush2.bf16.msra.mxu0 0
        %1022 = vmatprep.mubr.bf16.mxu0 0
        %1023 = vmatmul.mubr.bf16.gmra.mxu0 %v988
        %v1024 = vpop.f32.mrf.mxu0
        %v1025 = vadd.f32 0.0, %v1024
        %v1026 = vpop.f32.mrf.mxu0
        %v1027 = vpop.f32.mrf.mxu0
        %v1028 = vpop.f32.mrf.mxu0
        %1029 = vdwg.mxu0
        %v1030 = vadd.f32 %v984, %v1025
        %v1031 = vmul.f32 %v1030, 0.5
        %v1032 = vtanh.pop %v1031
        %v1033 = vmul.f32 %v1032, 0.5
        %v1034 = vadd.f32 %v1033, 0.5
        %v1035 = vmul.f32 %v1034, %v967
        %1037 = vrot.lane.b32.xlu0 %v1032, 64
        %v1038 = vpop.permute.xlu0 %1037
        %v1040 = vmul.f32 %v1034, %v1038
        %1042 = vrot.lane.b32.xlu0 %v1040, 32
        %v1043 = vpop.permute.xlu0 %1042
        %v1045 = vadd.f32 %v1035, %v1043
        %v1046 = vtanh.pop %v1045
        %1048 = vrot.lane.b32.xlu0 %v1046, 64
        %v1049 = vpop.permute.xlu0 %1048
        %v1051 = vmul.f32 %v1034, %v1049
        %v1052 = vpack.c.bf16 %v1051, %v1051
        %v1054 = vunpack.c.l.b16 %v1052
        %v1055 = vpack.c.b16 %v1054, %v1054
        %1056 = vrot.lane.b32.xlu0 %v1055, 32
        %v1057 = vpop.permute.xlu0 %1056
        %s1059 = scalar_lea.vmem [#allocation4], 20
        %1060 = vst.msk [vmem:[%s1059] sm:$0xf] %vm669, %v1057
        %s1061 = scalar_lea.vmem [#allocation5], 48
        %v1062 = vld [vmem:[%s1061] sm:$0xff]
        %1063 = vrot.lane.b32.xlu0 %v1052, 32
        %v1064 = vpop.permute.xlu0 %1063
        %v1066 = vsel %vm592, %v1064, 0
        %1068 = vmatprep.subr.bf16.mxu0 0
        %1069 = vmatpush1.bf16.msra.mxu0 0
        %1070 = vmatprep.subr.bf16.mxu0 0
        %1071 = vmatpush1.bf16.msra.mxu0 0
        %1072 = vmatprep.subr.bf16.mxu0 0
        %1073 = vmatpush1.bf16.msra.mxu0 0
        %1074 = vmatprep.subr.bf16.mxu0 0
        %1075 = vmatpush1.bf16.msra.mxu0 0
        %1076 = vmatprep.subr.bf16.mxu0 0
        %1077 = vmatpush1.bf16.msra.mxu0 0
        %1078 = vmatprep.subr.bf16.mxu0 0
        %1079 = vmatpush1.bf16.msra.mxu0 0
        %1080 = vmatprep.subr.bf16.mxu0 0
        %1081 = vmatpush1.bf16.msra.mxu0 %v589
        %1082 = vmatprep.subr.bf16.mxu0 0
        %1083 = vmatpush1.bf16.msra.mxu0 %v588
        %1084 = vmatprep.subr.bf16.mxu0 0
        %1085 = vmatpush2.bf16.msra.mxu0 0
        %1086 = vmatprep.subr.bf16.mxu0 0
        %1087 = vmatpush2.bf16.msra.mxu0 0
        %1088 = vmatprep.subr.bf16.mxu0 0
        %1089 = vmatpush2.bf16.msra.mxu0 0
        %1090 = vmatprep.subr.bf16.mxu0 0
        %1091 = vmatpush2.bf16.msra.mxu0 0
        %1092 = vmatprep.subr.bf16.mxu0 0
        %1093 = vmatpush2.bf16.msra.mxu0 0
        %1094 = vmatprep.subr.bf16.mxu0 0
        %1095 = vmatpush2.bf16.msra.mxu0 0
        %1096 = vmatprep.subr.bf16.mxu0 0
        %1097 = vmatpush2.bf16.msra.mxu0 0
        %1098 = vmatprep.subr.bf16.mxu0 0
        %1099 = vmatpush2.bf16.msra.mxu0 0
        %1100 = vmatprep.mubr.bf16.mxu0 0
        %1101 = vmatmul.mubr.bf16.gmra.mxu0 %v1066
        %v1102 = vpop.f32.mrf.mxu0
        %v1103 = vadd.f32 0.0, %v1102
        %v1104 = vpop.f32.mrf.mxu0
        %v1105 = vpop.f32.mrf.mxu0
        %v1106 = vpop.f32.mrf.mxu0
        %1107 = vdwg.mxu0
        %v1108 = vadd.f32 %v1062, %v1103
        %v1109 = vmul.f32 %v1108, 0.5
        %v1110 = vtanh.pop %v1109
        %v1111 = vmul.f32 %v1110, 0.5
        %v1112 = vadd.f32 %v1111, 0.5
        %v1113 = vmul.f32 %v1112, %v1045
        %1115 = vrot.lane.b32.xlu0 %v1110, 64
        %v1116 = vpop.permute.xlu0 %1115
        %v1118 = vmul.f32 %v1112, %v1116
        %1120 = vrot.lane.b32.xlu0 %v1118, 32
        %v1121 = vpop.permute.xlu0 %1120
        %v1123 = vadd.f32 %v1113, %v1121
        %v1124 = vtanh.pop %v1123
        %1126 = vrot.lane.b32.xlu0 %v1124, 64
        %v1127 = vpop.permute.xlu0 %1126
        %v1129 = vmul.f32 %v1112, %v1127
        %v1130 = vpack.c.bf16 %v1129, %v1129
        %v1132 = vunpack.c.l.b16 %v1130
        %v1133 = vpack.c.b16 %v1132, %v1132
        %1134 = vrot.lane.b32.xlu0 %v1133, 32
        %v1135 = vpop.permute.xlu0 %1134
        %s1137 = scalar_lea.vmem [#allocation4], 24
        %1138 = vst.msk [vmem:[%s1137] sm:$0xf] %vm669, %v1135
        %s1139 = scalar_lea.vmem [#allocation5], 56
        %v1140 = vld [vmem:[%s1139] sm:$0xff]
        %1141 = vrot.lane.b32.xlu0 %v1130, 32
        %v1142 = vpop.permute.xlu0 %1141
        %v1144 = vsel %vm592, %v1142, 0
        %1146 = vmatprep.subr.bf16.mxu0 0
        %1147 = vmatpush1.bf16.msra.mxu0 0
        %1148 = vmatprep.subr.bf16.mxu0 0
        %1149 = vmatpush1.bf16.msra.mxu0 0
        %1150 = vmatprep.subr.bf16.mxu0 0
        %1151 = vmatpush1.bf16.msra.mxu0 0
        %1152 = vmatprep.subr.bf16.mxu0 0
        %1153 = vmatpush1.bf16.msra.mxu0 0
        %1154 = vmatprep.subr.bf16.mxu0 0
        %1155 = vmatpush1.bf16.msra.mxu0 0
        %1156 = vmatprep.subr.bf16.mxu0 0
        %1157 = vmatpush1.bf16.msra.mxu0 0
        %1158 = vmatprep.subr.bf16.mxu0 0
        %1159 = vmatpush1.bf16.msra.mxu0 %v589
        %1160 = vmatprep.subr.bf16.mxu0 0
        %1161 = vmatpush1.bf16.msra.mxu0 %v588
        %1162 = vmatprep.subr.bf16.mxu0 0
        %1163 = vmatpush2.bf16.msra.mxu0 0
        %1164 = vmatprep.subr.bf16.mxu0 0
        %1165 = vmatpush2.bf16.msra.mxu0 0
        %1166 = vmatprep.subr.bf16.mxu0 0
        %1167 = vmatpush2.bf16.msra.mxu0 0
        %1168 = vmatprep.subr.bf16.mxu0 0
        %1169 = vmatpush2.bf16.msra.mxu0 0
        %1170 = vmatprep.subr.bf16.mxu0 0
        %1171 = vmatpush2.bf16.msra.mxu0 0
        %1172 = vmatprep.subr.bf16.mxu0 0
        %1173 = vmatpush2.bf16.msra.mxu0 0
        %1174 = vmatprep.subr.bf16.mxu0 0
        %1175 = vmatpush2.bf16.msra.mxu0 0
        %1176 = vmatprep.subr.bf16.mxu0 0
        %1177 = vmatpush2.bf16.msra.mxu0 0
        %1178 = vmatprep.mubr.bf16.mxu0 0
        %1179 = vmatmul.mubr.bf16.gmra.mxu0 %v1144
        %v1180 = vpop.f32.mrf.mxu0
        %v1181 = vadd.f32 0.0, %v1180
        %v1182 = vpop.f32.mrf.mxu0
        %v1183 = vpop.f32.mrf.mxu0
        %v1184 = vpop.f32.mrf.mxu0
        %1185 = vdwg.mxu0
        %v1186 = vadd.f32 %v1140, %v1181
        %v1187 = vmul.f32 %v1186, 0.5
        %v1188 = vtanh.pop %v1187
        %v1189 = vmul.f32 %v1188, 0.5
        %v1190 = vadd.f32 %v1189, 0.5
        %v1191 = vmul.f32 %v1190, %v1123
        %1193 = vrot.lane.b32.xlu0 %v1188, 64
        %v1194 = vpop.permute.xlu0 %1193
        %v1196 = vmul.f32 %v1190, %v1194
        %1198 = vrot.lane.b32.xlu0 %v1196, 32
        %v1199 = vpop.permute.xlu0 %1198
        %v1201 = vadd.f32 %v1191, %v1199
        %v1202 = vtanh.pop %v1201
        %1204 = vrot.lane.b32.xlu0 %v1202, 64
        %v1205 = vpop.permute.xlu0 %1204
        %v1207 = vmul.f32 %v1190, %v1205
        %v1208 = vpack.c.bf16 %v1207, %v1207
        %v1210 = vunpack.c.l.b16 %v1208
        %v1211 = vpack.c.b16 %v1210, %v1210
        %1212 = vrot.lane.b32.xlu0 %v1211, 32
        %v1213 = vpop.permute.xlu0 %1212
        %s1215 = scalar_lea.vmem [#allocation4], 28
        %1216 = vst.msk [vmem:[%s1215] sm:$0xf] %vm669, %v1213
        %1218 = vrot.lane.b32.xlu0 %v1207, 32
        %v1219 = vpop.permute.xlu0 %1218
        %1221 = vst.msk [vmem:[#allocation2] sm:$0xff] %vm592, %v1219
        %1223 = vrot.lane.b32.xlu0 %v1201, 96
        %v1224 = vpop.permute.xlu0 %1223
        %1226 = vst.msk [vmem:[#allocation3] sm:$0xff] %vm592, %v1224
        %v1227 = vld [vmem:[#allocation4] sm:$0xf]
        %v1228 = vld [vmem:[#allocation4 + $0x4] sm:$0xf]
        %v1229 = vld [vmem:[#allocation4 + $0x8] sm:$0xf]
        %v1230 = vld [vmem:[#allocation4 + $0xc] sm:$0xf]
        %v1231 = vld [vmem:[#allocation4 + $0x10] sm:$0xf]
        %v1232 = vld [vmem:[#allocation4 + $0x14] sm:$0xf]
        %v1233 = vld [vmem:[#allocation4 + $0x18] sm:$0xf]
        %v1234 = vld [vmem:[#allocation4 + $0x1c] sm:$0xf]
        %v1235 = vld [vmem:[#allocation12] sm:$0xf]
        %v1236 = vld [vmem:[#allocation12 + $0x4] sm:$0xf]
        %v1237 = vld [vmem:[#allocation12 + $0x8] sm:$0xf]
        %v1238 = vld [vmem:[#allocation12 + $0xc] sm:$0xf]
        %v1239 = vld [vmem:[%s6] sm:$0x1]
        %v1241 = vlaneseq
        %v1242 = vshrl.u32 %v1241, 7
        %v1243 = vsub.s32 0, %v1242
        %v1244 = vrot.slane %v1239, %v1243
        %v1254 = vunpack.c.l.b16 %v1227
        %v1255 = vunpack.c.l.b16 %v1228
        %v1256 = vunpack.c.l.b16 %v1229
        %v1257 = vunpack.c.l.b16 %v1230
        %v1258 = vunpack.c.l.b16 %v1231
        %v1259 = vunpack.c.l.b16 %v1232
        %v1260 = vunpack.c.l.b16 %v1233
        %v1261 = vunpack.c.l.b16 %v1234
        %v1262 = vpack.c.b16 %v1255, %v1254
        %v1263 = vpack.c.b16 %v1257, %v1256
        %v1264 = vpack.c.b16 %v1259, %v1258
        %v1265 = vpack.c.b16 %v1261, %v1260
        %v1270 = vunpack.c.l.b16 %v1235
        %v1271 = vunpack.c.l.b16 %v1236
        %v1272 = vunpack.c.l.b16 %v1237
        %v1273 = vunpack.c.l.b16 %v1238
        %v1274 = vpack.c.b16 %v1271, %v1270
        %v1275 = vpack.c.b16 %v1273, %v1272
        %v1279 = vsel %vm592, %v1262, 0
        %v1282 = vsel %vm592, %v1263, 0
        %v1285 = vsel %vm592, %v1264, 0
        %v1288 = vsel %vm592, %v1265, 0
        %1290 = vmatprep.subr.bf16.mxu0 0
        %1291 = vmatpush1.bf16.msra.mxu0 0
        %1292 = vmatprep.subr.bf16.mxu0 0
        %1293 = vmatpush1.bf16.msra.mxu0 0
        %1294 = vmatprep.subr.bf16.mxu0 0
        %1295 = vmatpush1.bf16.msra.mxu0 0
        %1296 = vmatprep.subr.bf16.mxu0 0
        %1297 = vmatpush1.bf16.msra.mxu0 0
        %1298 = vmatprep.subr.bf16.mxu0 0
        %1299 = vmatpush1.bf16.msra.mxu0 0
        %1300 = vmatprep.subr.bf16.mxu0 0
        %1301 = vmatpush1.bf16.msra.mxu0 0
        %1302 = vmatprep.subr.bf16.mxu0 0
        %1303 = vmatpush1.bf16.msra.mxu0 %v1275
        %1304 = vmatprep.subr.bf16.mxu0 0
        %1305 = vmatpush1.bf16.msra.mxu0 %v1274
        %1306 = vmatprep.subr.bf16.mxu0 0
        %1307 = vmatpush2.bf16.msra.mxu0 0
        %1308 = vmatprep.subr.bf16.mxu0 0
        %1309 = vmatpush2.bf16.msra.mxu0 0
        %1310 = vmatprep.subr.bf16.mxu0 0
        %1311 = vmatpush2.bf16.msra.mxu0 0
        %1312 = vmatprep.subr.bf16.mxu0 0
        %1313 = vmatpush2.bf16.msra.mxu0 0
        %1314 = vmatprep.subr.bf16.mxu0 0
        %1315 = vmatpush2.bf16.msra.mxu0 0
        %1316 = vmatprep.subr.bf16.mxu0 0
        %1317 = vmatpush2.bf16.msra.mxu0 0
        %1318 = vmatprep.subr.bf16.mxu0 0
        %1319 = vmatpush2.bf16.msra.mxu0 0
        %1320 = vmatprep.subr.bf16.mxu0 0
        %1321 = vmatpush2.bf16.msra.mxu0 0
        %1322 = vmatprep.mubr.bf16.mxu0 0
        %1323 = vmatmul.mubr.bf16.gmra.mxu0 %v1279
        %v1324 = vpop.f32.mrf.mxu0
        %v1325 = vadd.f32 %v1244, %v1324
        %v1326 = vpop.f32.mrf.mxu0
        %v1327 = vpop.f32.mrf.mxu0
        %v1328 = vadd.f32 %v1244, %v1327
        %v1329 = vpop.f32.mrf.mxu0
        %1330 = vmatprep.mubr.bf16.mxu0 0
        %1331 = vmatmul.mubr.bf16.gmra.mxu0 %v1282
        %v1332 = vpop.f32.mrf.mxu0
        %v1333 = vadd.f32 %v1244, %v1332
        %v1334 = vpop.f32.mrf.mxu0
        %v1335 = vpop.f32.mrf.mxu0
        %v1336 = vadd.f32 %v1244, %v1335
        %v1337 = vpop.f32.mrf.mxu0
        %1338 = vmatprep.mubr.bf16.mxu0 0
        %1339 = vmatmul.mubr.bf16.gmra.mxu0 %v1285
        %v1340 = vpop.f32.mrf.mxu0
        %v1341 = vadd.f32 %v1244, %v1340
        %v1342 = vpop.f32.mrf.mxu0
        %v1343 = vpop.f32.mrf.mxu0
        %v1344 = vadd.f32 %v1244, %v1343
        %v1345 = vpop.f32.mrf.mxu0
        %1346 = vmatprep.mubr.bf16.mxu0 0
        %1347 = vmatmul.mubr.bf16.gmra.mxu0 %v1288
        %v1348 = vpop.f32.mrf.mxu0
        %v1349 = vadd.f32 %v1244, %v1348
        %v1350 = vpop.f32.mrf.mxu0
        %v1351 = vpop.f32.mrf.mxu0
        %v1352 = vadd.f32 %v1244, %v1351
        %v1353 = vpop.f32.mrf.mxu0
        %1354 = vdwg.mxu0
        %1355 = vst [vmem:[#allocation5] sm:$0xff] %v1325
        %1356 = vst [vmem:[#allocation5 + $0x8] sm:$0xff] %v1328
        %1357 = vst [vmem:[#allocation5 + $0x10] sm:$0xff] %v1333
        %1358 = vst [vmem:[#allocation5 + $0x18] sm:$0xff] %v1336
        %1359 = vst [vmem:[#allocation5 + $0x20] sm:$0xff] %v1341
        %1360 = vst [vmem:[#allocation5 + $0x28] sm:$0xff] %v1344
        %1361 = vst [vmem:[#allocation5 + $0x30] sm:$0xff] %v1349
        %1362 = vst [vmem:[#allocation5 + $0x38] sm:$0xff] %v1352
        %v1363 = vld [vmem:[#allocation14] sm:$0xf]
        %v1364 = vld [vmem:[#allocation14 + $0x4] sm:$0xf]
        %v1365 = vld [vmem:[#allocation14 + $0x8] sm:$0xf]
        %v1366 = vld [vmem:[#allocation14 + $0xc] sm:$0xf]
        %s1367 = scalar_lea.vmem [#allocation2], 8
        %v1368 = vld [vmem:[%s1367] sm:$0xff]
        %s1369 = scalar_lea.vmem [#allocation3], 8
        %v1370 = vld [vmem:[%s1369] sm:$0xff]
        %v1371 = vld [vmem:[#allocation5] sm:$0xff]
        %v1372 = vpack.c.bf16 %v1368, %v1368
        %v1377 = vunpack.c.l.b16 %v1363
        %v1378 = vunpack.c.l.b16 %v1364
        %v1379 = vunpack.c.l.b16 %v1365
        %v1380 = vunpack.c.l.b16 %v1366
        %v1381 = vpack.c.b16 %v1378, %v1377
        %v1382 = vpack.c.b16 %v1380, %v1379
        %v1386 = vsel %vm592, %v1372, 0
        %1388 = vmatprep.subr.bf16.mxu0 0
        %1389 = vmatpush1.bf16.msra.mxu0 0
        %1390 = vmatprep.subr.bf16.mxu0 0
        %1391 = vmatpush1.bf16.msra.mxu0 0
        %1392 = vmatprep.subr.bf16.mxu0 0
        %1393 = vmatpush1.bf16.msra.mxu0 0
        %1394 = vmatprep.subr.bf16.mxu0 0
        %1395 = vmatpush1.bf16.msra.mxu0 0
        %1396 = vmatprep.subr.bf16.mxu0 0
        %1397 = vmatpush1.bf16.msra.mxu0 0
        %1398 = vmatprep.subr.bf16.mxu0 0
        %1399 = vmatpush1.bf16.msra.mxu0 0
        %1400 = vmatprep.subr.bf16.mxu0 0
        %1401 = vmatpush1.bf16.msra.mxu0 %v1382
        %1402 = vmatprep.subr.bf16.mxu0 0
        %1403 = vmatpush1.bf16.msra.mxu0 %v1381
        %1404 = vmatprep.subr.bf16.mxu0 0
        %1405 = vmatpush2.bf16.msra.mxu0 0
        %1406 = vmatprep.subr.bf16.mxu0 0
        %1407 = vmatpush2.bf16.msra.mxu0 0
        %1408 = vmatprep.subr.bf16.mxu0 0
        %1409 = vmatpush2.bf16.msra.mxu0 0
        %1410 = vmatprep.subr.bf16.mxu0 0
        %1411 = vmatpush2.bf16.msra.mxu0 0
        %1412 = vmatprep.subr.bf16.mxu0 0
        %1413 = vmatpush2.bf16.msra.mxu0 0
        %1414 = vmatprep.subr.bf16.mxu0 0
        %1415 = vmatpush2.bf16.msra.mxu0 0
        %1416 = vmatprep.subr.bf16.mxu0 0
        %1417 = vmatpush2.bf16.msra.mxu0 0
        %1418 = vmatprep.subr.bf16.mxu0 0
        %1419 = vmatpush2.bf16.msra.mxu0 0
        %1420 = vmatprep.mubr.bf16.mxu0 0
        %1421 = vmatmul.mubr.bf16.gmra.mxu0 %v1386
        %v1422 = vpop.f32.mrf.mxu0
        %v1423 = vadd.f32 0.0, %v1422
        %v1424 = vpop.f32.mrf.mxu0
        %v1425 = vpop.f32.mrf.mxu0
        %v1426 = vpop.f32.mrf.mxu0
        %1427 = vdwg.mxu0
        %v1428 = vadd.f32 %v1371, %v1423
        %v1429 = vmul.f32 %v1428, 0.5
        %v1430 = vtanh.pop %v1429
        %v1431 = vmul.f32 %v1430, 0.5
        %v1432 = vadd.f32 %v1431, 0.5
        %1434 = vrot.lane.b32.xlu0 %v1370, 32
        %v1435 = vpop.permute.xlu0 %1434
        %v1437 = vmul.f32 %v1432, %v1435
        %1439 = vrot.lane.b32.xlu0 %v1430, 64
        %v1440 = vpop.permute.xlu0 %1439
        %v1442 = vmul.f32 %v1432, %v1440
        %1444 = vrot.lane.b32.xlu0 %v1442, 32
        %v1445 = vpop.permute.xlu0 %1444
        %v1447 = vadd.f32 %v1437, %v1445
        %v1448 = vtanh.pop %v1447
        %1450 = vrot.lane.b32.xlu0 %v1448, 64
        %v1451 = vpop.permute.xlu0 %1450
        %v1453 = vmul.f32 %v1432, %v1451
        %v1454 = vld [vmem:[%s671] sm:$0xff]
        %v1455 = vpack.c.bf16 %v1453, %v1453
        %1457 = vrot.lane.b32.xlu0 %v1455, 32
        %v1458 = vpop.permute.xlu0 %1457
        %v1460 = vsel %vm592, %v1458, 0
        %1462 = vmatprep.subr.bf16.mxu0 0
        %1463 = vmatpush1.bf16.msra.mxu0 0
        %1464 = vmatprep.subr.bf16.mxu0 0
        %1465 = vmatpush1.bf16.msra.mxu0 0
        %1466 = vmatprep.subr.bf16.mxu0 0
        %1467 = vmatpush1.bf16.msra.mxu0 0
        %1468 = vmatprep.subr.bf16.mxu0 0
        %1469 = vmatpush1.bf16.msra.mxu0 0
        %1470 = vmatprep.subr.bf16.mxu0 0
        %1471 = vmatpush1.bf16.msra.mxu0 0
        %1472 = vmatprep.subr.bf16.mxu0 0
        %1473 = vmatpush1.bf16.msra.mxu0 0
        %1474 = vmatprep.subr.bf16.mxu0 0
        %1475 = vmatpush1.bf16.msra.mxu0 %v1382
        %1476 = vmatprep.subr.bf16.mxu0 0
        %1477 = vmatpush1.bf16.msra.mxu0 %v1381
        %1478 = vmatprep.subr.bf16.mxu0 0
        %1479 = vmatpush2.bf16.msra.mxu0 0
        %1480 = vmatprep.subr.bf16.mxu0 0
        %1481 = vmatpush2.bf16.msra.mxu0 0
        %1482 = vmatprep.subr.bf16.mxu0 0
        %1483 = vmatpush2.bf16.msra.mxu0 0
        %1484 = vmatprep.subr.bf16.mxu0 0
        %1485 = vmatpush2.bf16.msra.mxu0 0
        %1486 = vmatprep.subr.bf16.mxu0 0
        %1487 = vmatpush2.bf16.msra.mxu0 0
        %1488 = vmatprep.subr.bf16.mxu0 0
        %1489 = vmatpush2.bf16.msra.mxu0 0
        %1490 = vmatprep.subr.bf16.mxu0 0
        %1491 = vmatpush2.bf16.msra.mxu0 0
        %1492 = vmatprep.subr.bf16.mxu0 0
        %1493 = vmatpush2.bf16.msra.mxu0 0
        %1494 = vmatprep.mubr.bf16.mxu0 0
        %1495 = vmatmul.mubr.bf16.gmra.mxu0 %v1460
        %v1496 = vpop.f32.mrf.mxu0
        %v1497 = vadd.f32 0.0, %v1496
        %v1498 = vpop.f32.mrf.mxu0
        %v1499 = vpop.f32.mrf.mxu0
        %v1500 = vpop.f32.mrf.mxu0
        %1501 = vdwg.mxu0
        %v1502 = vadd.f32 %v1454, %v1497
        %v1503 = vmul.f32 %v1502, 0.5
        %v1504 = vtanh.pop %v1503
        %v1505 = vmul.f32 %v1504, 0.5
        %v1506 = vadd.f32 %v1505, 0.5
        %v1507 = vmul.f32 %v1506, %v1447
        %1509 = vrot.lane.b32.xlu0 %v1504, 64
        %v1510 = vpop.permute.xlu0 %1509
        %v1512 = vmul.f32 %v1506, %v1510
        %1514 = vrot.lane.b32.xlu0 %v1512, 32
        %v1515 = vpop.permute.xlu0 %1514
        %v1517 = vadd.f32 %v1507, %v1515
        %v1518 = vtanh.pop %v1517
        %1520 = vrot.lane.b32.xlu0 %v1518, 64
        %v1521 = vpop.permute.xlu0 %1520
        %v1523 = vmul.f32 %v1506, %v1521
        %v1524 = vld [vmem:[%s749] sm:$0xff]
        %v1525 = vpack.c.bf16 %v1523, %v1523
        %1527 = vrot.lane.b32.xlu0 %v1525, 32
        %v1528 = vpop.permute.xlu0 %1527
        %v1530 = vsel %vm592, %v1528, 0
        %1532 = vmatprep.subr.bf16.mxu0 0
        %1533 = vmatpush1.bf16.msra.mxu0 0
        %1534 = vmatprep.subr.bf16.mxu0 0
        %1535 = vmatpush1.bf16.msra.mxu0 0
        %1536 = vmatprep.subr.bf16.mxu0 0
        %1537 = vmatpush1.bf16.msra.mxu0 0
        %1538 = vmatprep.subr.bf16.mxu0 0
        %1539 = vmatpush1.bf16.msra.mxu0 0
        %1540 = vmatprep.subr.bf16.mxu0 0
        %1541 = vmatpush1.bf16.msra.mxu0 0
        %1542 = vmatprep.subr.bf16.mxu0 0
        %1543 = vmatpush1.bf16.msra.mxu0 0
        %1544 = vmatprep.subr.bf16.mxu0 0
        %1545 = vmatpush1.bf16.msra.mxu0 %v1382
        %1546 = vmatprep.subr.bf16.mxu0 0
        %1547 = vmatpush1.bf16.msra.mxu0 %v1381
        %1548 = vmatprep.subr.bf16.mxu0 0
        %1549 = vmatpush2.bf16.msra.mxu0 0
        %1550 = vmatprep.subr.bf16.mxu0 0
        %1551 = vmatpush2.bf16.msra.mxu0 0
        %1552 = vmatprep.subr.bf16.mxu0 0
        %1553 = vmatpush2.bf16.msra.mxu0 0
        %1554 = vmatprep.subr.bf16.mxu0 0
        %1555 = vmatpush2.bf16.msra.mxu0 0
        %1556 = vmatprep.subr.bf16.mxu0 0
        %1557 = vmatpush2.bf16.msra.mxu0 0
        %1558 = vmatprep.subr.bf16.mxu0 0
        %1559 = vmatpush2.bf16.msra.mxu0 0
        %1560 = vmatprep.subr.bf16.mxu0 0
        %1561 = vmatpush2.bf16.msra.mxu0 0
        %1562 = vmatprep.subr.bf16.mxu0 0
        %1563 = vmatpush2.bf16.msra.mxu0 0
        %1564 = vmatprep.mubr.bf16.mxu0 0
        %1565 = vmatmul.mubr.bf16.gmra.mxu0 %v1530
        %v1566 = vpop.f32.mrf.mxu0
        %v1567 = vadd.f32 0.0, %v1566
        %v1568 = vpop.f32.mrf.mxu0
        %v1569 = vpop.f32.mrf.mxu0
        %v1570 = vpop.f32.mrf.mxu0
        %1571 = vdwg.mxu0
        %v1572 = vadd.f32 %v1524, %v1567
        %v1573 = vmul.f32 %v1572, 0.5
        %v1574 = vtanh.pop %v1573
        %v1575 = vmul.f32 %v1574, 0.5
        %v1576 = vadd.f32 %v1575, 0.5
        %v1577 = vmul.f32 %v1576, %v1517
        %1579 = vrot.lane.b32.xlu0 %v1574, 64
        %v1580 = vpop.permute.xlu0 %1579
        %v1582 = vmul.f32 %v1576, %v1580
        %1584 = vrot.lane.b32.xlu0 %v1582, 32
        %v1585 = vpop.permute.xlu0 %1584
        %v1587 = vadd.f32 %v1577, %v1585
        %v1588 = vtanh.pop %v1587
        %1590 = vrot.lane.b32.xlu0 %v1588, 64
        %v1591 = vpop.permute.xlu0 %1590
        %v1593 = vmul.f32 %v1576, %v1591
        %v1594 = vld [vmem:[%s827] sm:$0xff]
        %v1595 = vpack.c.bf16 %v1593, %v1593
        %1597 = vrot.lane.b32.xlu0 %v1595, 32
        %v1598 = vpop.permute.xlu0 %1597
        %v1600 = vsel %vm592, %v1598, 0
        %1602 = vmatprep.subr.bf16.mxu0 0
        %1603 = vmatpush1.bf16.msra.mxu0 0
        %1604 = vmatprep.subr.bf16.mxu0 0
        %1605 = vmatpush1.bf16.msra.mxu0 0
        %1606 = vmatprep.subr.bf16.mxu0 0
        %1607 = vmatpush1.bf16.msra.mxu0 0
        %1608 = vmatprep.subr.bf16.mxu0 0
        %1609 = vmatpush1.bf16.msra.mxu0 0
        %1610 = vmatprep.subr.bf16.mxu0 0
        %1611 = vmatpush1.bf16.msra.mxu0 0
        %1612 = vmatprep.subr.bf16.mxu0 0
        %1613 = vmatpush1.bf16.msra.mxu0 0
        %1614 = vmatprep.subr.bf16.mxu0 0
        %1615 = vmatpush1.bf16.msra.mxu0 %v1382
        %1616 = vmatprep.subr.bf16.mxu0 0
        %1617 = vmatpush1.bf16.msra.mxu0 %v1381
        %1618 = vmatprep.subr.bf16.mxu0 0
        %1619 = vmatpush2.bf16.msra.mxu0 0
        %1620 = vmatprep.subr.bf16.mxu0 0
        %1621 = vmatpush2.bf16.msra.mxu0 0
        %1622 = vmatprep.subr.bf16.mxu0 0
        %1623 = vmatpush2.bf16.msra.mxu0 0
        %1624 = vmatprep.subr.bf16.mxu0 0
        %1625 = vmatpush2.bf16.msra.mxu0 0
        %1626 = vmatprep.subr.bf16.mxu0 0
        %1627 = vmatpush2.bf16.msra.mxu0 0
        %1628 = vmatprep.subr.bf16.mxu0 0
        %1629 = vmatpush2.bf16.msra.mxu0 0
        %1630 = vmatprep.subr.bf16.mxu0 0
        %1631 = vmatpush2.bf16.msra.mxu0 0
        %1632 = vmatprep.subr.bf16.mxu0 0
        %1633 = vmatpush2.bf16.msra.mxu0 0
        %1634 = vmatprep.mubr.bf16.mxu0 0
        %1635 = vmatmul.mubr.bf16.gmra.mxu0 %v1600
        %v1636 = vpop.f32.mrf.mxu0
        %v1637 = vadd.f32 0.0, %v1636
        %v1638 = vpop.f32.mrf.mxu0
        %v1639 = vpop.f32.mrf.mxu0
        %v1640 = vpop.f32.mrf.mxu0
        %1641 = vdwg.mxu0
        %v1642 = vadd.f32 %v1594, %v1637
        %v1643 = vmul.f32 %v1642, 0.5
        %v1644 = vtanh.pop %v1643
        %v1645 = vmul.f32 %v1644, 0.5
        %v1646 = vadd.f32 %v1645, 0.5
        %v1647 = vmul.f32 %v1646, %v1587
        %1649 = vrot.lane.b32.xlu0 %v1644, 64
        %v1650 = vpop.permute.xlu0 %1649
        %v1652 = vmul.f32 %v1646, %v1650
        %1654 = vrot.lane.b32.xlu0 %v1652, 32
        %v1655 = vpop.permute.xlu0 %1654
        %v1657 = vadd.f32 %v1647, %v1655
        %v1658 = vtanh.pop %v1657
        %1660 = vrot.lane.b32.xlu0 %v1658, 64
        %v1661 = vpop.permute.xlu0 %1660
        %v1663 = vmul.f32 %v1646, %v1661
        %v1664 = vld [vmem:[%s905] sm:$0xff]
        %v1665 = vpack.c.bf16 %v1663, %v1663
        %1667 = vrot.lane.b32.xlu0 %v1665, 32
        %v1668 = vpop.permute.xlu0 %1667
        %v1670 = vsel %vm592, %v1668, 0
        %1672 = vmatprep.subr.bf16.mxu0 0
        %1673 = vmatpush1.bf16.msra.mxu0 0
        %1674 = vmatprep.subr.bf16.mxu0 0
        %1675 = vmatpush1.bf16.msra.mxu0 0
        %1676 = vmatprep.subr.bf16.mxu0 0
        %1677 = vmatpush1.bf16.msra.mxu0 0
        %1678 = vmatprep.subr.bf16.mxu0 0
        %1679 = vmatpush1.bf16.msra.mxu0 0
        %1680 = vmatprep.subr.bf16.mxu0 0
        %1681 = vmatpush1.bf16.msra.mxu0 0
        %1682 = vmatprep.subr.bf16.mxu0 0
        %1683 = vmatpush1.bf16.msra.mxu0 0
        %1684 = vmatprep.subr.bf16.mxu0 0
        %1685 = vmatpush1.bf16.msra.mxu0 %v1382
        %1686 = vmatprep.subr.bf16.mxu0 0
        %1687 = vmatpush1.bf16.msra.mxu0 %v1381
        %1688 = vmatprep.subr.bf16.mxu0 0
        %1689 = vmatpush2.bf16.msra.mxu0 0
        %1690 = vmatprep.subr.bf16.mxu0 0
        %1691 = vmatpush2.bf16.msra.mxu0 0
        %1692 = vmatprep.subr.bf16.mxu0 0
        %1693 = vmatpush2.bf16.msra.mxu0 0
        %1694 = vmatprep.subr.bf16.mxu0 0
        %1695 = vmatpush2.bf16.msra.mxu0 0
        %1696 = vmatprep.subr.bf16.mxu0 0
        %1697 = vmatpush2.bf16.msra.mxu0 0
        %1698 = vmatprep.subr.bf16.mxu0 0
        %1699 = vmatpush2.bf16.msra.mxu0 0
        %1700 = vmatprep.subr.bf16.mxu0 0
        %1701 = vmatpush2.bf16.msra.mxu0 0
        %1702 = vmatprep.subr.bf16.mxu0 0
        %1703 = vmatpush2.bf16.msra.mxu0 0
        %1704 = vmatprep.mubr.bf16.mxu0 0
        %1705 = vmatmul.mubr.bf16.gmra.mxu0 %v1670
        %v1706 = vpop.f32.mrf.mxu0
        %v1707 = vadd.f32 0.0, %v1706
        %v1708 = vpop.f32.mrf.mxu0
        %v1709 = vpop.f32.mrf.mxu0
        %v1710 = vpop.f32.mrf.mxu0
        %1711 = vdwg.mxu0
        %v1712 = vadd.f32 %v1664, %v1707
        %v1713 = vmul.f32 %v1712, 0.5
        %v1714 = vtanh.pop %v1713
        %v1715 = vmul.f32 %v1714, 0.5
        %v1716 = vadd.f32 %v1715, 0.5
        %v1717 = vmul.f32 %v1716, %v1657
        %1719 = vrot.lane.b32.xlu0 %v1714, 64
        %v1720 = vpop.permute.xlu0 %1719
        %v1722 = vmul.f32 %v1716, %v1720
        %1724 = vrot.lane.b32.xlu0 %v1722, 32
        %v1725 = vpop.permute.xlu0 %1724
        %v1727 = vadd.f32 %v1717, %v1725
        %v1728 = vtanh.pop %v1727
        %1730 = vrot.lane.b32.xlu0 %v1728, 64
        %v1731 = vpop.permute.xlu0 %1730
        %v1733 = vmul.f32 %v1716, %v1731
        %v1734 = vld [vmem:[%s983] sm:$0xff]
        %v1735 = vpack.c.bf16 %v1733, %v1733
        %1737 = vrot.lane.b32.xlu0 %v1735, 32
        %v1738 = vpop.permute.xlu0 %1737
        %v1740 = vsel %vm592, %v1738, 0
        %1742 = vmatprep.subr.bf16.mxu0 0
        %1743 = vmatpush1.bf16.msra.mxu0 0
        %1744 = vmatprep.subr.bf16.mxu0 0
        %1745 = vmatpush1.bf16.msra.mxu0 0
        %1746 = vmatprep.subr.bf16.mxu0 0
        %1747 = vmatpush1.bf16.msra.mxu0 0
        %1748 = vmatprep.subr.bf16.mxu0 0
        %1749 = vmatpush1.bf16.msra.mxu0 0
        %1750 = vmatprep.subr.bf16.mxu0 0
        %1751 = vmatpush1.bf16.msra.mxu0 0
        %1752 = vmatprep.subr.bf16.mxu0 0
        %1753 = vmatpush1.bf16.msra.mxu0 0
        %1754 = vmatprep.subr.bf16.mxu0 0
        %1755 = vmatpush1.bf16.msra.mxu0 %v1382
        %1756 = vmatprep.subr.bf16.mxu0 0
        %1757 = vmatpush1.bf16.msra.mxu0 %v1381
        %1758 = vmatprep.subr.bf16.mxu0 0
        %1759 = vmatpush2.bf16.msra.mxu0 0
        %1760 = vmatprep.subr.bf16.mxu0 0
        %1761 = vmatpush2.bf16.msra.mxu0 0
        %1762 = vmatprep.subr.bf16.mxu0 0
        %1763 = vmatpush2.bf16.msra.mxu0 0
        %1764 = vmatprep.subr.bf16.mxu0 0
        %1765 = vmatpush2.bf16.msra.mxu0 0
        %1766 = vmatprep.subr.bf16.mxu0 0
        %1767 = vmatpush2.bf16.msra.mxu0 0
        %1768 = vmatprep.subr.bf16.mxu0 0
        %1769 = vmatpush2.bf16.msra.mxu0 0
        %1770 = vmatprep.subr.bf16.mxu0 0
        %1771 = vmatpush2.bf16.msra.mxu0 0
        %1772 = vmatprep.subr.bf16.mxu0 0
        %1773 = vmatpush2.bf16.msra.mxu0 0
        %1774 = vmatprep.mubr.bf16.mxu0 0
        %1775 = vmatmul.mubr.bf16.gmra.mxu0 %v1740
        %v1776 = vpop.f32.mrf.mxu0
        %v1777 = vadd.f32 0.0, %v1776
        %v1778 = vpop.f32.mrf.mxu0
        %v1779 = vpop.f32.mrf.mxu0
        %v1780 = vpop.f32.mrf.mxu0
        %1781 = vdwg.mxu0
        %v1782 = vadd.f32 %v1734, %v1777
        %v1783 = vmul.f32 %v1782, 0.5
        %v1784 = vtanh.pop %v1783
        %v1785 = vmul.f32 %v1784, 0.5
        %v1786 = vadd.f32 %v1785, 0.5
        %v1787 = vmul.f32 %v1786, %v1727
        %1789 = vrot.lane.b32.xlu0 %v1784, 64
        %v1790 = vpop.permute.xlu0 %1789
        %v1792 = vmul.f32 %v1786, %v1790
        %1794 = vrot.lane.b32.xlu0 %v1792, 32
        %v1795 = vpop.permute.xlu0 %1794
        %v1797 = vadd.f32 %v1787, %v1795
        %v1798 = vtanh.pop %v1797
        %1800 = vrot.lane.b32.xlu0 %v1798, 64
        %v1801 = vpop.permute.xlu0 %1800
        %v1803 = vmul.f32 %v1786, %v1801
        %v1804 = vld [vmem:[%s1061] sm:$0xff]
        %v1805 = vpack.c.bf16 %v1803, %v1803
        %1807 = vrot.lane.b32.xlu0 %v1805, 32
        %v1808 = vpop.permute.xlu0 %1807
        %v1810 = vsel %vm592, %v1808, 0
        %1812 = vmatprep.subr.bf16.mxu0 0
        %1813 = vmatpush1.bf16.msra.mxu0 0
        %1814 = vmatprep.subr.bf16.mxu0 0
        %1815 = vmatpush1.bf16.msra.mxu0 0
        %1816 = vmatprep.subr.bf16.mxu0 0
        %1817 = vmatpush1.bf16.msra.mxu0 0
        %1818 = vmatprep.subr.bf16.mxu0 0
        %1819 = vmatpush1.bf16.msra.mxu0 0
        %1820 = vmatprep.subr.bf16.mxu0 0
        %1821 = vmatpush1.bf16.msra.mxu0 0
        %1822 = vmatprep.subr.bf16.mxu0 0
        %1823 = vmatpush1.bf16.msra.mxu0 0
        %1824 = vmatprep.subr.bf16.mxu0 0
        %1825 = vmatpush1.bf16.msra.mxu0 %v1382
        %1826 = vmatprep.subr.bf16.mxu0 0
        %1827 = vmatpush1.bf16.msra.mxu0 %v1381
        %1828 = vmatprep.subr.bf16.mxu0 0
        %1829 = vmatpush2.bf16.msra.mxu0 0
        %1830 = vmatprep.subr.bf16.mxu0 0
        %1831 = vmatpush2.bf16.msra.mxu0 0
        %1832 = vmatprep.subr.bf16.mxu0 0
        %1833 = vmatpush2.bf16.msra.mxu0 0
        %1834 = vmatprep.subr.bf16.mxu0 0
        %1835 = vmatpush2.bf16.msra.mxu0 0
        %1836 = vmatprep.subr.bf16.mxu0 0
        %1837 = vmatpush2.bf16.msra.mxu0 0
        %1838 = vmatprep.subr.bf16.mxu0 0
        %1839 = vmatpush2.bf16.msra.mxu0 0
        %1840 = vmatprep.subr.bf16.mxu0 0
        %1841 = vmatpush2.bf16.msra.mxu0 0
        %1842 = vmatprep.subr.bf16.mxu0 0
        %1843 = vmatpush2.bf16.msra.mxu0 0
        %1844 = vmatprep.mubr.bf16.mxu0 0
        %1845 = vmatmul.mubr.bf16.gmra.mxu0 %v1810
        %v1846 = vpop.f32.mrf.mxu0
        %v1847 = vadd.f32 0.0, %v1846
        %v1848 = vpop.f32.mrf.mxu0
        %v1849 = vpop.f32.mrf.mxu0
        %v1850 = vpop.f32.mrf.mxu0
        %1851 = vdwg.mxu0
        %v1852 = vadd.f32 %v1804, %v1847
        %v1853 = vmul.f32 %v1852, 0.5
        %v1854 = vtanh.pop %v1853
        %v1855 = vmul.f32 %v1854, 0.5
        %v1856 = vadd.f32 %v1855, 0.5
        %v1857 = vmul.f32 %v1856, %v1797
        %1859 = vrot.lane.b32.xlu0 %v1854, 64
        %v1860 = vpop.permute.xlu0 %1859
        %v1862 = vmul.f32 %v1856, %v1860
        %1864 = vrot.lane.b32.xlu0 %v1862, 32
        %v1865 = vpop.permute.xlu0 %1864
        %v1867 = vadd.f32 %v1857, %v1865
        %v1868 = vtanh.pop %v1867
        %1870 = vrot.lane.b32.xlu0 %v1868, 64
        %v1871 = vpop.permute.xlu0 %1870
        %v1873 = vmul.f32 %v1856, %v1871
        %v1874 = vld [vmem:[%s1139] sm:$0xff]
        %v1875 = vpack.c.bf16 %v1873, %v1873
        %1877 = vrot.lane.b32.xlu0 %v1875, 32
        %v1878 = vpop.permute.xlu0 %1877
        %v1880 = vsel %vm592, %v1878, 0
        %1882 = vmatprep.subr.bf16.mxu0 0
        %1883 = vmatpush1.bf16.msra.mxu0 0
        %1884 = vmatprep.subr.bf16.mxu0 0
        %1885 = vmatpush1.bf16.msra.mxu0 0
        %1886 = vmatprep.subr.bf16.mxu0 0
        %1887 = vmatpush1.bf16.msra.mxu0 0
        %1888 = vmatprep.subr.bf16.mxu0 0
        %1889 = vmatpush1.bf16.msra.mxu0 0
        %1890 = vmatprep.subr.bf16.mxu0 0
        %1891 = vmatpush1.bf16.msra.mxu0 0
        %1892 = vmatprep.subr.bf16.mxu0 0
        %1893 = vmatpush1.bf16.msra.mxu0 0
        %1894 = vmatprep.subr.bf16.mxu0 0
        %1895 = vmatpush1.bf16.msra.mxu0 %v1382
        %1896 = vmatprep.subr.bf16.mxu0 0
        %1897 = vmatpush1.bf16.msra.mxu0 %v1381
        %1898 = vmatprep.subr.bf16.mxu0 0
        %1899 = vmatpush2.bf16.msra.mxu0 0
        %1900 = vmatprep.subr.bf16.mxu0 0
        %1901 = vmatpush2.bf16.msra.mxu0 0
        %1902 = vmatprep.subr.bf16.mxu0 0
        %1903 = vmatpush2.bf16.msra.mxu0 0
        %1904 = vmatprep.subr.bf16.mxu0 0
        %1905 = vmatpush2.bf16.msra.mxu0 0
        %1906 = vmatprep.subr.bf16.mxu0 0
        %1907 = vmatpush2.bf16.msra.mxu0 0
        %1908 = vmatprep.subr.bf16.mxu0 0
        %1909 = vmatpush2.bf16.msra.mxu0 0
        %1910 = vmatprep.subr.bf16.mxu0 0
        %1911 = vmatpush2.bf16.msra.mxu0 0
        %1912 = vmatprep.subr.bf16.mxu0 0
        %1913 = vmatpush2.bf16.msra.mxu0 0
        %1914 = vmatprep.mubr.bf16.mxu0 0
        %1915 = vmatmul.mubr.bf16.gmra.mxu0 %v1880
        %v1916 = vpop.f32.mrf.mxu0
        %v1917 = vadd.f32 0.0, %v1916
        %v1918 = vpop.f32.mrf.mxu0
        %v1919 = vpop.f32.mrf.mxu0
        %v1920 = vpop.f32.mrf.mxu0
        %1921 = vdwg.mxu0
        %v1922 = vadd.f32 %v1874, %v1917
        %v1923 = vmul.f32 %v1922, 0.5
        %v1924 = vtanh.pop %v1923
        %v1925 = vmul.f32 %v1924, 0.5
        %v1926 = vadd.f32 %v1925, 0.5
        %v1927 = vmul.f32 %v1926, %v1867
        %1929 = vrot.lane.b32.xlu0 %v1924, 64
        %v1930 = vpop.permute.xlu0 %1929
        %v1932 = vmul.f32 %v1926, %v1930
        %1934 = vrot.lane.b32.xlu0 %v1932, 32
        %v1935 = vpop.permute.xlu0 %1934
        %v1937 = vadd.f32 %v1927, %v1935
        %v1938 = vtanh.pop %v1937
        %1940 = vrot.lane.b32.xlu0 %v1938, 64
        %v1941 = vpop.permute.xlu0 %1940
        %v1943 = vmul.f32 %v1926, %v1941
        %1945 = vrot.lane.b32.xlu0 %v1943, 32
        %v1946 = vpop.permute.xlu0 %1945
        %1948 = vst.msk [vmem:[%s1367] sm:$0xff] %vm592, %v1946
        %1950 = vrot.lane.b32.xlu0 %v1937, 96
        %v1951 = vpop.permute.xlu0 %1950
        %1953 = vst.msk [vmem:[%s1369] sm:$0xff] %vm592, %v1951
        %p1954 = scmp.eq.s32.totalorder %s32, 1
        // Predicated region
        $region85: #{tpu_custom_call.1} parent=55 // pred_check
          %p1955 = pneg %p1954
        $region86: #{tpu_custom_call.1} parent=55 // pred_check_branch
          %1957 = sbr.rel (%p1955) target = $region88
        $region87: #{tpu_custom_call.1} parent=55 // pred_region
          %v1958 = vld [vmem:[%s1367] sm:$0xff]
          %v1959 = vld [vmem:[#allocation15] sm:$0xff]
          %v1960 = vld [vmem:[#allocation15 + $0x8] sm:$0xff]
          %v1961 = vld [vmem:[#allocation15 + $0x10] sm:$0xff]
          %v1962 = vld [vmem:[#allocation15 + $0x18] sm:$0xff]
          %v1963 = vld [vmem:[%s8] sm:$0x1]
          %v1965 = vlaneseq
          %v1966 = vshrl.u32 %v1965, 7
          %v1967 = vsub.s32 0, %v1966
          %v1968 = vrot.slane %v1963, %v1967
          %v1971 = vsel %vm592, %v1958, 0
          %1973 = vmatprep.subr.mxu0 0.0
          %1974 = vmatpush1.msra.mxu0 0.0
          %1975 = vmatprep.subr.mxu0 0.0
          %1976 = vmatpush1.msra.mxu0 0.0
          %1977 = vmatprep.subr.mxu0 0.0
          %1978 = vmatpush1.msra.mxu0 0.0
          %1979 = vmatprep.subr.mxu0 0.0
          %1980 = vmatpush1.msra.mxu0 0.0
          %1981 = vmatprep.subr.mxu0 0.0
          %1982 = vmatpush1.msra.mxu0 0.0
          %1983 = vmatprep.subr.mxu0 0.0
          %1984 = vmatpush1.msra.mxu0 0.0
          %1985 = vmatprep.subr.mxu0 0.0
          %1986 = vmatpush1.msra.mxu0 0.0
          %1987 = vmatprep.subr.mxu0 0.0
          %1988 = vmatpush1.msra.mxu0 0.0
          %1989 = vmatprep.subr.mxu0 0.0
          %1990 = vmatpush1.msra.mxu0 0.0
          %1991 = vmatprep.subr.mxu0 0.0
          %1992 = vmatpush1.msra.mxu0 0.0
          %1993 = vmatprep.subr.mxu0 0.0
          %1994 = vmatpush1.msra.mxu0 0.0
          %1995 = vmatprep.subr.mxu0 0.0
          %1996 = vmatpush1.msra.mxu0 0.0
          %1997 = vmatprep.subr.mxu0 0.0
          %1998 = vmatpush1.msra.mxu0 %v1962
          %1999 = vmatprep.subr.mxu0 0.0
          %2000 = vmatpush1.msra.mxu0 %v1961
          %2001 = vmatprep.subr.mxu0 0.0
          %2002 = vmatpush1.msra.mxu0 %v1960
          %2003 = vmatprep.subr.mxu0 0.0
          %2004 = vmatpush1.msra.mxu0 %v1959
          %2005 = vmatprep.subr.mxu0 0.0
          %2006 = vmatpush2.msra.mxu0 0.0
          %2007 = vmatprep.subr.mxu0 0.0
          %2008 = vmatpush2.msra.mxu0 0.0
          %2009 = vmatprep.subr.mxu0 0.0
          %2010 = vmatpush2.msra.mxu0 0.0
          %2011 = vmatprep.subr.mxu0 0.0
          %2012 = vmatpush2.msra.mxu0 0.0
          %2013 = vmatprep.subr.mxu0 0.0
          %2014 = vmatpush2.msra.mxu0 0.0
          %2015 = vmatprep.subr.mxu0 0.0
          %2016 = vmatpush2.msra.mxu0 0.0
          %2017 = vmatprep.subr.mxu0 0.0
          %2018 = vmatpush2.msra.mxu0 0.0
          %2019 = vmatprep.subr.mxu0 0.0
          %2020 = vmatpush2.msra.mxu0 0.0
          %2021 = vmatprep.subr.mxu0 0.0
          %2022 = vmatpush2.msra.mxu0 0.0
          %2023 = vmatprep.subr.mxu0 0.0
          %2024 = vmatpush2.msra.mxu0 0.0
          %2025 = vmatprep.subr.mxu0 0.0
          %2026 = vmatpush2.msra.mxu0 0.0
          %2027 = vmatprep.subr.mxu0 0.0
          %2028 = vmatpush2.msra.mxu0 0.0
          %2029 = vmatprep.subr.mxu0 0.0
          %2030 = vmatpush2.msra.mxu0 0.0
          %2031 = vmatprep.subr.mxu0 0.0
          %2032 = vmatpush2.msra.mxu0 0.0
          %2033 = vmatprep.subr.mxu0 0.0
          %2034 = vmatpush2.msra.mxu0 0.0
          %2035 = vmatprep.subr.mxu0 0.0
          %2036 = vmatpush2.msra.mxu0 0.0
          %2037 = vmatprep.mubr.f32.mxu0 0.0
          %2038 = vmatmul.mubr.f32.gmra.mxu0 %v1971
          %v2039 = vpop.f32.mrf.mxu0
          %v2040 = vadd.f32 %v1968, %v2039
          %v2041 = vpop.f32.mrf.mxu0
          %2042 = vdwg.mxu0
          %2043 = vst [vmem:[#allocation17] sm:$0xff] %v2040
        $region88: #{tpu_custom_call.1} parent=55 // pred_fallthru
          _
        // Predicated region
        $region89: #{tpu_custom_call.1} parent=55 // pred_check
          %p2044 = pneg %p253
        $region90: #{tpu_custom_call.1} parent=55 // pred_check_branch
          %2046 = sbr.rel (%p2044) target = $region92
        $region91: #{tpu_custom_call.1} parent=55 // pred_region
          %s2048 = ssub.s32 128, 128
          %2049 = vsyncadd [#allocation8], %s2048
          %s2050 = smul.addr %s31, 128
          %s2051 = scalar_lea.hbm %s9, %s2050
          %s2053 = sshll.u32 [#allocation17], 4
          %s2054 = int_to_ptr.vmem [resolvable:$true] %s2053
          %2056 = dma.vmem_to_hbm [thread:$0]  %s2054, 128, %s2051, [#allocation8]
        $region92: #{tpu_custom_call.1} parent=55 // pred_fallthru
          _
        // Predicated region
        $region93: #{tpu_custom_call.1} parent=55 // pred_check
          %p2057 = pneg %p253
        $region94: #{tpu_custom_call.1} parent=55 // pred_check_branch
          %2059 = sbr.rel (%p2057) target = $region96
        $region95: #{tpu_custom_call.1} parent=55 // pred_region
          %2060 = dma.done [#allocation8], 128
        $region96: #{tpu_custom_call.1} parent=55 // pred_fallthru
          _
      $region56: #{tpu_custom_call.1} parent=5 // pred_fallthru
        _
      %p2061 = scmp.le.s32.totalorder 2, %s22
      // Predicated region
      $region97: #{tpu_custom_call.1} parent=5 // pred_check
        %p2062 = pneg %p2061
      $region98: #{tpu_custom_call.1} parent=5 // pred_check_branch
        %2064 = sbr.rel (%p2062) target = $region100
      $region99: #{tpu_custom_call.1} parent=5 // pred_region
        %s2065 = ssub.s32 %s22, 2
      $region100: #{tpu_custom_call.1} parent=5 // pred_fallthru
        _
    $region6: #{tpu_custom_call.1} parent=1 // loop_footer
      %s26 = sadd.s32 1, %s22
    $region7: #{tpu_custom_call.1} parent=1 // loop_footer_branch
      %21 = sbr.rel target = $region3
    $region8: #{tpu_custom_call.1} parent=1 // loop_exit
      _
    %2066 = vsyncpa [#allocation7], 1
    %s2067 = scalar_lea.sflag [#allocation7], 1
    %2068 = vsyncpa %s2067, 1
    %2069 = vsyncpa [#allocation10], 1
    %2070 = vsyncpa [#allocation13], 1
    %2071 = vsyncpa [#allocation16], 1
    %2072 = vsyncpa [#allocation8], 1
    %s2073 = scalar_lea.sflag [#allocation8], 1
    %2074 = vsyncpa %s2073, 1

</llo_original>
